<compile_context>
chip_gen: v6e
topology: v6e:2x2x1
jax: 0.10.0
libtpu: 0.0.40
codegen_flags: <defaults>
</compile_context>

<pallas_src>
import functools

import jax
import jax.numpy as jnp
from jax import lax
from jax.experimental import pallas as pl
from jax.experimental.pallas import tpu as pltpu

_NEG_INF = -1e30
_LANE = 128
_VMEM_BUDGET = 40 * 1024 * 1024   # conservative: fits v7x's 64 MiB/TC physical VMEM
_VMEM_LIMIT = 48 * 1024 * 1024


def _round_up(x, m):
    return ((x + m - 1) // m) * m


def _vmem_estimate(C, C_red, tq, tk, kv_block_elems):
    """Rough VMEM bytes used by blocks, scratch and the large temporaries."""
    blocks = 2 * 4 * (C * tq) * 2                                  # xq + out, 2x buffered, f32
    kv = 2 * 4 * kv_block_elems                                    # xkv block, 2x buffered, f32
    weights = 4 * (2 * C_red * C + C * C + 2 * C_red + 2 * C)
    scratch = 4 * (C_red * tq + 2 * tq + C * tq)
    temps = tk * tq * (4 + 4 + 2) + (C_red + C) * tk * (4 + 2)     # energy, p, p_bf16, k, v
    return blocks + kv + weights + scratch + temps


def _select_config(N, C, C_red, tq_max, tk_max, force_streamed):
    np128 = _round_up(N, _LANE)
    tq = min(_round_up(max(tq_max, _LANE), _LANE), np128)
    tk = min(_round_up(max(tk_max, _LANE), _LANE), np128)
    tk = max((tk // tq) * tq, tq)                                  # tk is a multiple of tq
    # Shrink tk, then tq, until the streamed-path estimate fits the budget.
    while _vmem_estimate(C, C_red, tq, tk, C * tk) > _VMEM_BUDGET:
        if tk > tq:
            tk = max(((tk // 2) // tq) * tq, tq)
        elif tq > _LANE:
            tq //= 2
            tk = tq
        else:
            break
    n_pad = _round_up(N, tk)
    resident = (not force_streamed) and (
        _vmem_estimate(C, C_red, tq, tk, C * n_pad) <= _VMEM_BUDGET)
    return tq, tk, n_pad, resident


def _sam_kernel(gamma_ref, xq_ref, xkv_ref, wq_ref, bq_ref, wk_ref, bk_ref,
                wv_ref, bv_ref, o_ref, q_scr, m_scr, l_scr, acc_scr,
                *, tk, n_valid, mask_last, resident):
    ki = pl.program_id(2)
    nk = pl.num_programs(2)

    @pl.when(ki == 0)
    def _init():
        # Query projection (1x1x1 conv == channel matmul), once per (b, qi).
        xq = xq_ref[0].astype(jnp.float32)                                 # (C, tq)
        q_scr[...] = (jnp.dot(wq_ref[...], xq,
                              preferred_element_type=jnp.float32)
                      + bq_ref[...])                                       # (C_red, tq)
        m_scr[...] = jnp.full_like(m_scr, _NEG_INF)
        l_scr[...] = jnp.zeros_like(l_scr)
        acc_scr[...] = jnp.zeros_like(acc_scr)

    if resident:
        # x[b] is VMEM-resident (DMA'd from HBM once per batch since its block
        # index is constant over qi/ki); slice this kv tile with an aligned ds.
        kstart = pl.multiple_of(ki * tk, _LANE)
        xkv = xkv_ref[0, :, pl.ds(kstart, tk)].astype(jnp.float32)         # (C, tk)
    else:
        xkv = xkv_ref[0].astype(jnp.float32)                               # (C, tk)

    # Key / value projections for this kv tile (tiny channel matmuls, f32).
    k = jnp.dot(wk_ref[...], xkv, preferred_element_type=jnp.float32) + bk_ref[...]
    v = jnp.dot(wv_ref[...], xkv, preferred_element_type=jnp.float32) + bv_ref[...]

    # energy[j, i] = k_j . q_i -> (tk, tq): kv on sublanes, queries lane-dense.
    # bf16 MXU operands, f32 accumulation.
    energy = lax.dot_general(
        k.astype(jnp.bfloat16), q_scr[...].astype(jnp.bfloat16),
        dimension_numbers=(((0,), (0,)), ((), ())),
        preferred_element_type=jnp.float32)                                # (tk, tq)

    if mask_last:
        # Only emitted (trace time) when N % tk != 0.  A (tk, 1) additive bias
        # broadcast over lanes; it is all-zero on interior kv tiles (only the
        # last tile holds padding), and n_pad = round_up(N, tk) guarantees every
        # kv tile has at least one valid position (so m/l never see only -inf).
        col = ki * tk + lax.broadcasted_iota(jnp.int32, (tk, 1), 0)
        energy = energy + jnp.where(col < n_valid,
                                    jnp.float32(0.0), jnp.float32(_NEG_INF))

    # Online softmax over the kv (sublane) axis; statistics kept in f32.
    m_new = jnp.maximum(m_scr[...], jnp.max(energy, axis=0, keepdims=True))  # (1, tq)
    alpha = jnp.exp(m_scr[...] - m_new)                                      # (1, tq)
    p = jnp.exp(energy - m_new)                                              # (tk, tq)
    l_scr[...] = alpha * l_scr[...] + jnp.sum(p, axis=0, keepdims=True)
    acc_scr[...] = alpha * acc_scr[...] + jnp.dot(
        v.astype(jnp.bfloat16), p.astype(jnp.bfloat16),
        preferred_element_type=jnp.float32)                                  # (C, tq)
    m_scr[...] = m_new

    @pl.when(ki == nk - 1)
    def _finalize():
        # Exact reciprocal (once per (b, qi)) keeps headroom with bf16 matmuls.
        out = acc_scr[...] * pl.reciprocal(l_scr[...])                       # (C, tq)
        gamma = gamma_ref[0]
        # TODO(synk): ModulationAggregationBlock is not defined in the reference
        # source; additive residual modulation (x + gamma * attn_out) is assumed,
        # matching the standard DANet aggregation.
        o_ref[0] = (xq_ref[0].astype(jnp.float32) + gamma * out).astype(o_ref.dtype)


def spatial_attention_module(x, wq, bq, wk, bk, wv, bv, gamma, *,
                             tq_max=512, tk_max=2048, force_streamed=False):
    """x: (B, C, D, H, W) float32 (NCDHW, matching PyTorch).
    wq/wk: (C_red, C, 1, 1, 1), wv: (C, C, 1, 1, 1), biases 1-D, gamma: (1,)."""
    B, C, D, H, W = x.shape
    C_red = wq.shape[0]
    N = D * H * W

    tq, tk, n_pad, resident = _select_config(N, C, C_red, tq_max, tk_max,
                                             force_streamed)
    nq, nk = n_pad // tq, n_pad // tk

    x_flat = x.reshape(B, C, N)                     # lane-dense: N on lanes
    if n_pad != N:
        x_flat = jnp.pad(x_flat, ((0, 0), (0, 0), (0, n_pad - N)))

    wq2 = wq.reshape(C_red, C)
    wk2 = wk.reshape(C_red, C)
    wv2 = wv.reshape(C, C)
    bq2 = bq.reshape(C_red, 1)
    bk2 = bk.reshape(C_red, 1)
    bv2 = bv.reshape(C, 1)
    gamma1 = gamma.reshape(1).astype(jnp.float32)

    if resident:
        kv_spec = pl.BlockSpec((1, C, n_pad), lambda b, qi, ki: (b, 0, 0))
    else:
        kv_spec = pl.BlockSpec((1, C, tk), lambda b, qi, ki: (b, 0, ki))

    kernel = functools.partial(_sam_kernel, tk=tk, n_valid=N,
                               mask_last=(N % tk != 0), resident=resident)

    smem = pl.BlockSpec(memory_space=pltpu.MemorySpace.SMEM)
    grid_spec = pltpu.PrefetchScalarGridSpec(
        num_scalar_prefetch=0,
        grid=(B, nq, nk),
        in_specs=[
            smem,                                                     # gamma (scalar)
            pl.BlockSpec((1, C, tq), lambda b, qi, ki: (b, 0, qi)),   # x (query/residual tile)
            kv_spec,                                                  # x (kv: resident or streamed)
            pl.BlockSpec((C_red, C), lambda b, qi, ki: (0, 0)),       # Wq
            pl.BlockSpec((C_red, 1), lambda b, qi, ki: (0, 0)),       # bq
            pl.BlockSpec((C_red, C), lambda b, qi, ki: (0, 0)),       # Wk
            pl.BlockSpec((C_red, 1), lambda b, qi, ki: (0, 0)),       # bk
            pl.BlockSpec((C, C), lambda b, qi, ki: (0, 0)),           # Wv
            pl.BlockSpec((C, 1), lambda b, qi, ki: (0, 0)),           # bv
        ],
        out_specs=pl.BlockSpec((1, C, tq), lambda b, qi, ki: (b, 0, qi)),
        scratch_shapes=[
            pltpu.VMEM((C_red, tq), jnp.float32),   # q tile
            pltpu.VMEM((1, tq), jnp.float32),       # running max
            pltpu.VMEM((1, tq), jnp.float32),       # running sum
            pltpu.VMEM((C, tq), jnp.float32),       # output accumulator
        ],
    )

    steps = B * nq * nk
    kv_hbm_reads = 1 if resident else nq
    flops = int(steps * 2 * C * tk * (C_red + C)          # k / v projections
                + B * nq * 2 * C_red * C * tq             # q projection
                + steps * 2 * tk * tq * (C_red + C))      # energy + v @ p
    transcendentals = int(steps * tk * tq)
    bytes_accessed = int(4 * (B * C * n_pad * (2 + kv_hbm_reads)
                              + 2 * C_red * C + C * C + 2 * C_red + 2 * C + 1))

    out_flat = pl.pallas_call(
        kernel,
        out_shape=jax.ShapeDtypeStruct((B, C, n_pad), x.dtype),
        grid_spec=grid_spec,
        compiler_params=pltpu.CompilerParams(
            dimension_semantics=("parallel", "parallel", "arbitrary"),
            vmem_limit_bytes=_VMEM_LIMIT),
        cost_estimate=pl.CostEstimate(flops=flops,
                                      transcendentals=transcendentals,
                                      bytes_accessed=bytes_accessed),
    )(gamma1, x_flat, x_flat, wq2, bq2, wk2, bk2, wv2, bv2)

    return out_flat[:, :, :N].reshape(B, C, D, H, W)


def _reference(x, wq, bq, wk, bk, wv, bv, gamma):
    """Pure-JAX reference mirroring the PyTorch forward exactly."""
    B, C, D, H, W = x.shape
    C_red = wq.shape[0]
    N = D * H * W
    xf = x.reshape(B, C, N)                                        # (B, C, N)
    q = jnp.einsum('oc,bcn->bon', wq.reshape(C_red, C), xf) + bq[None, :, None]
    k = jnp.einsum('oc,bcn->bon', wk.reshape(C_red, C), xf) + bk[None, :, None]
    v = jnp.einsum('oc,bcn->bon', wv.reshape(C, C), xf) + bv[None, :, None]
    q = jnp.transpose(q, (0, 2, 1))                                # (B, N, C_red)
    energy = jnp.einsum('bnc,bcm->bnm', q, k)                      # (B, N, N)
    attn = jax.nn.softmax(energy, axis=-1)
    attn_t = jnp.transpose(attn, (0, 2, 1))
    out = jnp.einsum('bcn,bnm->bcm', v, attn_t)                    # (B, C, N)
    out = out.reshape(B, C, D, H, W)
    return x + gamma.reshape(()) * out


if __name__ == "__main__":
    key = jax.random.PRNGKey(0)
    B, C = 2, 4                           # gate_channels = 4
    reduction_ratio = 2
    C_red = C // reduction_ratio
    D, H, W = 4, 12, 12                   # N = 576: multi query/kv tiles + padded last kv tile

    k_x, k_wq, k_bq, k_wk, k_bk, k_wv, k_bv = jax.random.split(key, 7)
    x = jax.random.normal(k_x, (B, C, D, H, W), dtype=jnp.float32)

    # Conv3d(kernel_size=(1,1,1)) parameter shapes, deterministic init.
    wq = jax.random.normal(k_wq, (C_red, C, 1, 1, 1), dtype=jnp.float32) * 0.2
    bq = jax.random.normal(k_bq, (C_red,), dtype=jnp.float32) * 0.1
    wk = jax.random.normal(k_wk, (C_red, C, 1, 1, 1), dtype=jnp.float32) * 0.2
    bk = jax.random.normal(k_bk, (C_red,), dtype=jnp.float32) * 0.1
    wv = jax.random.normal(k_wv, (C, C, 1, 1, 1), dtype=jnp.float32) * 0.2
    bv = jax.random.normal(k_bv, (C,), dtype=jnp.float32) * 0.1
    # gamma is torch.zeros(1) at init; use a nonzero deterministic value so the
    # attention path is actually exercised.
    gamma = jnp.array([0.5], dtype=jnp.float32)

    ref = _reference(x, wq, bq, wk, bk, wv, bv, gamma)

    # Default path (VMEM-resident kv side).
    out = spatial_attention_module(x, wq, bq, wk, bk, wv, bv, gamma)
    out = jax.block_until_ready(out)
    assert out.shape == (B, C, D, H, W)
    err = float(jnp.max(jnp.abs(out - ref)))
    assert jnp.allclose(out, ref, atol=2e-3, rtol=2e-3), \
        f"resident path max abs err {err}"

    # Fallback path (streamed kv tiles, used when the resident block would not
    # fit the per-core VMEM budget, e.g. large C * N on v7x).
    out_s = spatial_attention_module(x, wq, bq, wk, bk, wv, bv, gamma,
                                     force_streamed=True)
    out_s = jax.block_until_ready(out_s)
    err_s = float(jnp.max(jnp.abs(out_s - ref)))
    assert jnp.allclose(out_s, ref, atol=2e-3, rtol=2e-3), \
        f"streamed path max abs err {err_s}"

    print("KERNEL_OK")
</pallas_src>

<mosaic_0001>
module attributes {stable_mosaic.version = 11 : i64} {
  func.func @_sam_kernel(%arg0: i32, %arg1: i32, %arg2: i32, %arg3: memref<1xf32, #tpu.memory_space<smem>>, %arg4: memref<1x4x512xf32, #tpu.memory_space<vmem>>, %arg5: memref<1x4x1024xf32, #tpu.memory_space<vmem>>, %arg6: memref<2x4xf32, #tpu.memory_space<vmem>>, %arg7: memref<2x1xf32, #tpu.memory_space<vmem>>, %arg8: memref<2x4xf32, #tpu.memory_space<vmem>>, %arg9: memref<2x1xf32, #tpu.memory_space<vmem>>, %arg10: memref<4x4xf32, #tpu.memory_space<vmem>>, %arg11: memref<4x1xf32, #tpu.memory_space<vmem>>, %arg12: memref<1x4x512xf32, #tpu.memory_space<vmem>>, %arg13: memref<2x512xf32, #tpu.memory_space<vmem>>, %arg14: memref<1x512xf32, #tpu.memory_space<vmem>>, %arg15: memref<1x512xf32, #tpu.memory_space<vmem>>, %arg16: memref<4x512xf32, #tpu.memory_space<vmem>>) attributes {dimension_semantics = [#tpu.dimension_semantics<parallel>, #tpu.dimension_semantics<parallel>, #tpu.dimension_semantics<arbitrary>], iteration_bounds = array<i64: 2, 2, 2>, scalar_prefetch = 0 : i64, scratch_operands = 4 : i64, tpu.core_type = #tpu.core_type<tc>, window_params = [{transform_indices = @transform_0, window_bounds = array<i64: 1>}, {transform_indices = @transform_1, window_bounds = array<i64: 1, 4, 512>}, {transform_indices = @transform_2, window_bounds = array<i64: 1, 4, 1024>}, {pipeline_mode = #tpu.pipeline_mode<synchronous>, transform_indices = @transform_3, window_bounds = array<i64: 2, 4>}, {pipeline_mode = #tpu.pipeline_mode<synchronous>, transform_indices = @transform_4, window_bounds = array<i64: 2, 1>}, {pipeline_mode = #tpu.pipeline_mode<synchronous>, transform_indices = @transform_5, window_bounds = array<i64: 2, 4>}, {pipeline_mode = #tpu.pipeline_mode<synchronous>, transform_indices = @transform_6, window_bounds = array<i64: 2, 1>}, {pipeline_mode = #tpu.pipeline_mode<synchronous>, transform_indices = @transform_7, window_bounds = array<i64: 4, 4>}, {pipeline_mode = #tpu.pipeline_mode<synchronous>, transform_indices = @transform_8, window_bounds = array<i64: 4, 1>}, {transform_indices = @transform_9, window_bounds = array<i64: 1, 4, 512>}]} {
    %c0_i32 = arith.constant 0 : i32
    %0 = arith.cmpi eq, %arg2, %c0_i32 : i32
    %1 = arith.extui %0 : i1 to i32
    %c0_i32_0 = arith.constant 0 : i32
    %2 = arith.cmpi ne, %1, %c0_i32_0 : i32
    scf.if %2 {
      %c0_35 = arith.constant 0 : index
      %c0_36 = arith.constant 0 : index
      %c0_37 = arith.constant 0 : index
      %61 = vector.load %arg4[%c0_35, %c0_36, %c0_37] : memref<1x4x512xf32, #tpu.memory_space<vmem>>, vector<1x4x512xf32>
      %62 = vector.shape_cast %61 : vector<1x4x512xf32> to vector<4x512xf32>
      %c0_38 = arith.constant 0 : index
      %c0_39 = arith.constant 0 : index
      %63 = vector.load %arg6[%c0_38, %c0_39] : memref<2x4xf32, #tpu.memory_space<vmem>>, vector<2x4xf32>
      %cst_40 = arith.constant dense<0.000000e+00> : vector<2x512xf32>
      %64 = tpu.matmul %63, %62, %cst_40 {dimension_numbers = #tpu.dot_dimension_numbers<[1], [0], [0], [1], [0, 0, 1, 1], [], []>} : vector<2x4xf32>, vector<4x512xf32>, vector<2x512xf32> -> vector<2x512xf32>
      %c0_41 = arith.constant 0 : index
      %c0_42 = arith.constant 0 : index
      %65 = vector.load %arg7[%c0_41, %c0_42] : memref<2x1xf32, #tpu.memory_space<vmem>>, vector<2x1xf32>
      %66 = vector.broadcast %65 : vector<2x1xf32> to vector<2x512xf32>
      %67 = arith.addf %64, %66 : vector<2x512xf32>
      %c0_43 = arith.constant 0 : index
      %c0_44 = arith.constant 0 : index
      %68 = vector.load %arg13[%c0_43, %c0_44] : memref<2x512xf32, #tpu.memory_space<vmem>>, vector<2x512xf32>
      tpu.vector_store %arg13[%c0_43, %c0_44], %67 {strides = array<i32>} : memref<2x512xf32, #tpu.memory_space<vmem>>, vector<2x512xf32>,
      %cst_45 = arith.constant -1.000000e+30 : f32
      %69 = vector.broadcast %cst_45 : f32 to vector<1x512xf32>
      %c0_46 = arith.constant 0 : index
      %c0_47 = arith.constant 0 : index
      %70 = vector.load %arg14[%c0_46, %c0_47] : memref<1x512xf32, #tpu.memory_space<vmem>>, vector<1x512xf32>
      tpu.vector_store %arg14[%c0_46, %c0_47], %69 {strides = array<i32>} : memref<1x512xf32, #tpu.memory_space<vmem>>, vector<1x512xf32>,
      %cst_48 = arith.constant 0.000000e+00 : f32
      %71 = vector.broadcast %cst_48 : f32 to vector<1x512xf32>
      %c0_49 = arith.constant 0 : index
      %c0_50 = arith.constant 0 : index
      %72 = vector.load %arg15[%c0_49, %c0_50] : memref<1x512xf32, #tpu.memory_space<vmem>>, vector<1x512xf32>
      tpu.vector_store %arg15[%c0_49, %c0_50], %71 {strides = array<i32>} : memref<1x512xf32, #tpu.memory_space<vmem>>, vector<1x512xf32>,
      %cst_51 = arith.constant 0.000000e+00 : f32
      %73 = vector.broadcast %cst_51 : f32 to vector<4x512xf32>
      %c0_52 = arith.constant 0 : index
      %c0_53 = arith.constant 0 : index
      %74 = vector.load %arg16[%c0_52, %c0_53] : memref<4x512xf32, #tpu.memory_space<vmem>>, vector<4x512xf32>
      tpu.vector_store %arg16[%c0_52, %c0_53], %73 {strides = array<i32>} : memref<4x512xf32, #tpu.memory_space<vmem>>, vector<4x512xf32>,
    } else {
    }
    %c512_i32 = arith.constant 512 : i32
    %3 = arith.muli %arg2, %c512_i32 : i32
    %4 = tpu.assume_multiple %3, 128 : i32
    %c0 = arith.constant 0 : index
    %c0_1 = arith.constant 0 : index
    %5 = arith.index_cast %4 : i32 to index
    %6 = vector.load %arg5[%c0, %c0_1, %5] : memref<1x4x1024xf32, #tpu.memory_space<vmem>>, vector<1x4x512xf32>
    %7 = vector.shape_cast %6 : vector<1x4x512xf32> to vector<4x512xf32>
    %c0_2 = arith.constant 0 : index
    %c0_3 = arith.constant 0 : index
    %8 = vector.load %arg8[%c0_2, %c0_3] : memref<2x4xf32, #tpu.memory_space<vmem>>, vector<2x4xf32>
    %cst = arith.constant dense<0.000000e+00> : vector<2x512xf32>
    %9 = tpu.matmul %8, %7, %cst {dimension_numbers = #tpu.dot_dimension_numbers<[1], [0], [0], [1], [0, 0, 1, 1], [], []>} : vector<2x4xf32>, vector<4x512xf32>, vector<2x512xf32> -> vector<2x512xf32>
    %c0_4 = arith.constant 0 : index
    %c0_5 = arith.constant 0 : index
    %10 = vector.load %arg9[%c0_4, %c0_5] : memref<2x1xf32, #tpu.memory_space<vmem>>, vector<2x1xf32>
    %11 = vector.broadcast %10 : vector<2x1xf32> to vector<2x512xf32>
    %12 = arith.addf %9, %11 : vector<2x512xf32>
    %c0_6 = arith.constant 0 : index
    %c0_7 = arith.constant 0 : index
    %13 = vector.load %arg10[%c0_6, %c0_7] : memref<4x4xf32, #tpu.memory_space<vmem>>, vector<4x4xf32>
    %cst_8 = arith.constant dense<0.000000e+00> : vector<4x512xf32>
    %14 = tpu.matmul %13, %7, %cst_8 {dimension_numbers = #tpu.dot_dimension_numbers<[1], [0], [0], [1], [0, 0, 1, 1], [], []>} : vector<4x4xf32>, vector<4x512xf32>, vector<4x512xf32> -> vector<4x512xf32>
    %c0_9 = arith.constant 0 : index
    %c0_10 = arith.constant 0 : index
    %15 = vector.load %arg11[%c0_9, %c0_10] : memref<4x1xf32, #tpu.memory_space<vmem>>, vector<4x1xf32>
    %16 = vector.broadcast %15 : vector<4x1xf32> to vector<4x512xf32>
    %17 = arith.addf %14, %16 : vector<4x512xf32>
    %18 = arith.truncf %12 : vector<2x512xf32> to vector<2x512xbf16>
    %c0_11 = arith.constant 0 : index
    %c0_12 = arith.constant 0 : index
    %19 = vector.load %arg13[%c0_11, %c0_12] : memref<2x512xf32, #tpu.memory_space<vmem>>, vector<2x512xf32>
    %20 = arith.truncf %19 : vector<2x512xf32> to vector<2x512xbf16>
    %cst_13 = arith.constant dense<0.000000e+00> : vector<512x512xf32>
    %21 = tpu.matmul %18, %20, %cst_13 {dimension_numbers = #tpu.dot_dimension_numbers<[0], [0], [1], [1], [0, 1, 1, 1], [], []>} : vector<2x512xbf16>, vector<2x512xbf16>, vector<512x512xf32> -> vector<512x512xf32>
    %c512_i32_14 = arith.constant 512 : i32
    %22 = arith.muli %arg2, %c512_i32_14 : i32
    %23 = tpu.iota {dimensions = array<i32: 0>} : vector<512x1xi32>
    %24 = vector.broadcast %22 : i32 to vector<512x1xi32>
    %25 = arith.addi %24, %23 : vector<512x1xi32>
    %c576_i32 = arith.constant 576 : i32
    %26 = vector.broadcast %c576_i32 : i32 to vector<512x1xi32>
    %27 = arith.cmpi slt, %25, %26 : vector<512x1xi32>
    %cst_15 = arith.constant 0.000000e+00 : f32
    %cst_16 = arith.constant -1.000000e+30 : f32
    %28 = vector.broadcast %cst_15 : f32 to vector<512x1xf32>
    %29 = vector.broadcast %cst_16 : f32 to vector<512x1xf32>
    %30 = arith.select %27, %28, %29 : vector<512x1xi1>, vector<512x1xf32>
    %31 = vector.broadcast %30 : vector<512x1xf32> to vector<512x512xf32>
    %32 = arith.addf %21, %31 : vector<512x512xf32>
    %c0_17 = arith.constant 0 : index
    %c0_18 = arith.constant 0 : index
    %33 = vector.load %arg14[%c0_17, %c0_18] : memref<1x512xf32, #tpu.memory_space<vmem>>, vector<1x512xf32>
    %cst_19 = arith.constant dense<0xFF800000> : vector<512xf32>
    %34 = vector.multi_reduction <maximumf>, %32, %cst_19 [0] : vector<512x512xf32> to vector<512xf32>
    %35 = vector.shape_cast %34 : vector<512xf32> to vector<1x512xf32>
    %36 = arith.maximumf %33, %35 : vector<1x512xf32>
    %c0_20 = arith.constant 0 : index
    %c0_21 = arith.constant 0 : index
    %37 = vector.load %arg14[%c0_20, %c0_21] : memref<1x512xf32, #tpu.memory_space<vmem>>, vector<1x512xf32>
    %38 = arith.subf %37, %36 : vector<1x512xf32>
    %39 = math.exp %38 : vector<1x512xf32>
    %40 = vector.broadcast %36 : vector<1x512xf32> to vector<512x512xf32>
    %41 = arith.subf %32, %40 : vector<512x512xf32>
    %42 = math.exp %41 : vector<512x512xf32>
    %c0_22 = arith.constant 0 : index
    %c0_23 = arith.constant 0 : index
    %43 = vector.load %arg15[%c0_22, %c0_23] : memref<1x512xf32, #tpu.memory_space<vmem>>, vector<1x512xf32>
    %44 = arith.mulf %39, %43 : vector<1x512xf32>
    %cst_24 = arith.constant dense<0.000000e+00> : vector<512xf32>
    %45 = vector.multi_reduction <add>, %42, %cst_24 [0] : vector<512x512xf32> to vector<512xf32>
    %46 = vector.shape_cast %45 : vector<512xf32> to vector<1x512xf32>
    %47 = arith.addf %44, %46 : vector<1x512xf32>
    %c0_25 = arith.constant 0 : index
    %c0_26 = arith.constant 0 : index
    %48 = vector.load %arg15[%c0_25, %c0_26] : memref<1x512xf32, #tpu.memory_space<vmem>>, vector<1x512xf32>
    tpu.vector_store %arg15[%c0_25, %c0_26], %47 {strides = array<i32>} : memref<1x512xf32, #tpu.memory_space<vmem>>, vector<1x512xf32>,
    %c0_27 = arith.constant 0 : index
    %c0_28 = arith.constant 0 : index
    %49 = vector.load %arg16[%c0_27, %c0_28] : memref<4x512xf32, #tpu.memory_space<vmem>>, vector<4x512xf32>
    %50 = vector.broadcast %39 : vector<1x512xf32> to vector<4x512xf32>
    %51 = arith.mulf %50, %49 : vector<4x512xf32>
    %52 = arith.truncf %17 : vector<4x512xf32> to vector<4x512xbf16>
    %53 = arith.truncf %42 : vector<512x512xf32> to vector<512x512xbf16>
    %cst_29 = arith.constant dense<0.000000e+00> : vector<4x512xf32>
    %54 = tpu.matmul %52, %53, %cst_29 {dimension_numbers = #tpu.dot_dimension_numbers<[1], [0], [0], [1], [0, 0, 1, 1], [], []>} : vector<4x512xbf16>, vector<512x512xbf16>, vector<4x512xf32> -> vector<4x512xf32>
    %55 = arith.addf %51, %54 : vector<4x512xf32>
    %c0_30 = arith.constant 0 : index
    %c0_31 = arith.constant 0 : index
    %56 = vector.load %arg16[%c0_30, %c0_31] : memref<4x512xf32, #tpu.memory_space<vmem>>, vector<4x512xf32>
    tpu.vector_store %arg16[%c0_30, %c0_31], %55 {strides = array<i32>} : memref<4x512xf32, #tpu.memory_space<vmem>>, vector<4x512xf32>,
    %c0_32 = arith.constant 0 : index
    %c0_33 = arith.constant 0 : index
    %57 = vector.load %arg14[%c0_32, %c0_33] : memref<1x512xf32, #tpu.memory_space<vmem>>, vector<1x512xf32>
    tpu.vector_store %arg14[%c0_32, %c0_33], %36 {strides = array<i32>} : memref<1x512xf32, #tpu.memory_space<vmem>>, vector<1x512xf32>,
    %c1_i32 = arith.constant 1 : i32
    %58 = arith.cmpi eq, %arg2, %c1_i32 : i32
    %59 = arith.extui %58 : i1 to i32
    %c0_i32_34 = arith.constant 0 : i32
    %60 = arith.cmpi ne, %59, %c0_i32_34 : i32
    scf.if %60 {
      %c0_35 = arith.constant 0 : index
      %c0_36 = arith.constant 0 : index
      %61 = vector.load %arg16[%c0_35, %c0_36] : memref<4x512xf32, #tpu.memory_space<vmem>>, vector<4x512xf32>
      %c0_37 = arith.constant 0 : index
      %c0_38 = arith.constant 0 : index
      %62 = vector.load %arg15[%c0_37, %c0_38] : memref<1x512xf32, #tpu.memory_space<vmem>>, vector<1x512xf32>
      %63 = tpu.reciprocal %62 : vector<1x512xf32> -> vector<1x512xf32>
      %64 = vector.broadcast %63 : vector<1x512xf32> to vector<4x512xf32>
      %65 = arith.mulf %61, %64 : vector<4x512xf32>
      %c0_39 = arith.constant 0 : index
      %66 = memref.load %arg3[%c0_39] : memref<1xf32, #tpu.memory_space<smem>>
      %c0_40 = arith.constant 0 : index
      %c0_41 = arith.constant 0 : index
      %c0_42 = arith.constant 0 : index
      %67 = vector.load %arg4[%c0_40, %c0_41, %c0_42] : memref<1x4x512xf32, #tpu.memory_space<vmem>>, vector<1x4x512xf32>
      %68 = vector.shape_cast %67 : vector<1x4x512xf32> to vector<4x512xf32>
      %69 = vector.broadcast %66 : f32 to vector<4x512xf32>
      %70 = arith.mulf %69, %65 : vector<4x512xf32>
      %71 = arith.addf %68, %70 : vector<4x512xf32>
      %c0_43 = arith.constant 0 : index
      %c0_44 = arith.constant 0 : index
      %c0_45 = arith.constant 0 : index
      %72 = vector.load %arg12[%c0_43, %c0_44, %c0_45] : memref<1x4x512xf32, #tpu.memory_space<vmem>>, vector<1x4x512xf32>
      %73 = vector.shape_cast %72 : vector<1x4x512xf32> to vector<4x512xf32>
      %74 = vector.shape_cast %71 : vector<4x512xf32> to vector<1x4x512xf32>
      tpu.vector_store %arg12[%c0_43, %c0_44, %c0_45], %74 {strides = array<i32>} : memref<1x4x512xf32, #tpu.memory_space<vmem>>, vector<1x4x512xf32>,
    } else {
    }
    return
  }
  func.func @transform_0(%arg0: i32, %arg1: i32, %arg2: i32) -> i32 {
    %c0_i32 = arith.constant 0 : i32
    %c0_i32_0 = arith.constant 0 : i32
    return %c0_i32 : i32
  }
  func.func @transform_1(%arg0: i32, %arg1: i32, %arg2: i32) -> (i32, i32, i32) {
    %c0_i32 = arith.constant 0 : i32
    %c0_i32_0 = arith.constant 0 : i32
    return %arg0, %c0_i32, %arg1 : i32, i32, i32
  }
  func.func @transform_2(%arg0: i32, %arg1: i32, %arg2: i32) -> (i32, i32, i32) {
    %c0_i32 = arith.constant 0 : i32
    %c0_i32_0 = arith.constant 0 : i32
    %c0_i32_1 = arith.constant 0 : i32
    return %arg0, %c0_i32, %c0_i32_0 : i32, i32, i32
  }
  func.func @transform_3(%arg0: i32, %arg1: i32, %arg2: i32) -> (i32, i32) {
    %c0_i32 = arith.constant 0 : i32
    %c0_i32_0 = arith.constant 0 : i32
    %c0_i32_1 = arith.constant 0 : i32
    return %c0_i32, %c0_i32_0 : i32, i32
  }
  func.func @transform_4(%arg0: i32, %arg1: i32, %arg2: i32) -> (i32, i32) {
    %c0_i32 = arith.constant 0 : i32
    %c0_i32_0 = arith.constant 0 : i32
    %c0_i32_1 = arith.constant 0 : i32
    return %c0_i32, %c0_i32_0 : i32, i32
  }
  func.func @transform_5(%arg0: i32, %arg1: i32, %arg2: i32) -> (i32, i32) {
    %c0_i32 = arith.constant 0 : i32
    %c0_i32_0 = arith.constant 0 : i32
    %c0_i32_1 = arith.constant 0 : i32
    return %c0_i32, %c0_i32_0 : i32, i32
  }
  func.func @transform_6(%arg0: i32, %arg1: i32, %arg2: i32) -> (i32, i32) {
    %c0_i32 = arith.constant 0 : i32
    %c0_i32_0 = arith.constant 0 : i32
    %c0_i32_1 = arith.constant 0 : i32
    return %c0_i32, %c0_i32_0 : i32, i32
  }
  func.func @transform_7(%arg0: i32, %arg1: i32, %arg2: i32) -> (i32, i32) {
    %c0_i32 = arith.constant 0 : i32
    %c0_i32_0 = arith.constant 0 : i32
    %c0_i32_1 = arith.constant 0 : i32
    return %c0_i32, %c0_i32_0 : i32, i32
  }
  func.func @transform_8(%arg0: i32, %arg1: i32, %arg2: i32) -> (i32, i32) {
    %c0_i32 = arith.constant 0 : i32
    %c0_i32_0 = arith.constant 0 : i32
    %c0_i32_1 = arith.constant 0 : i32
    return %c0_i32, %c0_i32_0 : i32, i32
  }
  func.func @transform_9(%arg0: i32, %arg1: i32, %arg2: i32) -> (i32, i32, i32) {
    %c0_i32 = arith.constant 0 : i32
    %c0_i32_0 = arith.constant 0 : i32
    return %arg0, %c0_i32, %arg1 : i32, i32, i32
  }
}

</mosaic_0001>

<llo_original>
// kernel: tpu_custom_call.1
$region0: #{tpu_custom_call.1}
  #allocation0 [shape = 'u32[]', space=smem, size = 0x4, offset = 0x4, fixed_abs, tag = 'smem constant byte address 0x4 - core index']
  #allocation1 [shape = 'u32[144,128]{1,0:T(1,128)}', space=vmem, size = 0x12000, scoped, tag = 'internal scratch']
  #allocation2 [shape = 'f32[2,512]{1,0:T(2,128)}', space=vmem, size = 0x1000, scoped, tag = 'scratch operand']
  #allocation3 [shape = 'f32[1,512]{1,0:T(1,128)}', space=vmem, size = 0x800, scoped, tag = 'scratch operand']
  #allocation4 [shape = 'f32[1,512]{1,0:T(1,128)}', space=vmem, size = 0x800, scoped, tag = 'scratch operand']
  #allocation5 [shape = 'f32[4,512]{1,0:T(4,128)}', space=vmem, size = 0x2000, scoped, tag = 'scratch operand']
  #allocation6 [shape = 'f32[1]{0:T(128)S(6)}', space=smem, size = 0x200, scoped, tag = 'scoped memory for tpu_custom_call.1']
  %s0 = inlined_call_operand.<no memory space> [shape: f32[1], index: 0, kind: input, shape index: {}]
  %s1 = inlined_call_operand.hbm [shape: f32[2,4,1024], index: 1, kind: input, shape index: {}]
  %s2 = inlined_call_operand.hbm [shape: f32[2,4,1024], index: 2, kind: input, shape index: {}]
  %s3 = inlined_call_operand.vmem [shape: f32[2,4], index: 3, kind: input, shape index: {}]
  %s4 = inlined_call_operand.vmem [shape: f32[2,1], index: 4, kind: input, shape index: {}]
  %s5 = inlined_call_operand.vmem [shape: f32[2,4], index: 5, kind: input, shape index: {}]
  %s6 = inlined_call_operand.vmem [shape: f32[2,1], index: 6, kind: input, shape index: {}]
  %s7 = inlined_call_operand.vmem [shape: f32[4,4], index: 7, kind: input, shape index: {}]
  %s8 = inlined_call_operand.vmem [shape: f32[4,1], index: 8, kind: input, shape index: {}]
  %s9 = inlined_call_operand.hbm [shape: f32[2,4,1024], index: 9, kind: output, shape index: {}]
  %s10 = sld [smem:[#allocation0]]
  $region85: #{tpu_custom_call.1} parent=0
    _
  %s12 = ssub.s32 1, %s10
  %s13 = scalar_select 0, %s12, %s10
  %14 = sst [smem:[#allocation6]] %s0
  $region1: #{tpu_custom_call.1} parent=0
    #allocation7 [shape = 'u8[16384]{0}', space=vmem, size = 0x4000, scoped, tag = 'input window, operand 1']
    #allocation8 [shape = 's32[2]{0}', space=sflag, size = 0x8, scoped, tag = 'scoped memory for tpu_custom_call.1']
    #allocation9 [shape = 's32[2]{0}', space=sflag, size = 0x8, scoped, tag = 'scoped memory for tpu_custom_call.1']
    #allocation10 [shape = 'u8[32768]{0}', space=vmem, size = 0x8000, scoped, tag = 'input window, operand 2']
    #allocation11 [shape = 's32[2]{0}', space=sflag, size = 0x8, scoped, tag = 'scoped memory for tpu_custom_call.1']
    #allocation12 [shape = 'u8[16384]{0}', space=vmem, size = 0x4000, scoped, tag = 'output window, operand 0']
    %15 = vsyncpa [#allocation8], 0
    %s16 = scalar_lea.sflag [#allocation8], 1
    %17 = vsyncpa %s16, 0
    %18 = vsyncpa [#allocation11], 0
    %s19 = scalar_lea.sflag [#allocation11], 1
    %20 = vsyncpa %s19, 0
    %21 = vsyncpa [#allocation9], 0
    %s22 = scalar_lea.sflag [#allocation9], 1
    %23 = vsyncpa %s22, 0
    loop: start=0, step=1, limit=10
    $region2: #{tpu_custom_call.1} parent=1 // loop_pre_header
      _
    $region3: #{tpu_custom_call.1} parent=1 // loop_header
      %s25 = sphi 0, %s29
      %p26 = scmp.ge.s32.totalorder %s25, 10
      %s32 = sphi 0, %s51
      %s33 = sphi 0, %s47
      %s34 = sphi 0, %s43
      %s35 = sphi 0, %s32
      %s36 = sphi 0, %s33
      %s37 = sphi 0, %s34
      %s38 = sphi 0, %s35
      %s39 = sphi 0, %s36
      %s40 = sphi 0, %s37
      %s52 = sphi 0, %s52
      %s54 = sphi 0, %s52
      %s55 = sphi 0, %s54
      %s69 = sphi 0, %s55
      %s77 = sphi 0, %s79
      %s80 = sphi 0, %s77
      %s81 = sphi 0, %s80
      %s97 = sphi 0, %s81
      %s103 = sphi 0, %s105
      %s106 = sphi 0, %s103
      %s107 = sphi 0, %s106
      %s123 = sphi 0, %s107
      %s127 = sphi 0, %s127
      %s129 = sphi 0, %s127
      %s130 = sphi 0, %s129
      %s144 = sphi 0, %s130
      %s148 = sphi 0, %s148
      %s150 = sphi 0, %s148
      %s151 = sphi 0, %s150
      %s165 = sphi 0, %s151
      %s169 = sphi 0, %s169
      %s171 = sphi 0, %s169
      %s172 = sphi 0, %s171
      %s186 = sphi 0, %s172
      %s190 = sphi 0, %s190
      %s192 = sphi 0, %s190
      %s193 = sphi 0, %s192
      %s207 = sphi 0, %s193
      %s211 = sphi 0, %s211
      %s213 = sphi 0, %s211
      %s214 = sphi 0, %s213
      %s228 = sphi 0, %s214
      %s232 = sphi 0, %s232
      %s234 = sphi 0, %s232
      %s235 = sphi 0, %s234
      %s249 = sphi 0, %s235
      %s257 = sphi 0, %s259
      %s260 = sphi 0, %s257
      %s261 = sphi 0, %s260
      %s277 = sphi 0, %s261
    $region4: #{tpu_custom_call.1} parent=1 // loop_header_branch
      %28 = sbr.rel (%p26) target = $region8
    $region5: #{tpu_custom_call.1} parent=1 // loop_body
      %s30 = ssub.s32 %s25, 1
      %s31 = ssub.s32 %s25, 2
      %s41 = sadd.s32 1, %s34
      %p42 = scmp.ge.s32.totalorder %s41, 2
      %s43 = scalar_select %p42, 0, %s41
      %s44 = sadd.s32 1, %s33
      %s45 = scalar_select %p42, %s44, %s33
      %p46 = scmp.ge.s32.totalorder %s45, 2
      %s47 = scalar_select %p46, 0, %s45
      %s48 = sadd.s32 1, %s32
      %s49 = scalar_select %p46, %s48, %s32
      %p50 = scmp.ge.s32.totalorder %s49, 2
      %s51 = scalar_select %p50, 0, %s49
      %s53 = sadd.s32 %s52, 1
      %p56 = scmp.eq.s32.totalorder %s25, 7
      %p57 = scmp.ne.s32.totalorder %s52, %s54
      %p58 = scmp.eq.s32.totalorder %s25, 0
      %p59 = por %p57, %p58
      %p60 = scmp.ne.s32.totalorder %s52, %s54
      %p61 = scmp.eq.s32.totalorder %s30, 7
      %p62 = por %p60, %p61
      %p63 = scmp.ne.s32.totalorder %s54, %s55
      %p64 = scmp.eq.s32.totalorder %s30, 0
      %p65 = por %p63, %p64
      %p66 = scmp.ne.s32.totalorder %s54, %s55
      %p67 = scmp.eq.s32.totalorder %s31, 7
      %p68 = por %p66, %p67
      %p70 = scmp.ne.s32.totalorder %s55, %s69
      %p71 = scmp.eq.s32.totalorder %s31, 0
      %p72 = por %p70, %p71
      %s73 = ssub.s32 %s32, %s51
      %s74 = ssub.s32 %s33, %s47
      %s75 = sor.u32 %s73, %s74
      %p76 = scmp.eq.s32.totalorder %s75, 0
      %s78 = sadd.s32 %s77, 1
      %s79 = scalar_select %p76, %s77, %s78
      %p82 = pneg %p76
      %p83 = scmp.eq.s32.totalorder %s25, 7
      %p84 = por %p82, %p83
      %p85 = scmp.ne.s32.totalorder %s77, %s80
      %p86 = scmp.eq.s32.totalorder %s25, 0
      %p87 = por %p85, %p86
      %p88 = scmp.ne.s32.totalorder %s77, %s80
      %p89 = scmp.eq.s32.totalorder %s30, 7
      %p90 = por %p88, %p89
      %p91 = scmp.ne.s32.totalorder %s80, %s81
      %p92 = scmp.eq.s32.totalorder %s30, 0
      %p93 = por %p91, %p92
      %p94 = scmp.ne.s32.totalorder %s80, %s81
      %p95 = scmp.eq.s32.totalorder %s31, 7
      %p96 = por %p94, %p95
      %p98 = scmp.ne.s32.totalorder %s81, %s97
      %p99 = scmp.eq.s32.totalorder %s31, 0
      %p100 = por %p98, %p99
      %s101 = ssub.s32 %s32, %s51
      %p102 = scmp.eq.s32.totalorder %s101, 0
      %s104 = sadd.s32 %s103, 1
      %s105 = scalar_select %p102, %s103, %s104
      %p108 = pneg %p102
      %p109 = scmp.eq.s32.totalorder %s25, 7
      %p110 = por %p108, %p109
      %p111 = scmp.ne.s32.totalorder %s103, %s106
      %p112 = scmp.eq.s32.totalorder %s25, 0
      %p113 = por %p111, %p112
      %p114 = scmp.ne.s32.totalorder %s103, %s106
      %p115 = scmp.eq.s32.totalorder %s30, 7
      %p116 = por %p114, %p115
      %p117 = scmp.ne.s32.totalorder %s106, %s107
      %p118 = scmp.eq.s32.totalorder %s30, 0
      %p119 = por %p117, %p118
      %p120 = scmp.ne.s32.totalorder %s106, %s107
      %p121 = scmp.eq.s32.totalorder %s31, 7
      %p122 = por %p120, %p121
      %p124 = scmp.ne.s32.totalorder %s107, %s123
      %p125 = scmp.eq.s32.totalorder %s31, 0
      %p126 = por %p124, %p125
      %s128 = sadd.s32 %s127, 1
      %p131 = scmp.eq.s32.totalorder %s25, 7
      %p132 = scmp.ne.s32.totalorder %s127, %s129
      %p133 = scmp.eq.s32.totalorder %s25, 0
      %p134 = por %p132, %p133
      %p135 = scmp.ne.s32.totalorder %s127, %s129
      %p136 = scmp.eq.s32.totalorder %s30, 7
      %p137 = por %p135, %p136
      %p138 = scmp.ne.s32.totalorder %s129, %s130
      %p139 = scmp.eq.s32.totalorder %s30, 0
      %p140 = por %p138, %p139
      %p141 = scmp.ne.s32.totalorder %s129, %s130
      %p142 = scmp.eq.s32.totalorder %s31, 7
      %p143 = por %p141, %p142
      %p145 = scmp.ne.s32.totalorder %s130, %s144
      %p146 = scmp.eq.s32.totalorder %s31, 0
      %p147 = por %p145, %p146
      %s149 = sadd.s32 %s148, 1
      %p152 = scmp.eq.s32.totalorder %s25, 7
      %p153 = scmp.ne.s32.totalorder %s148, %s150
      %p154 = scmp.eq.s32.totalorder %s25, 0
      %p155 = por %p153, %p154
      %p156 = scmp.ne.s32.totalorder %s148, %s150
      %p157 = scmp.eq.s32.totalorder %s30, 7
      %p158 = por %p156, %p157
      %p159 = scmp.ne.s32.totalorder %s150, %s151
      %p160 = scmp.eq.s32.totalorder %s30, 0
      %p161 = por %p159, %p160
      %p162 = scmp.ne.s32.totalorder %s150, %s151
      %p163 = scmp.eq.s32.totalorder %s31, 7
      %p164 = por %p162, %p163
      %p166 = scmp.ne.s32.totalorder %s151, %s165
      %p167 = scmp.eq.s32.totalorder %s31, 0
      %p168 = por %p166, %p167
      %s170 = sadd.s32 %s169, 1
      %p173 = scmp.eq.s32.totalorder %s25, 7
      %p174 = scmp.ne.s32.totalorder %s169, %s171
      %p175 = scmp.eq.s32.totalorder %s25, 0
      %p176 = por %p174, %p175
      %p177 = scmp.ne.s32.totalorder %s169, %s171
      %p178 = scmp.eq.s32.totalorder %s30, 7
      %p179 = por %p177, %p178
      %p180 = scmp.ne.s32.totalorder %s171, %s172
      %p181 = scmp.eq.s32.totalorder %s30, 0
      %p182 = por %p180, %p181
      %p183 = scmp.ne.s32.totalorder %s171, %s172
      %p184 = scmp.eq.s32.totalorder %s31, 7
      %p185 = por %p183, %p184
      %p187 = scmp.ne.s32.totalorder %s172, %s186
      %p188 = scmp.eq.s32.totalorder %s31, 0
      %p189 = por %p187, %p188
      %s191 = sadd.s32 %s190, 1
      %p194 = scmp.eq.s32.totalorder %s25, 7
      %p195 = scmp.ne.s32.totalorder %s190, %s192
      %p196 = scmp.eq.s32.totalorder %s25, 0
      %p197 = por %p195, %p196
      %p198 = scmp.ne.s32.totalorder %s190, %s192
      %p199 = scmp.eq.s32.totalorder %s30, 7
      %p200 = por %p198, %p199
      %p201 = scmp.ne.s32.totalorder %s192, %s193
      %p202 = scmp.eq.s32.totalorder %s30, 0
      %p203 = por %p201, %p202
      %p204 = scmp.ne.s32.totalorder %s192, %s193
      %p205 = scmp.eq.s32.totalorder %s31, 7
      %p206 = por %p204, %p205
      %p208 = scmp.ne.s32.totalorder %s193, %s207
      %p209 = scmp.eq.s32.totalorder %s31, 0
      %p210 = por %p208, %p209
      %s212 = sadd.s32 %s211, 1
      %p215 = scmp.eq.s32.totalorder %s25, 7
      %p216 = scmp.ne.s32.totalorder %s211, %s213
      %p217 = scmp.eq.s32.totalorder %s25, 0
      %p218 = por %p216, %p217
      %p219 = scmp.ne.s32.totalorder %s211, %s213
      %p220 = scmp.eq.s32.totalorder %s30, 7
      %p221 = por %p219, %p220
      %p222 = scmp.ne.s32.totalorder %s213, %s214
      %p223 = scmp.eq.s32.totalorder %s30, 0
      %p224 = por %p222, %p223
      %p225 = scmp.ne.s32.totalorder %s213, %s214
      %p226 = scmp.eq.s32.totalorder %s31, 7
      %p227 = por %p225, %p226
      %p229 = scmp.ne.s32.totalorder %s214, %s228
      %p230 = scmp.eq.s32.totalorder %s31, 0
      %p231 = por %p229, %p230
      %s233 = sadd.s32 %s232, 1
      %p236 = scmp.eq.s32.totalorder %s25, 7
      %p237 = scmp.ne.s32.totalorder %s232, %s234
      %p238 = scmp.eq.s32.totalorder %s25, 0
      %p239 = por %p237, %p238
      %p240 = scmp.ne.s32.totalorder %s232, %s234
      %p241 = scmp.eq.s32.totalorder %s30, 7
      %p242 = por %p240, %p241
      %p243 = scmp.ne.s32.totalorder %s234, %s235
      %p244 = scmp.eq.s32.totalorder %s30, 0
      %p245 = por %p243, %p244
      %p246 = scmp.ne.s32.totalorder %s234, %s235
      %p247 = scmp.eq.s32.totalorder %s31, 7
      %p248 = por %p246, %p247
      %p250 = scmp.ne.s32.totalorder %s235, %s249
      %p251 = scmp.eq.s32.totalorder %s31, 0
      %p252 = por %p250, %p251
      %s253 = ssub.s32 %s32, %s51
      %s254 = ssub.s32 %s33, %s47
      %s255 = sor.u32 %s253, %s254
      %p256 = scmp.eq.s32.totalorder %s255, 0
      %s258 = sadd.s32 %s257, 1
      %s259 = scalar_select %p256, %s257, %s258
      %p262 = pneg %p256
      %p263 = scmp.eq.s32.totalorder %s25, 7
      %p264 = por %p262, %p263
      %p265 = scmp.ne.s32.totalorder %s257, %s260
      %p266 = scmp.eq.s32.totalorder %s25, 0
      %p267 = por %p265, %p266
      %p268 = scmp.ne.s32.totalorder %s257, %s260
      %p269 = scmp.eq.s32.totalorder %s30, 7
      %p270 = por %p268, %p269
      %p271 = scmp.ne.s32.totalorder %s260, %s261
      %p272 = scmp.eq.s32.totalorder %s30, 0
      %p273 = por %p271, %p272
      %p274 = scmp.ne.s32.totalorder %s260, %s261
      %p275 = scmp.eq.s32.totalorder %s31, 7
      %p276 = por %p274, %p275
      %p278 = scmp.ne.s32.totalorder %s261, %s277
      %p279 = scmp.eq.s32.totalorder %s31, 0
      %p280 = por %p278, %p279
      %p281 = scmp.le.s32.totalorder 1, %s25
      %p282 = scmp.lt.s32.totalorder %s25, 9
      %p283 = pnand %p281, %p282
      %p284 = pneg %p283
      // Predicated region
      $region9: #{tpu_custom_call.1} parent=5 // pred_check
        _
      $region10: #{tpu_custom_call.1} parent=5 // pred_check_branch
        %286 = sbr.rel (%p283) target = $region12
      $region11: #{tpu_custom_call.1} parent=5 // pred_region
        %s287 = ssub.s32 %s25, 1
        // Predicated region
        $region13: #{tpu_custom_call.1} parent=11 // pred_check
          %p288 = pneg %p65
        $region14: #{tpu_custom_call.1} parent=11 // pred_check_branch
          %290 = sbr.rel (%p288) target = $region16
        $region15: #{tpu_custom_call.1} parent=11 // pred_region
          _
        $region16: #{tpu_custom_call.1} parent=11 // pred_fallthru
          _
        // Predicated region
        $region17: #{tpu_custom_call.1} parent=11 // pred_check
          %p291 = pneg %p140
        $region18: #{tpu_custom_call.1} parent=11 // pred_check_branch
          %293 = sbr.rel (%p291) target = $region20
        $region19: #{tpu_custom_call.1} parent=11 // pred_region
          _
        $region20: #{tpu_custom_call.1} parent=11 // pred_fallthru
          _
        // Predicated region
        $region21: #{tpu_custom_call.1} parent=11 // pred_check
          %p294 = pneg %p161
        $region22: #{tpu_custom_call.1} parent=11 // pred_check_branch
          %296 = sbr.rel (%p294) target = $region24
        $region23: #{tpu_custom_call.1} parent=11 // pred_region
          _
        $region24: #{tpu_custom_call.1} parent=11 // pred_fallthru
          _
        // Predicated region
        $region25: #{tpu_custom_call.1} parent=11 // pred_check
          %p297 = pneg %p182
        $region26: #{tpu_custom_call.1} parent=11 // pred_check_branch
          %299 = sbr.rel (%p297) target = $region28
        $region27: #{tpu_custom_call.1} parent=11 // pred_region
          _
        $region28: #{tpu_custom_call.1} parent=11 // pred_fallthru
          _
        // Predicated region
        $region29: #{tpu_custom_call.1} parent=11 // pred_check
          %p300 = pneg %p203
        $region30: #{tpu_custom_call.1} parent=11 // pred_check_branch
          %302 = sbr.rel (%p300) target = $region32
        $region31: #{tpu_custom_call.1} parent=11 // pred_region
          _
        $region32: #{tpu_custom_call.1} parent=11 // pred_fallthru
          _
        // Predicated region
        $region33: #{tpu_custom_call.1} parent=11 // pred_check
          %p303 = pneg %p224
        $region34: #{tpu_custom_call.1} parent=11 // pred_check_branch
          %305 = sbr.rel (%p303) target = $region36
        $region35: #{tpu_custom_call.1} parent=11 // pred_region
          _
        $region36: #{tpu_custom_call.1} parent=11 // pred_fallthru
          _
        // Predicated region
        $region37: #{tpu_custom_call.1} parent=11 // pred_check
          %p306 = pneg %p245
        $region38: #{tpu_custom_call.1} parent=11 // pred_check_branch
          %308 = sbr.rel (%p306) target = $region40
        $region39: #{tpu_custom_call.1} parent=11 // pred_region
          _
        $region40: #{tpu_custom_call.1} parent=11 // pred_fallthru
          _
      $region12: #{tpu_custom_call.1} parent=5 // pred_fallthru
        _
      %p309 = scmp.lt.s32.totalorder %s25, 8
      // Predicated region
      $region41: #{tpu_custom_call.1} parent=5 // pred_check
        %p310 = pneg %p309
      $region42: #{tpu_custom_call.1} parent=5 // pred_check_branch
        %312 = sbr.rel (%p310) target = $region44
      $region43: #{tpu_custom_call.1} parent=5 // pred_region
        // Predicated region
        $region45: #{tpu_custom_call.1} parent=43 // pred_check
          %p313 = pneg %p87
        $region46: #{tpu_custom_call.1} parent=43 // pred_check_branch
          %315 = sbr.rel (%p313) target = $region48
        $region47: #{tpu_custom_call.1} parent=43 // pred_region
          %s316 = sand.u32 %s77, 1
          %s317 = scalar_lea.sflag [#allocation8], %s316
          %s318 = sand.u32 %s77, 1
          %s319 = smul.addr %s318, 16
          %s320 = scalar_lea.vmem [#allocation7], %s319
          %s321 = smul.u32 4, %s33
          %s323 = ssub.s32 256, 256
          %324 = vsyncadd %s317, %s323
          %s325 = smul.addr %s32, 8
          %s326 = sadd.s32 %s321, %s325
          %s327 = smul.addr %s326, 64
          %s328 = scalar_lea.hbm %s1, %s327
          %s330 = sshll.u32 %s320, 4
          %s331 = int_to_ptr.vmem [resolvable:$true] %s330
          %333 = dma.hbm_to_vmem [thread:$0]  %s328, 256, %s331, %s317
        $region48: #{tpu_custom_call.1} parent=43 // pred_fallthru
          _
        // Predicated region
        $region49: #{tpu_custom_call.1} parent=43 // pred_check
          %p334 = pneg %p113
        $region50: #{tpu_custom_call.1} parent=43 // pred_check_branch
          %336 = sbr.rel (%p334) target = $region52
        $region51: #{tpu_custom_call.1} parent=43 // pred_region
          %s337 = sand.u32 %s103, 1
          %s338 = scalar_lea.sflag [#allocation11], %s337
          %s339 = sand.u32 %s103, 1
          %s340 = smul.addr %s339, 32
          %s341 = scalar_lea.vmem [#allocation10], %s340
          %s343 = ssub.s32 512, 512
          %344 = vsyncadd %s338, %s343
          %s345 = smul.addr %s32, 8
          %s346 = smul.addr %s345, 64
          %s347 = scalar_lea.hbm %s2, %s346
          %s349 = sshll.u32 %s341, 4
          %s350 = int_to_ptr.vmem [resolvable:$true] %s349
          %352 = dma.hbm_to_vmem [thread:$0]  %s347, 512, %s350, %s338
        $region52: #{tpu_custom_call.1} parent=43 // pred_fallthru
          _
      $region44: #{tpu_custom_call.1} parent=5 // pred_fallthru
        _
      %p353 = scmp.le.s32.totalorder 1, %s25
      %p354 = scmp.lt.s32.totalorder %s25, 9
      %p355 = pnand %p353, %p354
      %p356 = pneg %p355
      // Predicated region
      $region53: #{tpu_custom_call.1} parent=5 // pred_check
        _
      $region54: #{tpu_custom_call.1} parent=5 // pred_check_branch
        %358 = sbr.rel (%p355) target = $region56
      $region55: #{tpu_custom_call.1} parent=5 // pred_region
        %s359 = ssub.s32 %s25, 1
        %s360 = sand.u32 %s80, 1
        %s361 = scalar_lea.sflag [#allocation8], %s360
        %s362 = sand.u32 %s80, 1
        %s363 = smul.addr %s362, 16
        %s364 = scalar_lea.vmem [#allocation7], %s363
        // Predicated region
        $region57: #{tpu_custom_call.1} parent=55 // pred_check
          %p365 = pneg %p93
        $region58: #{tpu_custom_call.1} parent=55 // pred_check_branch
          %367 = sbr.rel (%p365) target = $region60
        $region59: #{tpu_custom_call.1} parent=55 // pred_region
          %368 = dma.done %s361, 256
        $region60: #{tpu_custom_call.1} parent=55 // pred_fallthru
          _
        %s369 = sand.u32 %s106, 1
        %s370 = scalar_lea.sflag [#allocation11], %s369
        %s371 = sand.u32 %s106, 1
        %s372 = smul.addr %s371, 32
        %s373 = scalar_lea.vmem [#allocation10], %s372
        // Predicated region
        $region61: #{tpu_custom_call.1} parent=55 // pred_check
          %p374 = pneg %p119
        $region62: #{tpu_custom_call.1} parent=55 // pred_check_branch
          %376 = sbr.rel (%p374) target = $region64
        $region63: #{tpu_custom_call.1} parent=55 // pred_region
          %377 = dma.done %s370, 512
        $region64: #{tpu_custom_call.1} parent=55 // pred_fallthru
          _
        %p378 = pneg %p65
        %p379 = pneg %p62
        %s380 = sand.u32 %s80, 1
        %s381 = scalar_lea.sflag [#allocation8], %s380
        %s382 = sand.u32 %s80, 1
        %s383 = smul.addr %s382, 16
        %s384 = scalar_lea.vmem [#allocation7], %s383
        %p385 = pneg %p93
        %p386 = pneg %p90
        %s387 = sand.u32 %s106, 1
        %s388 = scalar_lea.sflag [#allocation11], %s387
        %s389 = sand.u32 %s106, 1
        %s390 = smul.addr %s389, 32
        %s391 = scalar_lea.vmem [#allocation10], %s390
        %p392 = pneg %p119
        %p393 = pneg %p116
        %p394 = pneg %p140
        %p395 = pneg %p137
        %p396 = pneg %p161
        %p397 = pneg %p158
        %p398 = pneg %p182
        %p399 = pneg %p179
        %p400 = pneg %p203
        %p401 = pneg %p200
        %p402 = pneg %p224
        %p403 = pneg %p221
        %p404 = pneg %p245
        %p405 = pneg %p242
        %p406 = pneg %p273
        %p407 = pneg %p270
        %s408 = sand.u32 %s260, 1
        %s409 = scalar_lea.sflag [#allocation9], %s408
        %s410 = sand.u32 %s260, 1
        %s411 = smul.addr %s410, 16
        %s412 = scalar_lea.vmem [#allocation12], %s411
        %s413 = smul.u32 4, %s36
        %s414 = smul.u32 4, %s36
        %p416 = scmp.eq.s32.totalorder %s37, 0
        // Predicated region
        $region65: #{tpu_custom_call.1} parent=55 // pred_check
          %p417 = pneg %p416
        $region66: #{tpu_custom_call.1} parent=55 // pred_check_branch
          %419 = sbr.rel (%p417) target = $region68
        $region67: #{tpu_custom_call.1} parent=55 // pred_region
          %v420 = vld [vmem:[%s364] sm:$0xff]
          %v421 = vld [vmem:[%s364 + $0x8] sm:$0xff]
          %v422 = vld [vmem:[%s3] sm:$0x3]
          %v423 = vld [vmem:[%s4] sm:$0x3]
          %425 = vset.pattern.permute.xlu0 0
          %426 = vperm.xlu0 %425, %v423
          %v427 = vpop.permute.xlu0 %426
          %v431 = vcombine.high %v420, %v420
          %v432 = vcombine.high %v421, %v421
          %vm433 = vcmask 31744
          %v435 = vsel %vm433, %v422, 0
          %vm437 = vcmask 1043456
          %v438 = vsel %vm437, %v420, 0
          %v440 = vsel %vm437, %v431, 0
          %v442 = vsel %vm437, %v421, 0
          %v444 = vsel %vm437, %v432, 0
          %446 = vmatprep.subr.mxu0 0.0
          %447 = vmatpush1.msra.mxu0 0.0
          %448 = vmatprep.subr.mxu0 0.0
          %449 = vmatpush1.msra.mxu0 0.0
          %450 = vmatprep.subr.mxu0 0.0
          %451 = vmatpush1.msra.mxu0 0.0
          %452 = vmatprep.subr.mxu0 0.0
          %453 = vmatpush1.msra.mxu0 0.0
          %454 = vmatprep.subr.mxu0 0.0
          %455 = vmatpush1.msra.mxu0 0.0
          %456 = vmatprep.subr.mxu0 0.0
          %457 = vmatpush1.msra.mxu0 0.0
          %458 = vmatprep.subr.mxu0 0.0
          %459 = vmatpush1.msra.mxu0 0.0
          %460 = vmatprep.subr.mxu0 0.0
          %461 = vmatpush1.msra.mxu0 0.0
          %462 = vmatprep.subr.mxu0 0.0
          %463 = vmatpush1.msra.mxu0 0.0
          %464 = vmatprep.subr.mxu0 0.0
          %465 = vmatpush1.msra.mxu0 0.0
          %466 = vmatprep.subr.mxu0 0.0
          %467 = vmatpush1.msra.mxu0 0.0
          %468 = vmatprep.subr.mxu0 0.0
          %469 = vmatpush1.msra.mxu0 0.0
          %470 = vmatprep.subr.mxu0 0.0
          %471 = vmatpush1.msra.mxu0 0.0
          %472 = vmatprep.subr.mxu0 0.0
          %473 = vmatpush1.msra.mxu0 0.0
          %474 = vmatprep.subr.mxu0 0.0
          %475 = vmatpush1.msra.mxu0 0.0
          %476 = vmatprep.subr.mxu0 %v440
          %477 = vmatpush1.msra.mxu0 %v438
          %478 = vmatprep.subr.mxu0 0.0
          %479 = vmatpush2.msra.mxu0 0.0
          %480 = vmatprep.subr.mxu0 0.0
          %481 = vmatpush2.msra.mxu0 0.0
          %482 = vmatprep.subr.mxu0 0.0
          %483 = vmatpush2.msra.mxu0 0.0
          %484 = vmatprep.subr.mxu0 0.0
          %485 = vmatpush2.msra.mxu0 0.0
          %486 = vmatprep.subr.mxu0 0.0
          %487 = vmatpush2.msra.mxu0 0.0
          %488 = vmatprep.subr.mxu0 0.0
          %489 = vmatpush2.msra.mxu0 0.0
          %490 = vmatprep.subr.mxu0 0.0
          %491 = vmatpush2.msra.mxu0 0.0
          %492 = vmatprep.subr.mxu0 0.0
          %493 = vmatpush2.msra.mxu0 0.0
          %494 = vmatprep.subr.mxu0 0.0
          %495 = vmatpush2.msra.mxu0 0.0
          %496 = vmatprep.subr.mxu0 0.0
          %497 = vmatpush2.msra.mxu0 0.0
          %498 = vmatprep.subr.mxu0 0.0
          %499 = vmatpush2.msra.mxu0 0.0
          %500 = vmatprep.subr.mxu0 0.0
          %501 = vmatpush2.msra.mxu0 0.0
          %502 = vmatprep.subr.mxu0 0.0
          %503 = vmatpush2.msra.mxu0 0.0
          %504 = vmatprep.subr.mxu0 0.0
          %505 = vmatpush2.msra.mxu0 0.0
          %506 = vmatprep.subr.mxu0 0.0
          %507 = vmatpush2.msra.mxu0 0.0
          %508 = vmatprep.subr.mxu0 0.0
          %509 = vmatpush2.msra.mxu0 0.0
          %510 = vmatprep.mubr.f32.mxu0 0.0
          %511 = vmatmul.mubr.f32.gmra.mxu0 %v435
          %v512 = vpop.f32.mrf.mxu0
          %v513 = vadd.f32 %v427, %v512
          %v514 = vpop.f32.mrf.mxu0
          %v515 = vadd.f32 %v427, %v514
          %516 = vdwg.mxu0
          %517 = vmatprep.subr.mxu0 0.0
          %518 = vmatpush1.msra.mxu0 0.0
          %519 = vmatprep.subr.mxu0 0.0
          %520 = vmatpush1.msra.mxu0 0.0
          %521 = vmatprep.subr.mxu0 0.0
          %522 = vmatpush1.msra.mxu0 0.0
          %523 = vmatprep.subr.mxu0 0.0
          %524 = vmatpush1.msra.mxu0 0.0
          %525 = vmatprep.subr.mxu0 0.0
          %526 = vmatpush1.msra.mxu0 0.0
          %527 = vmatprep.subr.mxu0 0.0
          %528 = vmatpush1.msra.mxu0 0.0
          %529 = vmatprep.subr.mxu0 0.0
          %530 = vmatpush1.msra.mxu0 0.0
          %531 = vmatprep.subr.mxu0 0.0
          %532 = vmatpush1.msra.mxu0 0.0
          %533 = vmatprep.subr.mxu0 0.0
          %534 = vmatpush1.msra.mxu0 0.0
          %535 = vmatprep.subr.mxu0 0.0
          %536 = vmatpush1.msra.mxu0 0.0
          %537 = vmatprep.subr.mxu0 0.0
          %538 = vmatpush1.msra.mxu0 0.0
          %539 = vmatprep.subr.mxu0 0.0
          %540 = vmatpush1.msra.mxu0 0.0
          %541 = vmatprep.subr.mxu0 0.0
          %542 = vmatpush1.msra.mxu0 0.0
          %543 = vmatprep.subr.mxu0 0.0
          %544 = vmatpush1.msra.mxu0 0.0
          %545 = vmatprep.subr.mxu0 0.0
          %546 = vmatpush1.msra.mxu0 0.0
          %547 = vmatprep.subr.mxu0 %v444
          %548 = vmatpush1.msra.mxu0 %v442
          %549 = vmatprep.subr.mxu0 0.0
          %550 = vmatpush2.msra.mxu0 0.0
          %551 = vmatprep.subr.mxu0 0.0
          %552 = vmatpush2.msra.mxu0 0.0
          %553 = vmatprep.subr.mxu0 0.0
          %554 = vmatpush2.msra.mxu0 0.0
          %555 = vmatprep.subr.mxu0 0.0
          %556 = vmatpush2.msra.mxu0 0.0
          %557 = vmatprep.subr.mxu0 0.0
          %558 = vmatpush2.msra.mxu0 0.0
          %559 = vmatprep.subr.mxu0 0.0
          %560 = vmatpush2.msra.mxu0 0.0
          %561 = vmatprep.subr.mxu0 0.0
          %562 = vmatpush2.msra.mxu0 0.0
          %563 = vmatprep.subr.mxu0 0.0
          %564 = vmatpush2.msra.mxu0 0.0
          %565 = vmatprep.subr.mxu0 0.0
          %566 = vmatpush2.msra.mxu0 0.0
          %567 = vmatprep.subr.mxu0 0.0
          %568 = vmatpush2.msra.mxu0 0.0
          %569 = vmatprep.subr.mxu0 0.0
          %570 = vmatpush2.msra.mxu0 0.0
          %571 = vmatprep.subr.mxu0 0.0
          %572 = vmatpush2.msra.mxu0 0.0
          %573 = vmatprep.subr.mxu0 0.0
          %574 = vmatpush2.msra.mxu0 0.0
          %575 = vmatprep.subr.mxu0 0.0
          %576 = vmatpush2.msra.mxu0 0.0
          %577 = vmatprep.subr.mxu0 0.0
          %578 = vmatpush2.msra.mxu0 0.0
          %579 = vmatprep.subr.mxu0 0.0
          %580 = vmatpush2.msra.mxu0 0.0
          %581 = vmatprep.mubr.f32.mxu0 0.0
          %582 = vmatmul.mubr.f32.gmra.mxu0 %v435
          %v583 = vpop.f32.mrf.mxu0
          %v584 = vadd.f32 %v427, %v583
          %v585 = vpop.f32.mrf.mxu0
          %v586 = vadd.f32 %v427, %v585
          %587 = vdwg.mxu0
          %v592 = vcombine.low %v513, %v515
          %v593 = vcombine.low %v584, %v586
          %v595 = vunpack.c.l.s4 1983009808
          %v596 = vunpack.c.0.s8 %v595
          %v597 = vlaneseq
          %v598 = vshrl.u32 %v597, 7
          %v599 = vsub.s32 %v596, %v598
          %v600 = vrot.slane %v592, %v599
          %v602 = vunpack.c.l.s4 1983009808
          %v603 = vunpack.c.0.s8 %v602
          %v604 = vlaneseq
          %v605 = vshrl.u32 %v604, 7
          %v606 = vsub.s32 %v603, %v605
          %v607 = vrot.slane %v593, %v606
          %v608 = vcombine.low %v600, %v607
          %610 = vst [vmem:[#allocation2] sm:$0xff] %v608
          %v611 = vlaneseq
          %vm612 = vcmp.ge.s32.totalorder %v611, 0
          %vm613 = vcmp.lt.s32.totalorder %v611, 512
          %vm614 = vmand %vm612, %vm613
          %615 = vst.msk [vmem:[#allocation3] sm:$0xf] %vm614, -1e+30
          %616 = vst.msk [vmem:[#allocation4] sm:$0xf] %vm614, 0.0
          %617 = vst [vmem:[#allocation5] sm:$0xff] 0.0
          %618 = vst [vmem:[#allocation5 + $0x8] sm:$0xff] 0.0
        $region68: #{tpu_custom_call.1} parent=55 // pred_fallthru
          _
        %s619 = smul.u32 %s37, 512
        %s620 = sshra.s32 %s619, 7
        %s621 = sand.u32 %s619, 127
        %s622 = smul.addr %s620, 4
        %s623 = scalar_lea.vmem %s373, %s622 [#allocation10]
        %v624 = vld [vmem:[%s623] sm:$0xff]
        %v625 = vld [vmem:[%s623 + $0x8] sm:$0xff]
        %v626 = vld [vmem:[%s5] sm:$0x3]
        %v627 = vld [vmem:[%s6] sm:$0x3]
        %629 = vset.pattern.permute.xlu0 0
        %630 = vperm.xlu0 %629, %v627
        %v631 = vpop.permute.xlu0 %630
        %v635 = vcombine.high %v624, %v624
        %v636 = vcombine.high %v625, %v625
        %vm637 = vcmask 31744
        %v639 = vsel %vm637, %v626, 0
        %vm641 = vcmask 1043456
        %v642 = vsel %vm641, %v624, 0
        %v644 = vsel %vm641, %v635, 0
        %v646 = vsel %vm641, %v625, 0
        %v648 = vsel %vm641, %v636, 0
        %650 = vmatprep.subr.mxu0 0.0
        %651 = vmatpush1.msra.mxu0 0.0
        %652 = vmatprep.subr.mxu0 0.0
        %653 = vmatpush1.msra.mxu0 0.0
        %654 = vmatprep.subr.mxu0 0.0
        %655 = vmatpush1.msra.mxu0 0.0
        %656 = vmatprep.subr.mxu0 0.0
        %657 = vmatpush1.msra.mxu0 0.0
        %658 = vmatprep.subr.mxu0 0.0
        %659 = vmatpush1.msra.mxu0 0.0
        %660 = vmatprep.subr.mxu0 0.0
        %661 = vmatpush1.msra.mxu0 0.0
        %662 = vmatprep.subr.mxu0 0.0
        %663 = vmatpush1.msra.mxu0 0.0
        %664 = vmatprep.subr.mxu0 0.0
        %665 = vmatpush1.msra.mxu0 0.0
        %666 = vmatprep.subr.mxu0 0.0
        %667 = vmatpush1.msra.mxu0 0.0
        %668 = vmatprep.subr.mxu0 0.0
        %669 = vmatpush1.msra.mxu0 0.0
        %670 = vmatprep.subr.mxu0 0.0
        %671 = vmatpush1.msra.mxu0 0.0
        %672 = vmatprep.subr.mxu0 0.0
        %673 = vmatpush1.msra.mxu0 0.0
        %674 = vmatprep.subr.mxu0 0.0
        %675 = vmatpush1.msra.mxu0 0.0
        %676 = vmatprep.subr.mxu0 0.0
        %677 = vmatpush1.msra.mxu0 0.0
        %678 = vmatprep.subr.mxu0 0.0
        %679 = vmatpush1.msra.mxu0 0.0
        %680 = vmatprep.subr.mxu0 %v644
        %681 = vmatpush1.msra.mxu0 %v642
        %682 = vmatprep.subr.mxu0 0.0
        %683 = vmatpush2.msra.mxu0 0.0
        %684 = vmatprep.subr.mxu0 0.0
        %685 = vmatpush2.msra.mxu0 0.0
        %686 = vmatprep.subr.mxu0 0.0
        %687 = vmatpush2.msra.mxu0 0.0
        %688 = vmatprep.subr.mxu0 0.0
        %689 = vmatpush2.msra.mxu0 0.0
        %690 = vmatprep.subr.mxu0 0.0
        %691 = vmatpush2.msra.mxu0 0.0
        %692 = vmatprep.subr.mxu0 0.0
        %693 = vmatpush2.msra.mxu0 0.0
        %694 = vmatprep.subr.mxu0 0.0
        %695 = vmatpush2.msra.mxu0 0.0
        %696 = vmatprep.subr.mxu0 0.0
        %697 = vmatpush2.msra.mxu0 0.0
        %698 = vmatprep.subr.mxu0 0.0
        %699 = vmatpush2.msra.mxu0 0.0
        %700 = vmatprep.subr.mxu0 0.0
        %701 = vmatpush2.msra.mxu0 0.0
        %702 = vmatprep.subr.mxu0 0.0
        %703 = vmatpush2.msra.mxu0 0.0
        %704 = vmatprep.subr.mxu0 0.0
        %705 = vmatpush2.msra.mxu0 0.0
        %706 = vmatprep.subr.mxu0 0.0
        %707 = vmatpush2.msra.mxu0 0.0
        %708 = vmatprep.subr.mxu0 0.0
        %709 = vmatpush2.msra.mxu0 0.0
        %710 = vmatprep.subr.mxu0 0.0
        %711 = vmatpush2.msra.mxu0 0.0
        %712 = vmatprep.subr.mxu0 0.0
        %713 = vmatpush2.msra.mxu0 0.0
        %714 = vmatprep.mubr.f32.mxu0 0.0
        %715 = vmatmul.mubr.f32.gmra.mxu0 %v639
        %v716 = vpop.f32.mrf.mxu0
        %v717 = vadd.f32 %v631, %v716
        %v718 = vpop.f32.mrf.mxu0
        %v719 = vadd.f32 %v631, %v718
        %720 = vdwg.mxu0
        %721 = vmatprep.subr.mxu0 0.0
        %722 = vmatpush1.msra.mxu0 0.0
        %723 = vmatprep.subr.mxu0 0.0
        %724 = vmatpush1.msra.mxu0 0.0
        %725 = vmatprep.subr.mxu0 0.0
        %726 = vmatpush1.msra.mxu0 0.0
        %727 = vmatprep.subr.mxu0 0.0
        %728 = vmatpush1.msra.mxu0 0.0
        %729 = vmatprep.subr.mxu0 0.0
        %730 = vmatpush1.msra.mxu0 0.0
        %731 = vmatprep.subr.mxu0 0.0
        %732 = vmatpush1.msra.mxu0 0.0
        %733 = vmatprep.subr.mxu0 0.0
        %734 = vmatpush1.msra.mxu0 0.0
        %735 = vmatprep.subr.mxu0 0.0
        %736 = vmatpush1.msra.mxu0 0.0
        %737 = vmatprep.subr.mxu0 0.0
        %738 = vmatpush1.msra.mxu0 0.0
        %739 = vmatprep.subr.mxu0 0.0
        %740 = vmatpush1.msra.mxu0 0.0
        %741 = vmatprep.subr.mxu0 0.0
        %742 = vmatpush1.msra.mxu0 0.0
        %743 = vmatprep.subr.mxu0 0.0
        %744 = vmatpush1.msra.mxu0 0.0
        %745 = vmatprep.subr.mxu0 0.0
        %746 = vmatpush1.msra.mxu0 0.0
        %747 = vmatprep.subr.mxu0 0.0
        %748 = vmatpush1.msra.mxu0 0.0
        %749 = vmatprep.subr.mxu0 0.0
        %750 = vmatpush1.msra.mxu0 0.0
        %751 = vmatprep.subr.mxu0 %v648
        %752 = vmatpush1.msra.mxu0 %v646
        %753 = vmatprep.subr.mxu0 0.0
        %754 = vmatpush2.msra.mxu0 0.0
        %755 = vmatprep.subr.mxu0 0.0
        %756 = vmatpush2.msra.mxu0 0.0
        %757 = vmatprep.subr.mxu0 0.0
        %758 = vmatpush2.msra.mxu0 0.0
        %759 = vmatprep.subr.mxu0 0.0
        %760 = vmatpush2.msra.mxu0 0.0
        %761 = vmatprep.subr.mxu0 0.0
        %762 = vmatpush2.msra.mxu0 0.0
        %763 = vmatprep.subr.mxu0 0.0
        %764 = vmatpush2.msra.mxu0 0.0
        %765 = vmatprep.subr.mxu0 0.0
        %766 = vmatpush2.msra.mxu0 0.0
        %767 = vmatprep.subr.mxu0 0.0
        %768 = vmatpush2.msra.mxu0 0.0
        %769 = vmatprep.subr.mxu0 0.0
        %770 = vmatpush2.msra.mxu0 0.0
        %771 = vmatprep.subr.mxu0 0.0
        %772 = vmatpush2.msra.mxu0 0.0
        %773 = vmatprep.subr.mxu0 0.0
        %774 = vmatpush2.msra.mxu0 0.0
        %775 = vmatprep.subr.mxu0 0.0
        %776 = vmatpush2.msra.mxu0 0.0
        %777 = vmatprep.subr.mxu0 0.0
        %778 = vmatpush2.msra.mxu0 0.0
        %779 = vmatprep.subr.mxu0 0.0
        %780 = vmatpush2.msra.mxu0 0.0
        %781 = vmatprep.subr.mxu0 0.0
        %782 = vmatpush2.msra.mxu0 0.0
        %783 = vmatprep.subr.mxu0 0.0
        %784 = vmatpush2.msra.mxu0 0.0
        %785 = vmatprep.mubr.f32.mxu0 0.0
        %786 = vmatmul.mubr.f32.gmra.mxu0 %v639
        %v787 = vpop.f32.mrf.mxu0
        %v788 = vadd.f32 %v631, %v787
        %v789 = vpop.f32.mrf.mxu0
        %v790 = vadd.f32 %v631, %v789
        %791 = vdwg.mxu0
        %v792 = vld [vmem:[%s7] sm:$0xf]
        %v793 = vld [vmem:[%s8] sm:$0xf]
        %795 = vset.pattern.permute.xlu0 0
        %796 = vperm.xlu0 %795, %v793
        %v797 = vpop.permute.xlu0 %796
        %v800 = vsel %vm637, %v792, 0
        %802 = vmatprep.subr.mxu0 0.0
        %803 = vmatpush1.msra.mxu0 0.0
        %804 = vmatprep.subr.mxu0 0.0
        %805 = vmatpush1.msra.mxu0 0.0
        %806 = vmatprep.subr.mxu0 0.0
        %807 = vmatpush1.msra.mxu0 0.0
        %808 = vmatprep.subr.mxu0 0.0
        %809 = vmatpush1.msra.mxu0 0.0
        %810 = vmatprep.subr.mxu0 0.0
        %811 = vmatpush1.msra.mxu0 0.0
        %812 = vmatprep.subr.mxu0 0.0
        %813 = vmatpush1.msra.mxu0 0.0
        %814 = vmatprep.subr.mxu0 0.0
        %815 = vmatpush1.msra.mxu0 0.0
        %816 = vmatprep.subr.mxu0 0.0
        %817 = vmatpush1.msra.mxu0 0.0
        %818 = vmatprep.subr.mxu0 0.0
        %819 = vmatpush1.msra.mxu0 0.0
        %820 = vmatprep.subr.mxu0 0.0
        %821 = vmatpush1.msra.mxu0 0.0
        %822 = vmatprep.subr.mxu0 0.0
        %823 = vmatpush1.msra.mxu0 0.0
        %824 = vmatprep.subr.mxu0 0.0
        %825 = vmatpush1.msra.mxu0 0.0
        %826 = vmatprep.subr.mxu0 0.0
        %827 = vmatpush1.msra.mxu0 0.0
        %828 = vmatprep.subr.mxu0 0.0
        %829 = vmatpush1.msra.mxu0 0.0
        %830 = vmatprep.subr.mxu0 0.0
        %831 = vmatpush1.msra.mxu0 0.0
        %832 = vmatprep.subr.mxu0 %v644
        %833 = vmatpush1.msra.mxu0 %v642
        %834 = vmatprep.subr.mxu0 0.0
        %835 = vmatpush2.msra.mxu0 0.0
        %836 = vmatprep.subr.mxu0 0.0
        %837 = vmatpush2.msra.mxu0 0.0
        %838 = vmatprep.subr.mxu0 0.0
        %839 = vmatpush2.msra.mxu0 0.0
        %840 = vmatprep.subr.mxu0 0.0
        %841 = vmatpush2.msra.mxu0 0.0
        %842 = vmatprep.subr.mxu0 0.0
        %843 = vmatpush2.msra.mxu0 0.0
        %844 = vmatprep.subr.mxu0 0.0
        %845 = vmatpush2.msra.mxu0 0.0
        %846 = vmatprep.subr.mxu0 0.0
        %847 = vmatpush2.msra.mxu0 0.0
        %848 = vmatprep.subr.mxu0 0.0
        %849 = vmatpush2.msra.mxu0 0.0
        %850 = vmatprep.subr.mxu0 0.0
        %851 = vmatpush2.msra.mxu0 0.0
        %852 = vmatprep.subr.mxu0 0.0
        %853 = vmatpush2.msra.mxu0 0.0
        %854 = vmatprep.subr.mxu0 0.0
        %855 = vmatpush2.msra.mxu0 0.0
        %856 = vmatprep.subr.mxu0 0.0
        %857 = vmatpush2.msra.mxu0 0.0
        %858 = vmatprep.subr.mxu0 0.0
        %859 = vmatpush2.msra.mxu0 0.0
        %860 = vmatprep.subr.mxu0 0.0
        %861 = vmatpush2.msra.mxu0 0.0
        %862 = vmatprep.subr.mxu0 0.0
        %863 = vmatpush2.msra.mxu0 0.0
        %864 = vmatprep.subr.mxu0 0.0
        %865 = vmatpush2.msra.mxu0 0.0
        %866 = vmatprep.mubr.f32.mxu0 0.0
        %867 = vmatmul.mubr.f32.gmra.mxu0 %v800
        %v868 = vpop.f32.mrf.mxu0
        %v869 = vadd.f32 %v797, %v868
        %v870 = vpop.f32.mrf.mxu0
        %v871 = vadd.f32 %v797, %v870
        %872 = vdwg.mxu0
        %873 = vmatprep.subr.mxu0 0.0
        %874 = vmatpush1.msra.mxu0 0.0
        %875 = vmatprep.subr.mxu0 0.0
        %876 = vmatpush1.msra.mxu0 0.0
        %877 = vmatprep.subr.mxu0 0.0
        %878 = vmatpush1.msra.mxu0 0.0
        %879 = vmatprep.subr.mxu0 0.0
        %880 = vmatpush1.msra.mxu0 0.0
        %881 = vmatprep.subr.mxu0 0.0
        %882 = vmatpush1.msra.mxu0 0.0
        %883 = vmatprep.subr.mxu0 0.0
        %884 = vmatpush1.msra.mxu0 0.0
        %885 = vmatprep.subr.mxu0 0.0
        %886 = vmatpush1.msra.mxu0 0.0
        %887 = vmatprep.subr.mxu0 0.0
        %888 = vmatpush1.msra.mxu0 0.0
        %889 = vmatprep.subr.mxu0 0.0
        %890 = vmatpush1.msra.mxu0 0.0
        %891 = vmatprep.subr.mxu0 0.0
        %892 = vmatpush1.msra.mxu0 0.0
        %893 = vmatprep.subr.mxu0 0.0
        %894 = vmatpush1.msra.mxu0 0.0
        %895 = vmatprep.subr.mxu0 0.0
        %896 = vmatpush1.msra.mxu0 0.0
        %897 = vmatprep.subr.mxu0 0.0
        %898 = vmatpush1.msra.mxu0 0.0
        %899 = vmatprep.subr.mxu0 0.0
        %900 = vmatpush1.msra.mxu0 0.0
        %901 = vmatprep.subr.mxu0 0.0
        %902 = vmatpush1.msra.mxu0 0.0
        %903 = vmatprep.subr.mxu0 %v648
        %904 = vmatpush1.msra.mxu0 %v646
        %905 = vmatprep.subr.mxu0 0.0
        %906 = vmatpush2.msra.mxu0 0.0
        %907 = vmatprep.subr.mxu0 0.0
        %908 = vmatpush2.msra.mxu0 0.0
        %909 = vmatprep.subr.mxu0 0.0
        %910 = vmatpush2.msra.mxu0 0.0
        %911 = vmatprep.subr.mxu0 0.0
        %912 = vmatpush2.msra.mxu0 0.0
        %913 = vmatprep.subr.mxu0 0.0
        %914 = vmatpush2.msra.mxu0 0.0
        %915 = vmatprep.subr.mxu0 0.0
        %916 = vmatpush2.msra.mxu0 0.0
        %917 = vmatprep.subr.mxu0 0.0
        %918 = vmatpush2.msra.mxu0 0.0
        %919 = vmatprep.subr.mxu0 0.0
        %920 = vmatpush2.msra.mxu0 0.0
        %921 = vmatprep.subr.mxu0 0.0
        %922 = vmatpush2.msra.mxu0 0.0
        %923 = vmatprep.subr.mxu0 0.0
        %924 = vmatpush2.msra.mxu0 0.0
        %925 = vmatprep.subr.mxu0 0.0
        %926 = vmatpush2.msra.mxu0 0.0
        %927 = vmatprep.subr.mxu0 0.0
        %928 = vmatpush2.msra.mxu0 0.0
        %929 = vmatprep.subr.mxu0 0.0
        %930 = vmatpush2.msra.mxu0 0.0
        %931 = vmatprep.subr.mxu0 0.0
        %932 = vmatpush2.msra.mxu0 0.0
        %933 = vmatprep.subr.mxu0 0.0
        %934 = vmatpush2.msra.mxu0 0.0
        %935 = vmatprep.subr.mxu0 0.0
        %936 = vmatpush2.msra.mxu0 0.0
        %937 = vmatprep.mubr.f32.mxu0 0.0
        %938 = vmatmul.mubr.f32.gmra.mxu0 %v800
        %v939 = vpop.f32.mrf.mxu0
        %v940 = vadd.f32 %v797, %v939
        %v941 = vpop.f32.mrf.mxu0
        %v942 = vadd.f32 %v797, %v941
        %943 = vdwg.mxu0
        %v944 = vpack.c.bf16 %v717, %v717
        %v945 = vpack.c.bf16 %v719, %v719
        %v946 = vpack.c.bf16 %v788, %v788
        %v947 = vpack.c.bf16 %v790, %v790
        %v948 = vld [vmem:[#allocation2] sm:$0xff]
        %v950 = vcombine.high %v948, %v948
        %v952 = vunpack.c.l.s4 1983009808
        %v953 = vunpack.c.0.s8 %v952
        %v954 = vlaneseq
        %v955 = vshrl.u32 %v954, 7
        %v956 = vsub.s32 %v953, %v955
        %v957 = vrot.slane %v948, %v956
        %v959 = vunpack.c.l.s4 1983009808
        %v960 = vunpack.c.0.s8 %v959
        %v961 = vlaneseq
        %v962 = vshrl.u32 %v961, 7
        %v963 = vsub.s32 %v960, %v962
        %v964 = vrot.slane %v950, %v963
        %v965 = vcombine.high %v957, %v957
        %v966 = vcombine.high %v964, %v964
        %v971 = vpack.c.bf16 %v957, %v957
        %v972 = vpack.c.bf16 %v965, %v965
        %v973 = vpack.c.bf16 %v964, %v964
        %v974 = vpack.c.bf16 %v966, %v966
        %v975 = vlaneseq
        %v976 = vshrl.u32 %v975, 7
        %v977 = vadd.s32 %v976, 8
        %v978 = vadd.s32 %v976, 16
        %v979 = vadd.s32 %v976, 24
        %v980 = vadd.s32 %v976, 32
        %v981 = vadd.s32 %v976, 40
        %v982 = vadd.s32 %v976, 48
        %v983 = vadd.s32 %v976, 56
        %v984 = vadd.s32 %v976, 64
        %v985 = vadd.s32 %v976, 72
        %v986 = vadd.s32 %v976, 80
        %v987 = vadd.s32 %v976, 88
        %v988 = vadd.s32 %v976, 96
        %v989 = vadd.s32 %v976, 104
        %v990 = vadd.s32 %v976, 112
        %v991 = vadd.s32 %v976, 120
        %v992 = vadd.s32 %v976, 128
        %v993 = vadd.s32 %v976, 136
        %v994 = vadd.s32 %v976, 144
        %v995 = vadd.s32 %v976, 152
        %v996 = vadd.s32 %v976, 160
        %v997 = vadd.s32 %v976, 168
        %v998 = vadd.s32 %v976, 176
        %v999 = vadd.s32 %v976, 184
        %v1000 = vadd.s32 %v976, 192
        %v1001 = vadd.s32 %v976, 200
        %v1002 = vadd.s32 %v976, 208
        %v1003 = vadd.s32 %v976, 216
        %v1004 = vadd.s32 %v976, 224
        %v1005 = vadd.s32 %v976, 232
        %v1006 = vadd.s32 %v976, 240
        %v1007 = vadd.s32 %v976, 248
        %v1008 = vadd.s32 %v976, 256
        %v1009 = vadd.s32 %v976, 264
        %v1010 = vadd.s32 %v976, 272
        %v1011 = vadd.s32 %v976, 280
        %v1012 = vadd.s32 %v976, 288
        %v1013 = vadd.s32 %v976, 296
        %v1014 = vadd.s32 %v976, 304
        %v1015 = vadd.s32 %v976, 312
        %v1016 = vadd.s32 %v976, 320
        %v1017 = vadd.s32 %v976, 328
        %v1018 = vadd.s32 %v976, 336
        %v1019 = vadd.s32 %v976, 344
        %v1020 = vadd.s32 %v976, 352
        %v1021 = vadd.s32 %v976, 360
        %v1022 = vadd.s32 %v976, 368
        %v1023 = vadd.s32 %v976, 376
        %v1024 = vadd.s32 %v976, 384
        %v1025 = vadd.s32 %v976, 392
        %v1026 = vadd.s32 %v976, 400
        %v1027 = vadd.s32 %v976, 408
        %v1028 = vadd.s32 %v976, 416
        %v1029 = vadd.s32 %v976, 424
        %v1030 = vadd.s32 %v976, 432
        %v1031 = vadd.s32 %v976, 440
        %v1032 = vadd.s32 %v976, 448
        %v1033 = vadd.s32 %v976, 456
        %v1034 = vadd.s32 %v976, 464
        %v1035 = vadd.s32 %v976, 472
        %v1036 = vadd.s32 %v976, 480
        %v1037 = vadd.s32 %v976, 488
        %v1038 = vadd.s32 %v976, 496
        %v1039 = vadd.s32 %v976, 504
        %v1040 = vstv %s619
        %v1041 = vadd.s32 %v1040, %v976
        %v1042 = vadd.s32 %v1040, %v977
        %v1043 = vadd.s32 %v1040, %v978
        %v1044 = vadd.s32 %v1040, %v979
        %v1045 = vadd.s32 %v1040, %v980
        %v1046 = vadd.s32 %v1040, %v981
        %v1047 = vadd.s32 %v1040, %v982
        %v1048 = vadd.s32 %v1040, %v983
        %v1049 = vadd.s32 %v1040, %v984
        %v1050 = vadd.s32 %v1040, %v985
        %v1051 = vadd.s32 %v1040, %v986
        %v1052 = vadd.s32 %v1040, %v987
        %v1053 = vadd.s32 %v1040, %v988
        %v1054 = vadd.s32 %v1040, %v989
        %v1055 = vadd.s32 %v1040, %v990
        %v1056 = vadd.s32 %v1040, %v991
        %v1057 = vadd.s32 %v1040, %v992
        %v1058 = vadd.s32 %v1040, %v993
        %v1059 = vadd.s32 %v1040, %v994
        %v1060 = vadd.s32 %v1040, %v995
        %v1061 = vadd.s32 %v1040, %v996
        %v1062 = vadd.s32 %v1040, %v997
        %v1063 = vadd.s32 %v1040, %v998
        %v1064 = vadd.s32 %v1040, %v999
        %v1065 = vadd.s32 %v1040, %v1000
        %v1066 = vadd.s32 %v1040, %v1001
        %v1067 = vadd.s32 %v1040, %v1002
        %v1068 = vadd.s32 %v1040, %v1003
        %v1069 = vadd.s32 %v1040, %v1004
        %v1070 = vadd.s32 %v1040, %v1005
        %v1071 = vadd.s32 %v1040, %v1006
        %v1072 = vadd.s32 %v1040, %v1007
        %v1073 = vadd.s32 %v1040, %v1008
        %v1074 = vadd.s32 %v1040, %v1009
        %v1075 = vadd.s32 %v1040, %v1010
        %v1076 = vadd.s32 %v1040, %v1011
        %v1077 = vadd.s32 %v1040, %v1012
        %v1078 = vadd.s32 %v1040, %v1013
        %v1079 = vadd.s32 %v1040, %v1014
        %v1080 = vadd.s32 %v1040, %v1015
        %v1081 = vadd.s32 %v1040, %v1016
        %v1082 = vadd.s32 %v1040, %v1017
        %v1083 = vadd.s32 %v1040, %v1018
        %v1084 = vadd.s32 %v1040, %v1019
        %v1085 = vadd.s32 %v1040, %v1020
        %v1086 = vadd.s32 %v1040, %v1021
        %v1087 = vadd.s32 %v1040, %v1022
        %v1088 = vadd.s32 %v1040, %v1023
        %v1089 = vadd.s32 %v1040, %v1024
        %v1090 = vadd.s32 %v1040, %v1025
        %v1091 = vadd.s32 %v1040, %v1026
        %v1092 = vadd.s32 %v1040, %v1027
        %v1093 = vadd.s32 %v1040, %v1028
        %v1094 = vadd.s32 %v1040, %v1029
        %v1095 = vadd.s32 %v1040, %v1030
        %v1096 = vadd.s32 %v1040, %v1031
        %v1097 = vadd.s32 %v1040, %v1032
        %v1098 = vadd.s32 %v1040, %v1033
        %v1099 = vadd.s32 %v1040, %v1034
        %v1100 = vadd.s32 %v1040, %v1035
        %v1101 = vadd.s32 %v1040, %v1036
        %v1102 = vadd.s32 %v1040, %v1037
        %v1103 = vadd.s32 %v1040, %v1038
        %v1104 = vadd.s32 %v1040, %v1039
        %vm1105 = vcmp.lt.s32.totalorder %v1041, 576
        %vm1106 = vcmp.lt.s32.totalorder %v1042, 576
        %vm1107 = vcmp.lt.s32.totalorder %v1043, 576
        %vm1108 = vcmp.lt.s32.totalorder %v1044, 576
        %vm1109 = vcmp.lt.s32.totalorder %v1045, 576
        %vm1110 = vcmp.lt.s32.totalorder %v1046, 576
        %vm1111 = vcmp.lt.s32.totalorder %v1047, 576
        %vm1112 = vcmp.lt.s32.totalorder %v1048, 576
        %vm1113 = vcmp.lt.s32.totalorder %v1049, 576
        %vm1114 = vcmp.lt.s32.totalorder %v1050, 576
        %vm1115 = vcmp.lt.s32.totalorder %v1051, 576
        %vm1116 = vcmp.lt.s32.totalorder %v1052, 576
        %vm1117 = vcmp.lt.s32.totalorder %v1053, 576
        %vm1118 = vcmp.lt.s32.totalorder %v1054, 576
        %vm1119 = vcmp.lt.s32.totalorder %v1055, 576
        %vm1120 = vcmp.lt.s32.totalorder %v1056, 576
        %vm1121 = vcmp.lt.s32.totalorder %v1057, 576
        %vm1122 = vcmp.lt.s32.totalorder %v1058, 576
        %vm1123 = vcmp.lt.s32.totalorder %v1059, 576
        %vm1124 = vcmp.lt.s32.totalorder %v1060, 576
        %vm1125 = vcmp.lt.s32.totalorder %v1061, 576
        %vm1126 = vcmp.lt.s32.totalorder %v1062, 576
        %vm1127 = vcmp.lt.s32.totalorder %v1063, 576
        %vm1128 = vcmp.lt.s32.totalorder %v1064, 576
        %vm1129 = vcmp.lt.s32.totalorder %v1065, 576
        %vm1130 = vcmp.lt.s32.totalorder %v1066, 576
        %vm1131 = vcmp.lt.s32.totalorder %v1067, 576
        %vm1132 = vcmp.lt.s32.totalorder %v1068, 576
        %vm1133 = vcmp.lt.s32.totalorder %v1069, 576
        %vm1134 = vcmp.lt.s32.totalorder %v1070, 576
        %vm1135 = vcmp.lt.s32.totalorder %v1071, 576
        %vm1136 = vcmp.lt.s32.totalorder %v1072, 576
        %vm1137 = vcmp.lt.s32.totalorder %v1073, 576
        %vm1138 = vcmp.lt.s32.totalorder %v1074, 576
        %vm1139 = vcmp.lt.s32.totalorder %v1075, 576
        %vm1140 = vcmp.lt.s32.totalorder %v1076, 576
        %vm1141 = vcmp.lt.s32.totalorder %v1077, 576
        %vm1142 = vcmp.lt.s32.totalorder %v1078, 576
        %vm1143 = vcmp.lt.s32.totalorder %v1079, 576
        %vm1144 = vcmp.lt.s32.totalorder %v1080, 576
        %vm1145 = vcmp.lt.s32.totalorder %v1081, 576
        %vm1146 = vcmp.lt.s32.totalorder %v1082, 576
        %vm1147 = vcmp.lt.s32.totalorder %v1083, 576
        %vm1148 = vcmp.lt.s32.totalorder %v1084, 576
        %vm1149 = vcmp.lt.s32.totalorder %v1085, 576
        %vm1150 = vcmp.lt.s32.totalorder %v1086, 576
        %vm1151 = vcmp.lt.s32.totalorder %v1087, 576
        %vm1152 = vcmp.lt.s32.totalorder %v1088, 576
        %vm1153 = vcmp.lt.s32.totalorder %v1089, 576
        %vm1154 = vcmp.lt.s32.totalorder %v1090, 576
        %vm1155 = vcmp.lt.s32.totalorder %v1091, 576
        %vm1156 = vcmp.lt.s32.totalorder %v1092, 576
        %vm1157 = vcmp.lt.s32.totalorder %v1093, 576
        %vm1158 = vcmp.lt.s32.totalorder %v1094, 576
        %vm1159 = vcmp.lt.s32.totalorder %v1095, 576
        %vm1160 = vcmp.lt.s32.totalorder %v1096, 576
        %vm1161 = vcmp.lt.s32.totalorder %v1097, 576
        %vm1162 = vcmp.lt.s32.totalorder %v1098, 576
        %vm1163 = vcmp.lt.s32.totalorder %v1099, 576
        %vm1164 = vcmp.lt.s32.totalorder %v1100, 576
        %vm1165 = vcmp.lt.s32.totalorder %v1101, 576
        %vm1166 = vcmp.lt.s32.totalorder %v1102, 576
        %vm1167 = vcmp.lt.s32.totalorder %v1103, 576
        %vm1168 = vcmp.lt.s32.totalorder %v1104, 576
        %v1169 = vsel %vm1105, 0.0, -1e+30
        %v1170 = vsel %vm1106, 0.0, -1e+30
        %v1171 = vsel %vm1107, 0.0, -1e+30
        %v1172 = vsel %vm1108, 0.0, -1e+30
        %v1173 = vsel %vm1109, 0.0, -1e+30
        %v1174 = vsel %vm1110, 0.0, -1e+30
        %v1175 = vsel %vm1111, 0.0, -1e+30
        %v1176 = vsel %vm1112, 0.0, -1e+30
        %v1177 = vsel %vm1113, 0.0, -1e+30
        %v1178 = vsel %vm1114, 0.0, -1e+30
        %v1179 = vsel %vm1115, 0.0, -1e+30
        %v1180 = vsel %vm1116, 0.0, -1e+30
        %v1181 = vsel %vm1117, 0.0, -1e+30
        %v1182 = vsel %vm1118, 0.0, -1e+30
        %v1183 = vsel %vm1119, 0.0, -1e+30
        %v1184 = vsel %vm1120, 0.0, -1e+30
        %v1185 = vsel %vm1121, 0.0, -1e+30
        %v1186 = vsel %vm1122, 0.0, -1e+30
        %v1187 = vsel %vm1123, 0.0, -1e+30
        %v1188 = vsel %vm1124, 0.0, -1e+30
        %v1189 = vsel %vm1125, 0.0, -1e+30
        %v1190 = vsel %vm1126, 0.0, -1e+30
        %v1191 = vsel %vm1127, 0.0, -1e+30
        %v1192 = vsel %vm1128, 0.0, -1e+30
        %v1193 = vsel %vm1129, 0.0, -1e+30
        %v1194 = vsel %vm1130, 0.0, -1e+30
        %v1195 = vsel %vm1131, 0.0, -1e+30
        %v1196 = vsel %vm1132, 0.0, -1e+30
        %v1197 = vsel %vm1133, 0.0, -1e+30
        %v1198 = vsel %vm1134, 0.0, -1e+30
        %v1199 = vsel %vm1135, 0.0, -1e+30
        %v1200 = vsel %vm1136, 0.0, -1e+30
        %v1201 = vsel %vm1137, 0.0, -1e+30
        %v1202 = vsel %vm1138, 0.0, -1e+30
        %v1203 = vsel %vm1139, 0.0, -1e+30
        %v1204 = vsel %vm1140, 0.0, -1e+30
        %v1205 = vsel %vm1141, 0.0, -1e+30
        %v1206 = vsel %vm1142, 0.0, -1e+30
        %v1207 = vsel %vm1143, 0.0, -1e+30
        %v1208 = vsel %vm1144, 0.0, -1e+30
        %v1209 = vsel %vm1145, 0.0, -1e+30
        %v1210 = vsel %vm1146, 0.0, -1e+30
        %v1211 = vsel %vm1147, 0.0, -1e+30
        %v1212 = vsel %vm1148, 0.0, -1e+30
        %v1213 = vsel %vm1149, 0.0, -1e+30
        %v1214 = vsel %vm1150, 0.0, -1e+30
        %v1215 = vsel %vm1151, 0.0, -1e+30
        %v1216 = vsel %vm1152, 0.0, -1e+30
        %v1217 = vsel %vm1153, 0.0, -1e+30
        %v1218 = vsel %vm1154, 0.0, -1e+30
        %v1219 = vsel %vm1155, 0.0, -1e+30
        %v1220 = vsel %vm1156, 0.0, -1e+30
        %v1221 = vsel %vm1157, 0.0, -1e+30
        %v1222 = vsel %vm1158, 0.0, -1e+30
        %v1223 = vsel %vm1159, 0.0, -1e+30
        %v1224 = vsel %vm1160, 0.0, -1e+30
        %v1225 = vsel %vm1161, 0.0, -1e+30
        %v1226 = vsel %vm1162, 0.0, -1e+30
        %v1227 = vsel %vm1163, 0.0, -1e+30
        %v1228 = vsel %vm1164, 0.0, -1e+30
        %v1229 = vsel %vm1165, 0.0, -1e+30
        %v1230 = vsel %vm1166, 0.0, -1e+30
        %v1231 = vsel %vm1167, 0.0, -1e+30
        %v1232 = vsel %vm1168, 0.0, -1e+30
        %1233 = vxpose.xlu0.c.b16.start [1/8] %v944, 128
        %1234 = vxpose.xlu0.c.b16.cont [2/8] 0, 128
        %1235 = vxpose.xlu0.c.b16.cont [3/8] 0, 128
        %1236 = vxpose.xlu0.c.b16.cont [4/8] 0, 128
        %1237 = vxpose.xlu0.c.b16.cont [5/8] 0, 128
        %1238 = vxpose.xlu0.c.b16.cont [6/8] 0, 128
        %1239 = vxpose.xlu0.c.b16.cont [7/8] 0, 128
        %1240 = vxpose.xlu0.c.b16.end [8/8] 0, 128
        %v1241 = vpop.trf.xlu0
        %v1242 = vpop.trf.xlu0
        %v1243 = vpop.trf.xlu0
        %v1244 = vpop.trf.xlu0
        %v1245 = vpop.trf.xlu0
        %v1246 = vpop.trf.xlu0
        %v1247 = vpop.trf.xlu0
        %v1248 = vpop.trf.xlu0
        %1249 = vxpose.xlu0.c.b16.start [1/8] %v945, 128
        %1250 = vxpose.xlu0.c.b16.cont [2/8] 0, 128
        %1251 = vxpose.xlu0.c.b16.cont [3/8] 0, 128
        %1252 = vxpose.xlu0.c.b16.cont [4/8] 0, 128
        %1253 = vxpose.xlu0.c.b16.cont [5/8] 0, 128
        %1254 = vxpose.xlu0.c.b16.cont [6/8] 0, 128
        %1255 = vxpose.xlu0.c.b16.cont [7/8] 0, 128
        %1256 = vxpose.xlu0.c.b16.end [8/8] 0, 128
        %v1257 = vpop.trf.xlu0
        %v1258 = vpop.trf.xlu0
        %v1259 = vpop.trf.xlu0
        %v1260 = vpop.trf.xlu0
        %v1261 = vpop.trf.xlu0
        %v1262 = vpop.trf.xlu0
        %v1263 = vpop.trf.xlu0
        %v1264 = vpop.trf.xlu0
        %1265 = vxpose.xlu0.c.b16.start [1/8] %v946, 128
        %1266 = vxpose.xlu0.c.b16.cont [2/8] 0, 128
        %1267 = vxpose.xlu0.c.b16.cont [3/8] 0, 128
        %1268 = vxpose.xlu0.c.b16.cont [4/8] 0, 128
        %1269 = vxpose.xlu0.c.b16.cont [5/8] 0, 128
        %1270 = vxpose.xlu0.c.b16.cont [6/8] 0, 128
        %1271 = vxpose.xlu0.c.b16.cont [7/8] 0, 128
        %1272 = vxpose.xlu0.c.b16.end [8/8] 0, 128
        %v1273 = vpop.trf.xlu0
        %v1274 = vpop.trf.xlu0
        %v1275 = vpop.trf.xlu0
        %v1276 = vpop.trf.xlu0
        %v1277 = vpop.trf.xlu0
        %v1278 = vpop.trf.xlu0
        %v1279 = vpop.trf.xlu0
        %v1280 = vpop.trf.xlu0
        %1281 = vxpose.xlu0.c.b16.start [1/8] %v947, 128
        %1282 = vxpose.xlu0.c.b16.cont [2/8] 0, 128
        %1283 = vxpose.xlu0.c.b16.cont [3/8] 0, 128
        %1284 = vxpose.xlu0.c.b16.cont [4/8] 0, 128
        %1285 = vxpose.xlu0.c.b16.cont [5/8] 0, 128
        %1286 = vxpose.xlu0.c.b16.cont [6/8] 0, 128
        %1287 = vxpose.xlu0.c.b16.cont [7/8] 0, 128
        %1288 = vxpose.xlu0.c.b16.end [8/8] 0, 128
        %v1289 = vpop.trf.xlu0
        %v1290 = vpop.trf.xlu0
        %v1291 = vpop.trf.xlu0
        %v1292 = vpop.trf.xlu0
        %v1293 = vpop.trf.xlu0
        %v1294 = vpop.trf.xlu0
        %v1295 = vpop.trf.xlu0
        %v1296 = vpop.trf.xlu0
        %vm1297 = vcmask 15360
        %v1299 = vsel %vm1297, %v1241, 0
        %v1302 = vsel %vm1297, %v1242, 0
        %v1305 = vsel %vm1297, %v1243, 0
        %v1308 = vsel %vm1297, %v1244, 0
        %v1311 = vsel %vm1297, %v1245, 0
        %v1314 = vsel %vm1297, %v1246, 0
        %v1317 = vsel %vm1297, %v1247, 0
        %v1320 = vsel %vm1297, %v1248, 0
        %v1323 = vsel %vm1297, %v1257, 0
        %v1326 = vsel %vm1297, %v1258, 0
        %v1329 = vsel %vm1297, %v1259, 0
        %v1332 = vsel %vm1297, %v1260, 0
        %v1335 = vsel %vm1297, %v1261, 0
        %v1338 = vsel %vm1297, %v1262, 0
        %v1341 = vsel %vm1297, %v1263, 0
        %v1344 = vsel %vm1297, %v1264, 0
        %v1347 = vsel %vm1297, %v1273, 0
        %v1350 = vsel %vm1297, %v1274, 0
        %v1353 = vsel %vm1297, %v1275, 0
        %v1356 = vsel %vm1297, %v1276, 0
        %v1359 = vsel %vm1297, %v1277, 0
        %v1362 = vsel %vm1297, %v1278, 0
        %v1365 = vsel %vm1297, %v1279, 0
        %v1368 = vsel %vm1297, %v1280, 0
        %v1371 = vsel %vm1297, %v1289, 0
        %v1374 = vsel %vm1297, %v1290, 0
        %v1377 = vsel %vm1297, %v1291, 0
        %v1380 = vsel %vm1297, %v1292, 0
        %v1383 = vsel %vm1297, %v1293, 0
        %v1386 = vsel %vm1297, %v1294, 0
        %v1389 = vsel %vm1297, %v1295, 0
        %v1392 = vsel %vm1297, %v1296, 0
        %vm1394 = vcmask 1040384
        %v1396 = vsel %vm1394, %v971, 0
        %v1399 = vsel %vm1394, %v972, 0
        %v1402 = vsel %vm1394, %v973, 0
        %v1405 = vsel %vm1394, %v974, 0
        %1407 = vmatprep.subr.bf16.mxu0 0
        %1408 = vmatpush1.bf16.msra.mxu0 0
        %1409 = vmatprep.subr.bf16.mxu0 0
        %1410 = vmatpush1.bf16.msra.mxu0 0
        %1411 = vmatprep.subr.bf16.mxu0 0
        %1412 = vmatpush1.bf16.msra.mxu0 0
        %1413 = vmatprep.subr.bf16.mxu0 0
        %1414 = vmatpush1.bf16.msra.mxu0 0
        %1415 = vmatprep.subr.bf16.mxu0 0
        %1416 = vmatpush1.bf16.msra.mxu0 0
        %1417 = vmatprep.subr.bf16.mxu0 0
        %1418 = vmatpush1.bf16.msra.mxu0 0
        %1419 = vmatprep.subr.bf16.mxu0 0
        %1420 = vmatpush1.bf16.msra.mxu0 0
        %1421 = vmatprep.subr.bf16.mxu0 %v1399
        %1422 = vmatpush1.bf16.msra.mxu0 %v1396
        %1423 = vmatprep.subr.bf16.mxu0 0
        %1424 = vmatpush2.bf16.msra.mxu0 0
        %1425 = vmatprep.subr.bf16.mxu0 0
        %1426 = vmatpush2.bf16.msra.mxu0 0
        %1427 = vmatprep.subr.bf16.mxu0 0
        %1428 = vmatpush2.bf16.msra.mxu0 0
        %1429 = vmatprep.subr.bf16.mxu0 0
        %1430 = vmatpush2.bf16.msra.mxu0 0
        %1431 = vmatprep.subr.bf16.mxu0 0
        %1432 = vmatpush2.bf16.msra.mxu0 0
        %1433 = vmatprep.subr.bf16.mxu0 0
        %1434 = vmatpush2.bf16.msra.mxu0 0
        %1435 = vmatprep.subr.bf16.mxu0 0
        %1436 = vmatpush2.bf16.msra.mxu0 0
        %1437 = vmatprep.subr.bf16.mxu0 0
        %1438 = vmatpush2.bf16.msra.mxu0 0
        %1439 = vmatprep.mubr.bf16.mxu0 0
        %1440 = vmatmul.mubr.bf16.gmra.mxu0 %v1299
        %v1441 = vpop.f32.mrf.mxu0
        %v1442 = vadd.f32 %v1169, %v1441
        %v1443 = vpop.f32.mrf.mxu0
        %v1444 = vadd.f32 %v1169, %v1443
        %v1445 = vpop.f32.mrf.mxu0
        %v1446 = vadd.f32 %v1170, %v1445
        %v1447 = vpop.f32.mrf.mxu0
        %v1448 = vadd.f32 %v1170, %v1447
        %1449 = vmatprep.mubr.bf16.mxu0 0
        %1450 = vmatmul.mubr.bf16.gmra.mxu0 %v1302
        %v1451 = vpop.f32.mrf.mxu0
        %v1452 = vadd.f32 %v1171, %v1451
        %v1453 = vpop.f32.mrf.mxu0
        %v1454 = vadd.f32 %v1171, %v1453
        %v1455 = vpop.f32.mrf.mxu0
        %v1456 = vadd.f32 %v1172, %v1455
        %v1457 = vpop.f32.mrf.mxu0
        %v1458 = vadd.f32 %v1172, %v1457
        %1459 = vmatprep.mubr.bf16.mxu0 0
        %1460 = vmatmul.mubr.bf16.gmra.mxu0 %v1305
        %v1461 = vpop.f32.mrf.mxu0
        %v1462 = vadd.f32 %v1173, %v1461
        %v1463 = vpop.f32.mrf.mxu0
        %v1464 = vadd.f32 %v1173, %v1463
        %v1465 = vpop.f32.mrf.mxu0
        %v1466 = vadd.f32 %v1174, %v1465
        %v1467 = vpop.f32.mrf.mxu0
        %v1468 = vadd.f32 %v1174, %v1467
        %1469 = vmatprep.mubr.bf16.mxu0 0
        %1470 = vmatmul.mubr.bf16.gmra.mxu0 %v1308
        %v1471 = vpop.f32.mrf.mxu0
        %v1472 = vadd.f32 %v1175, %v1471
        %v1473 = vpop.f32.mrf.mxu0
        %v1474 = vadd.f32 %v1175, %v1473
        %v1475 = vpop.f32.mrf.mxu0
        %v1476 = vadd.f32 %v1176, %v1475
        %v1477 = vpop.f32.mrf.mxu0
        %v1478 = vadd.f32 %v1176, %v1477
        %1479 = vmatprep.mubr.bf16.mxu0 0
        %1480 = vmatmul.mubr.bf16.gmra.mxu0 %v1311
        %v1481 = vpop.f32.mrf.mxu0
        %v1482 = vadd.f32 %v1177, %v1481
        %v1483 = vpop.f32.mrf.mxu0
        %v1484 = vadd.f32 %v1177, %v1483
        %v1485 = vpop.f32.mrf.mxu0
        %v1486 = vadd.f32 %v1178, %v1485
        %v1487 = vpop.f32.mrf.mxu0
        %v1488 = vadd.f32 %v1178, %v1487
        %1489 = vmatprep.mubr.bf16.mxu0 0
        %1490 = vmatmul.mubr.bf16.gmra.mxu0 %v1314
        %v1491 = vpop.f32.mrf.mxu0
        %v1492 = vadd.f32 %v1179, %v1491
        %v1493 = vpop.f32.mrf.mxu0
        %v1494 = vadd.f32 %v1179, %v1493
        %v1495 = vpop.f32.mrf.mxu0
        %v1496 = vadd.f32 %v1180, %v1495
        %v1497 = vpop.f32.mrf.mxu0
        %v1498 = vadd.f32 %v1180, %v1497
        %1499 = vmatprep.mubr.bf16.mxu0 0
        %1500 = vmatmul.mubr.bf16.gmra.mxu0 %v1317
        %v1501 = vpop.f32.mrf.mxu0
        %v1502 = vadd.f32 %v1181, %v1501
        %v1503 = vpop.f32.mrf.mxu0
        %v1504 = vadd.f32 %v1181, %v1503
        %v1505 = vpop.f32.mrf.mxu0
        %v1506 = vadd.f32 %v1182, %v1505
        %v1507 = vpop.f32.mrf.mxu0
        %v1508 = vadd.f32 %v1182, %v1507
        %1509 = vmatprep.mubr.bf16.mxu0 0
        %1510 = vmatmul.mubr.bf16.gmra.mxu0 %v1320
        %v1511 = vpop.f32.mrf.mxu0
        %v1512 = vadd.f32 %v1183, %v1511
        %v1513 = vpop.f32.mrf.mxu0
        %v1514 = vadd.f32 %v1183, %v1513
        %v1515 = vpop.f32.mrf.mxu0
        %v1516 = vadd.f32 %v1184, %v1515
        %v1517 = vpop.f32.mrf.mxu0
        %v1518 = vadd.f32 %v1184, %v1517
        %1519 = vmatprep.mubr.bf16.mxu0 0
        %1520 = vmatmul.mubr.bf16.gmra.mxu0 %v1323
        %v1521 = vpop.f32.mrf.mxu0
        %v1522 = vadd.f32 %v1185, %v1521
        %v1523 = vpop.f32.mrf.mxu0
        %v1524 = vadd.f32 %v1185, %v1523
        %v1525 = vpop.f32.mrf.mxu0
        %v1526 = vadd.f32 %v1186, %v1525
        %v1527 = vpop.f32.mrf.mxu0
        %v1528 = vadd.f32 %v1186, %v1527
        %1529 = vmatprep.mubr.bf16.mxu0 0
        %1530 = vmatmul.mubr.bf16.gmra.mxu0 %v1326
        %v1531 = vpop.f32.mrf.mxu0
        %v1532 = vadd.f32 %v1187, %v1531
        %v1533 = vpop.f32.mrf.mxu0
        %v1534 = vadd.f32 %v1187, %v1533
        %v1535 = vpop.f32.mrf.mxu0
        %v1536 = vadd.f32 %v1188, %v1535
        %v1537 = vpop.f32.mrf.mxu0
        %v1538 = vadd.f32 %v1188, %v1537
        %1539 = vmatprep.mubr.bf16.mxu0 0
        %1540 = vmatmul.mubr.bf16.gmra.mxu0 %v1329
        %v1541 = vpop.f32.mrf.mxu0
        %v1542 = vadd.f32 %v1189, %v1541
        %v1543 = vpop.f32.mrf.mxu0
        %v1544 = vadd.f32 %v1189, %v1543
        %v1545 = vpop.f32.mrf.mxu0
        %v1546 = vadd.f32 %v1190, %v1545
        %v1547 = vpop.f32.mrf.mxu0
        %v1548 = vadd.f32 %v1190, %v1547
        %1549 = vmatprep.mubr.bf16.mxu0 0
        %1550 = vmatmul.mubr.bf16.gmra.mxu0 %v1332
        %v1551 = vpop.f32.mrf.mxu0
        %v1552 = vadd.f32 %v1191, %v1551
        %v1553 = vpop.f32.mrf.mxu0
        %v1554 = vadd.f32 %v1191, %v1553
        %v1555 = vpop.f32.mrf.mxu0
        %v1556 = vadd.f32 %v1192, %v1555
        %v1557 = vpop.f32.mrf.mxu0
        %v1558 = vadd.f32 %v1192, %v1557
        %1559 = vmatprep.mubr.bf16.mxu0 0
        %1560 = vmatmul.mubr.bf16.gmra.mxu0 %v1335
        %v1561 = vpop.f32.mrf.mxu0
        %v1562 = vadd.f32 %v1193, %v1561
        %v1563 = vpop.f32.mrf.mxu0
        %v1564 = vadd.f32 %v1193, %v1563
        %v1565 = vpop.f32.mrf.mxu0
        %v1566 = vadd.f32 %v1194, %v1565
        %v1567 = vpop.f32.mrf.mxu0
        %v1568 = vadd.f32 %v1194, %v1567
        %1569 = vmatprep.mubr.bf16.mxu0 0
        %1570 = vmatmul.mubr.bf16.gmra.mxu0 %v1338
        %v1571 = vpop.f32.mrf.mxu0
        %v1572 = vadd.f32 %v1195, %v1571
        %v1573 = vpop.f32.mrf.mxu0
        %v1574 = vadd.f32 %v1195, %v1573
        %v1575 = vpop.f32.mrf.mxu0
        %v1576 = vadd.f32 %v1196, %v1575
        %v1577 = vpop.f32.mrf.mxu0
        %v1578 = vadd.f32 %v1196, %v1577
        %1579 = vmatprep.mubr.bf16.mxu0 0
        %1580 = vmatmul.mubr.bf16.gmra.mxu0 %v1341
        %v1581 = vpop.f32.mrf.mxu0
        %v1582 = vadd.f32 %v1197, %v1581
        %v1583 = vpop.f32.mrf.mxu0
        %v1584 = vadd.f32 %v1197, %v1583
        %v1585 = vpop.f32.mrf.mxu0
        %v1586 = vadd.f32 %v1198, %v1585
        %v1587 = vpop.f32.mrf.mxu0
        %v1588 = vadd.f32 %v1198, %v1587
        %1589 = vmatprep.mubr.bf16.mxu0 0
        %1590 = vmatmul.mubr.bf16.gmra.mxu0 %v1344
        %v1591 = vpop.f32.mrf.mxu0
        %v1592 = vadd.f32 %v1199, %v1591
        %v1593 = vpop.f32.mrf.mxu0
        %v1594 = vadd.f32 %v1199, %v1593
        %v1595 = vpop.f32.mrf.mxu0
        %v1596 = vadd.f32 %v1200, %v1595
        %v1597 = vpop.f32.mrf.mxu0
        %v1598 = vadd.f32 %v1200, %v1597
        %1599 = vmatprep.mubr.bf16.mxu0 0
        %1600 = vmatmul.mubr.bf16.gmra.mxu0 %v1347
        %v1601 = vpop.f32.mrf.mxu0
        %v1602 = vadd.f32 %v1201, %v1601
        %v1603 = vpop.f32.mrf.mxu0
        %v1604 = vadd.f32 %v1201, %v1603
        %v1605 = vpop.f32.mrf.mxu0
        %v1606 = vadd.f32 %v1202, %v1605
        %v1607 = vpop.f32.mrf.mxu0
        %v1608 = vadd.f32 %v1202, %v1607
        %1609 = vmatprep.mubr.bf16.mxu0 0
        %1610 = vmatmul.mubr.bf16.gmra.mxu0 %v1350
        %v1611 = vpop.f32.mrf.mxu0
        %v1612 = vadd.f32 %v1203, %v1611
        %v1613 = vpop.f32.mrf.mxu0
        %v1614 = vadd.f32 %v1203, %v1613
        %v1615 = vpop.f32.mrf.mxu0
        %v1616 = vadd.f32 %v1204, %v1615
        %v1617 = vpop.f32.mrf.mxu0
        %v1618 = vadd.f32 %v1204, %v1617
        %1619 = vmatprep.mubr.bf16.mxu0 0
        %1620 = vmatmul.mubr.bf16.gmra.mxu0 %v1353
        %v1621 = vpop.f32.mrf.mxu0
        %v1622 = vadd.f32 %v1205, %v1621
        %v1623 = vpop.f32.mrf.mxu0
        %v1624 = vadd.f32 %v1205, %v1623
        %v1625 = vpop.f32.mrf.mxu0
        %v1626 = vadd.f32 %v1206, %v1625
        %v1627 = vpop.f32.mrf.mxu0
        %v1628 = vadd.f32 %v1206, %v1627
        %1629 = vmatprep.mubr.bf16.mxu0 0
        %1630 = vmatmul.mubr.bf16.gmra.mxu0 %v1356
        %v1631 = vpop.f32.mrf.mxu0
        %v1632 = vadd.f32 %v1207, %v1631
        %v1633 = vpop.f32.mrf.mxu0
        %v1634 = vadd.f32 %v1207, %v1633
        %v1635 = vpop.f32.mrf.mxu0
        %v1636 = vadd.f32 %v1208, %v1635
        %v1637 = vpop.f32.mrf.mxu0
        %v1638 = vadd.f32 %v1208, %v1637
        %1639 = vmatprep.mubr.bf16.mxu0 0
        %1640 = vmatmul.mubr.bf16.gmra.mxu0 %v1359
        %v1641 = vpop.f32.mrf.mxu0
        %v1642 = vadd.f32 %v1209, %v1641
        %v1643 = vpop.f32.mrf.mxu0
        %v1644 = vadd.f32 %v1209, %v1643
        %v1645 = vpop.f32.mrf.mxu0
        %v1646 = vadd.f32 %v1210, %v1645
        %v1647 = vpop.f32.mrf.mxu0
        %v1648 = vadd.f32 %v1210, %v1647
        %1649 = vmatprep.mubr.bf16.mxu0 0
        %1650 = vmatmul.mubr.bf16.gmra.mxu0 %v1362
        %v1651 = vpop.f32.mrf.mxu0
        %v1652 = vadd.f32 %v1211, %v1651
        %v1653 = vpop.f32.mrf.mxu0
        %v1654 = vadd.f32 %v1211, %v1653
        %v1655 = vpop.f32.mrf.mxu0
        %v1656 = vadd.f32 %v1212, %v1655
        %v1657 = vpop.f32.mrf.mxu0
        %v1658 = vadd.f32 %v1212, %v1657
        %1659 = vmatprep.mubr.bf16.mxu0 0
        %1660 = vmatmul.mubr.bf16.gmra.mxu0 %v1365
        %v1661 = vpop.f32.mrf.mxu0
        %v1662 = vadd.f32 %v1213, %v1661
        %v1663 = vpop.f32.mrf.mxu0
        %v1664 = vadd.f32 %v1213, %v1663
        %v1665 = vpop.f32.mrf.mxu0
        %v1666 = vadd.f32 %v1214, %v1665
        %v1667 = vpop.f32.mrf.mxu0
        %v1668 = vadd.f32 %v1214, %v1667
        %1669 = vmatprep.mubr.bf16.mxu0 0
        %1670 = vmatmul.mubr.bf16.gmra.mxu0 %v1368
        %v1671 = vpop.f32.mrf.mxu0
        %v1672 = vadd.f32 %v1215, %v1671
        %v1673 = vpop.f32.mrf.mxu0
        %v1674 = vadd.f32 %v1215, %v1673
        %v1675 = vpop.f32.mrf.mxu0
        %v1676 = vadd.f32 %v1216, %v1675
        %v1677 = vpop.f32.mrf.mxu0
        %v1678 = vadd.f32 %v1216, %v1677
        %1679 = vmatprep.mubr.bf16.mxu0 0
        %1680 = vmatmul.mubr.bf16.gmra.mxu0 %v1371
        %v1681 = vpop.f32.mrf.mxu0
        %v1682 = vadd.f32 %v1217, %v1681
        %v1683 = vpop.f32.mrf.mxu0
        %v1684 = vadd.f32 %v1217, %v1683
        %v1685 = vpop.f32.mrf.mxu0
        %v1686 = vadd.f32 %v1218, %v1685
        %v1687 = vpop.f32.mrf.mxu0
        %v1688 = vadd.f32 %v1218, %v1687
        %1689 = vmatprep.mubr.bf16.mxu0 0
        %1690 = vmatmul.mubr.bf16.gmra.mxu0 %v1374
        %v1691 = vpop.f32.mrf.mxu0
        %v1692 = vadd.f32 %v1219, %v1691
        %v1693 = vpop.f32.mrf.mxu0
        %v1694 = vadd.f32 %v1219, %v1693
        %v1695 = vpop.f32.mrf.mxu0
        %v1696 = vadd.f32 %v1220, %v1695
        %v1697 = vpop.f32.mrf.mxu0
        %v1698 = vadd.f32 %v1220, %v1697
        %1699 = vmatprep.mubr.bf16.mxu0 0
        %1700 = vmatmul.mubr.bf16.gmra.mxu0 %v1377
        %v1701 = vpop.f32.mrf.mxu0
        %v1702 = vadd.f32 %v1221, %v1701
        %v1703 = vpop.f32.mrf.mxu0
        %v1704 = vadd.f32 %v1221, %v1703
        %v1705 = vpop.f32.mrf.mxu0
        %v1706 = vadd.f32 %v1222, %v1705
        %v1707 = vpop.f32.mrf.mxu0
        %v1708 = vadd.f32 %v1222, %v1707
        %1709 = vmatprep.mubr.bf16.mxu0 0
        %1710 = vmatmul.mubr.bf16.gmra.mxu0 %v1380
        %v1711 = vpop.f32.mrf.mxu0
        %v1712 = vadd.f32 %v1223, %v1711
        %v1713 = vpop.f32.mrf.mxu0
        %v1714 = vadd.f32 %v1223, %v1713
        %v1715 = vpop.f32.mrf.mxu0
        %v1716 = vadd.f32 %v1224, %v1715
        %v1717 = vpop.f32.mrf.mxu0
        %v1718 = vadd.f32 %v1224, %v1717
        %1719 = vmatprep.mubr.bf16.mxu0 0
        %1720 = vmatmul.mubr.bf16.gmra.mxu0 %v1383
        %v1721 = vpop.f32.mrf.mxu0
        %v1722 = vadd.f32 %v1225, %v1721
        %v1723 = vpop.f32.mrf.mxu0
        %v1724 = vadd.f32 %v1225, %v1723
        %v1725 = vpop.f32.mrf.mxu0
        %v1726 = vadd.f32 %v1226, %v1725
        %v1727 = vpop.f32.mrf.mxu0
        %v1728 = vadd.f32 %v1226, %v1727
        %1729 = vmatprep.mubr.bf16.mxu0 0
        %1730 = vmatmul.mubr.bf16.gmra.mxu0 %v1386
        %v1731 = vpop.f32.mrf.mxu0
        %v1732 = vadd.f32 %v1227, %v1731
        %v1733 = vpop.f32.mrf.mxu0
        %v1734 = vadd.f32 %v1227, %v1733
        %v1735 = vpop.f32.mrf.mxu0
        %v1736 = vadd.f32 %v1228, %v1735
        %v1737 = vpop.f32.mrf.mxu0
        %v1738 = vadd.f32 %v1228, %v1737
        %1739 = vmatprep.mubr.bf16.mxu0 0
        %1740 = vmatmul.mubr.bf16.gmra.mxu0 %v1389
        %v1741 = vpop.f32.mrf.mxu0
        %v1742 = vadd.f32 %v1229, %v1741
        %v1743 = vpop.f32.mrf.mxu0
        %v1744 = vadd.f32 %v1229, %v1743
        %v1745 = vpop.f32.mrf.mxu0
        %v1746 = vadd.f32 %v1230, %v1745
        %v1747 = vpop.f32.mrf.mxu0
        %v1748 = vadd.f32 %v1230, %v1747
        %1749 = vmatprep.mubr.bf16.mxu0 0
        %1750 = vmatmul.mubr.bf16.gmra.mxu0 %v1392
        %v1751 = vpop.f32.mrf.mxu0
        %v1752 = vadd.f32 %v1231, %v1751
        %v1753 = vpop.f32.mrf.mxu0
        %v1754 = vadd.f32 %v1231, %v1753
        %v1755 = vpop.f32.mrf.mxu0
        %v1756 = vadd.f32 %v1232, %v1755
        %v1757 = vpop.f32.mrf.mxu0
        %v1758 = vadd.f32 %v1232, %v1757
        %1759 = vdwg.mxu0
        %1760 = vmatprep.subr.bf16.mxu0 0
        %1761 = vmatpush1.bf16.msra.mxu0 0
        %1762 = vmatprep.subr.bf16.mxu0 0
        %1763 = vmatpush1.bf16.msra.mxu0 0
        %1764 = vmatprep.subr.bf16.mxu0 0
        %1765 = vmatpush1.bf16.msra.mxu0 0
        %1766 = vmatprep.subr.bf16.mxu0 0
        %1767 = vmatpush1.bf16.msra.mxu0 0
        %1768 = vmatprep.subr.bf16.mxu0 0
        %1769 = vmatpush1.bf16.msra.mxu0 0
        %1770 = vmatprep.subr.bf16.mxu0 0
        %1771 = vmatpush1.bf16.msra.mxu0 0
        %1772 = vmatprep.subr.bf16.mxu0 0
        %1773 = vmatpush1.bf16.msra.mxu0 0
        %1774 = vmatprep.subr.bf16.mxu0 %v1405
        %1775 = vmatpush1.bf16.msra.mxu0 %v1402
        %1776 = vmatprep.subr.bf16.mxu0 0
        %1777 = vmatpush2.bf16.msra.mxu0 0
        %1778 = vmatprep.subr.bf16.mxu0 0
        %1779 = vmatpush2.bf16.msra.mxu0 0
        %1780 = vmatprep.subr.bf16.mxu0 0
        %1781 = vmatpush2.bf16.msra.mxu0 0
        %1782 = vmatprep.subr.bf16.mxu0 0
        %1783 = vmatpush2.bf16.msra.mxu0 0
        %1784 = vmatprep.subr.bf16.mxu0 0
        %1785 = vmatpush2.bf16.msra.mxu0 0
        %1786 = vmatprep.subr.bf16.mxu0 0
        %1787 = vmatpush2.bf16.msra.mxu0 0
        %1788 = vmatprep.subr.bf16.mxu0 0
        %1789 = vmatpush2.bf16.msra.mxu0 0
        %1790 = vmatprep.subr.bf16.mxu0 0
        %1791 = vmatpush2.bf16.msra.mxu0 0
        %1792 = vmatprep.mubr.bf16.mxu0 0
        %1793 = vmatmul.mubr.bf16.gmra.mxu0 %v1299
        %v1794 = vpop.f32.mrf.mxu0
        %v1795 = vadd.f32 %v1169, %v1794
        %v1796 = vpop.f32.mrf.mxu0
        %v1797 = vadd.f32 %v1169, %v1796
        %v1798 = vpop.f32.mrf.mxu0
        %v1799 = vadd.f32 %v1170, %v1798
        %v1800 = vpop.f32.mrf.mxu0
        %v1801 = vadd.f32 %v1170, %v1800
        %1802 = vmatprep.mubr.bf16.mxu0 0
        %1803 = vmatmul.mubr.bf16.gmra.mxu0 %v1302
        %v1804 = vpop.f32.mrf.mxu0
        %v1805 = vadd.f32 %v1171, %v1804
        %v1806 = vpop.f32.mrf.mxu0
        %v1807 = vadd.f32 %v1171, %v1806
        %v1808 = vpop.f32.mrf.mxu0
        %v1809 = vadd.f32 %v1172, %v1808
        %v1810 = vpop.f32.mrf.mxu0
        %v1811 = vadd.f32 %v1172, %v1810
        %1812 = vmatprep.mubr.bf16.mxu0 0
        %1813 = vmatmul.mubr.bf16.gmra.mxu0 %v1305
        %v1814 = vpop.f32.mrf.mxu0
        %v1815 = vadd.f32 %v1173, %v1814
        %v1816 = vpop.f32.mrf.mxu0
        %v1817 = vadd.f32 %v1173, %v1816
        %v1818 = vpop.f32.mrf.mxu0
        %v1819 = vadd.f32 %v1174, %v1818
        %v1820 = vpop.f32.mrf.mxu0
        %v1821 = vadd.f32 %v1174, %v1820
        %1822 = vmatprep.mubr.bf16.mxu0 0
        %1823 = vmatmul.mubr.bf16.gmra.mxu0 %v1308
        %v1824 = vpop.f32.mrf.mxu0
        %v1825 = vadd.f32 %v1175, %v1824
        %v1826 = vpop.f32.mrf.mxu0
        %v1827 = vadd.f32 %v1175, %v1826
        %v1828 = vpop.f32.mrf.mxu0
        %v1829 = vadd.f32 %v1176, %v1828
        %v1830 = vpop.f32.mrf.mxu0
        %v1831 = vadd.f32 %v1176, %v1830
        %1832 = vmatprep.mubr.bf16.mxu0 0
        %1833 = vmatmul.mubr.bf16.gmra.mxu0 %v1311
        %v1834 = vpop.f32.mrf.mxu0
        %v1835 = vadd.f32 %v1177, %v1834
        %v1836 = vpop.f32.mrf.mxu0
        %v1837 = vadd.f32 %v1177, %v1836
        %v1838 = vpop.f32.mrf.mxu0
        %v1839 = vadd.f32 %v1178, %v1838
        %v1840 = vpop.f32.mrf.mxu0
        %v1841 = vadd.f32 %v1178, %v1840
        %1842 = vmatprep.mubr.bf16.mxu0 0
        %1843 = vmatmul.mubr.bf16.gmra.mxu0 %v1314
        %v1844 = vpop.f32.mrf.mxu0
        %v1845 = vadd.f32 %v1179, %v1844
        %v1846 = vpop.f32.mrf.mxu0
        %v1847 = vadd.f32 %v1179, %v1846
        %v1848 = vpop.f32.mrf.mxu0
        %v1849 = vadd.f32 %v1180, %v1848
        %v1850 = vpop.f32.mrf.mxu0
        %v1851 = vadd.f32 %v1180, %v1850
        %1852 = vmatprep.mubr.bf16.mxu0 0
        %1853 = vmatmul.mubr.bf16.gmra.mxu0 %v1317
        %v1854 = vpop.f32.mrf.mxu0
        %v1855 = vadd.f32 %v1181, %v1854
        %v1856 = vpop.f32.mrf.mxu0
        %v1857 = vadd.f32 %v1181, %v1856
        %v1858 = vpop.f32.mrf.mxu0
        %v1859 = vadd.f32 %v1182, %v1858
        %v1860 = vpop.f32.mrf.mxu0
        %v1861 = vadd.f32 %v1182, %v1860
        %1862 = vmatprep.mubr.bf16.mxu0 0
        %1863 = vmatmul.mubr.bf16.gmra.mxu0 %v1320
        %v1864 = vpop.f32.mrf.mxu0
        %v1865 = vadd.f32 %v1183, %v1864
        %v1866 = vpop.f32.mrf.mxu0
        %v1867 = vadd.f32 %v1183, %v1866
        %v1868 = vpop.f32.mrf.mxu0
        %v1869 = vadd.f32 %v1184, %v1868
        %v1870 = vpop.f32.mrf.mxu0
        %v1871 = vadd.f32 %v1184, %v1870
        %1872 = vmatprep.mubr.bf16.mxu0 0
        %1873 = vmatmul.mubr.bf16.gmra.mxu0 %v1323
        %v1874 = vpop.f32.mrf.mxu0
        %v1875 = vadd.f32 %v1185, %v1874
        %v1876 = vpop.f32.mrf.mxu0
        %v1877 = vadd.f32 %v1185, %v1876
        %v1878 = vpop.f32.mrf.mxu0
        %v1879 = vadd.f32 %v1186, %v1878
        %v1880 = vpop.f32.mrf.mxu0
        %v1881 = vadd.f32 %v1186, %v1880
        %1882 = vmatprep.mubr.bf16.mxu0 0
        %1883 = vmatmul.mubr.bf16.gmra.mxu0 %v1326
        %v1884 = vpop.f32.mrf.mxu0
        %v1885 = vadd.f32 %v1187, %v1884
        %v1886 = vpop.f32.mrf.mxu0
        %v1887 = vadd.f32 %v1187, %v1886
        %v1888 = vpop.f32.mrf.mxu0
        %v1889 = vadd.f32 %v1188, %v1888
        %v1890 = vpop.f32.mrf.mxu0
        %v1891 = vadd.f32 %v1188, %v1890
        %1892 = vmatprep.mubr.bf16.mxu0 0
        %1893 = vmatmul.mubr.bf16.gmra.mxu0 %v1329
        %v1894 = vpop.f32.mrf.mxu0
        %v1895 = vadd.f32 %v1189, %v1894
        %v1896 = vpop.f32.mrf.mxu0
        %v1897 = vadd.f32 %v1189, %v1896
        %v1898 = vpop.f32.mrf.mxu0
        %v1899 = vadd.f32 %v1190, %v1898
        %v1900 = vpop.f32.mrf.mxu0
        %v1901 = vadd.f32 %v1190, %v1900
        %1902 = vmatprep.mubr.bf16.mxu0 0
        %1903 = vmatmul.mubr.bf16.gmra.mxu0 %v1332
        %v1904 = vpop.f32.mrf.mxu0
        %v1905 = vadd.f32 %v1191, %v1904
        %v1906 = vpop.f32.mrf.mxu0
        %v1907 = vadd.f32 %v1191, %v1906
        %v1908 = vpop.f32.mrf.mxu0
        %v1909 = vadd.f32 %v1192, %v1908
        %v1910 = vpop.f32.mrf.mxu0
        %v1911 = vadd.f32 %v1192, %v1910
        %1912 = vmatprep.mubr.bf16.mxu0 0
        %1913 = vmatmul.mubr.bf16.gmra.mxu0 %v1335
        %v1914 = vpop.f32.mrf.mxu0
        %v1915 = vadd.f32 %v1193, %v1914
        %v1916 = vpop.f32.mrf.mxu0
        %v1917 = vadd.f32 %v1193, %v1916
        %v1918 = vpop.f32.mrf.mxu0
        %v1919 = vadd.f32 %v1194, %v1918
        %v1920 = vpop.f32.mrf.mxu0
        %v1921 = vadd.f32 %v1194, %v1920
        %1922 = vmatprep.mubr.bf16.mxu0 0
        %1923 = vmatmul.mubr.bf16.gmra.mxu0 %v1338
        %v1924 = vpop.f32.mrf.mxu0
        %v1925 = vadd.f32 %v1195, %v1924
        %v1926 = vpop.f32.mrf.mxu0
        %v1927 = vadd.f32 %v1195, %v1926
        %v1928 = vpop.f32.mrf.mxu0
        %v1929 = vadd.f32 %v1196, %v1928
        %v1930 = vpop.f32.mrf.mxu0
        %v1931 = vadd.f32 %v1196, %v1930
        %1932 = vmatprep.mubr.bf16.mxu0 0
        %1933 = vmatmul.mubr.bf16.gmra.mxu0 %v1341
        %v1934 = vpop.f32.mrf.mxu0
        %v1935 = vadd.f32 %v1197, %v1934
        %v1936 = vpop.f32.mrf.mxu0
        %v1937 = vadd.f32 %v1197, %v1936
        %v1938 = vpop.f32.mrf.mxu0
        %v1939 = vadd.f32 %v1198, %v1938
        %v1940 = vpop.f32.mrf.mxu0
        %v1941 = vadd.f32 %v1198, %v1940
        %1942 = vmatprep.mubr.bf16.mxu0 0
        %1943 = vmatmul.mubr.bf16.gmra.mxu0 %v1344
        %v1944 = vpop.f32.mrf.mxu0
        %v1945 = vadd.f32 %v1199, %v1944
        %v1946 = vpop.f32.mrf.mxu0
        %v1947 = vadd.f32 %v1199, %v1946
        %v1948 = vpop.f32.mrf.mxu0
        %v1949 = vadd.f32 %v1200, %v1948
        %v1950 = vpop.f32.mrf.mxu0
        %v1951 = vadd.f32 %v1200, %v1950
        %1952 = vmatprep.mubr.bf16.mxu0 0
        %1953 = vmatmul.mubr.bf16.gmra.mxu0 %v1347
        %v1954 = vpop.f32.mrf.mxu0
        %v1955 = vadd.f32 %v1201, %v1954
        %v1956 = vpop.f32.mrf.mxu0
        %v1957 = vadd.f32 %v1201, %v1956
        %v1958 = vpop.f32.mrf.mxu0
        %v1959 = vadd.f32 %v1202, %v1958
        %v1960 = vpop.f32.mrf.mxu0
        %v1961 = vadd.f32 %v1202, %v1960
        %1962 = vmatprep.mubr.bf16.mxu0 0
        %1963 = vmatmul.mubr.bf16.gmra.mxu0 %v1350
        %v1964 = vpop.f32.mrf.mxu0
        %v1965 = vadd.f32 %v1203, %v1964
        %v1966 = vpop.f32.mrf.mxu0
        %v1967 = vadd.f32 %v1203, %v1966
        %v1968 = vpop.f32.mrf.mxu0
        %v1969 = vadd.f32 %v1204, %v1968
        %v1970 = vpop.f32.mrf.mxu0
        %v1971 = vadd.f32 %v1204, %v1970
        %1972 = vmatprep.mubr.bf16.mxu0 0
        %1973 = vmatmul.mubr.bf16.gmra.mxu0 %v1353
        %v1974 = vpop.f32.mrf.mxu0
        %v1975 = vadd.f32 %v1205, %v1974
        %v1976 = vpop.f32.mrf.mxu0
        %v1977 = vadd.f32 %v1205, %v1976
        %v1978 = vpop.f32.mrf.mxu0
        %v1979 = vadd.f32 %v1206, %v1978
        %v1980 = vpop.f32.mrf.mxu0
        %v1981 = vadd.f32 %v1206, %v1980
        %1982 = vmatprep.mubr.bf16.mxu0 0
        %1983 = vmatmul.mubr.bf16.gmra.mxu0 %v1356
        %v1984 = vpop.f32.mrf.mxu0
        %v1985 = vadd.f32 %v1207, %v1984
        %v1986 = vpop.f32.mrf.mxu0
        %v1987 = vadd.f32 %v1207, %v1986
        %v1988 = vpop.f32.mrf.mxu0
        %v1989 = vadd.f32 %v1208, %v1988
        %v1990 = vpop.f32.mrf.mxu0
        %v1991 = vadd.f32 %v1208, %v1990
        %1992 = vmatprep.mubr.bf16.mxu0 0
        %1993 = vmatmul.mubr.bf16.gmra.mxu0 %v1359
        %v1994 = vpop.f32.mrf.mxu0
        %v1995 = vadd.f32 %v1209, %v1994
        %v1996 = vpop.f32.mrf.mxu0
        %v1997 = vadd.f32 %v1209, %v1996
        %v1998 = vpop.f32.mrf.mxu0
        %v1999 = vadd.f32 %v1210, %v1998
        %v2000 = vpop.f32.mrf.mxu0
        %v2001 = vadd.f32 %v1210, %v2000
        %2002 = vmatprep.mubr.bf16.mxu0 0
        %2003 = vmatmul.mubr.bf16.gmra.mxu0 %v1362
        %v2004 = vpop.f32.mrf.mxu0
        %v2005 = vadd.f32 %v1211, %v2004
        %v2006 = vpop.f32.mrf.mxu0
        %v2007 = vadd.f32 %v1211, %v2006
        %v2008 = vpop.f32.mrf.mxu0
        %v2009 = vadd.f32 %v1212, %v2008
        %v2010 = vpop.f32.mrf.mxu0
        %v2011 = vadd.f32 %v1212, %v2010
        %2012 = vmatprep.mubr.bf16.mxu0 0
        %2013 = vmatmul.mubr.bf16.gmra.mxu0 %v1365
        %v2014 = vpop.f32.mrf.mxu0
        %v2015 = vadd.f32 %v1213, %v2014
        %v2016 = vpop.f32.mrf.mxu0
        %v2017 = vadd.f32 %v1213, %v2016
        %v2018 = vpop.f32.mrf.mxu0
        %v2019 = vadd.f32 %v1214, %v2018
        %v2020 = vpop.f32.mrf.mxu0
        %v2021 = vadd.f32 %v1214, %v2020
        %2022 = vmatprep.mubr.bf16.mxu0 0
        %2023 = vmatmul.mubr.bf16.gmra.mxu0 %v1368
        %v2024 = vpop.f32.mrf.mxu0
        %v2025 = vadd.f32 %v1215, %v2024
        %v2026 = vpop.f32.mrf.mxu0
        %v2027 = vadd.f32 %v1215, %v2026
        %v2028 = vpop.f32.mrf.mxu0
        %v2029 = vadd.f32 %v1216, %v2028
        %v2030 = vpop.f32.mrf.mxu0
        %v2031 = vadd.f32 %v1216, %v2030
        %2032 = vmatprep.mubr.bf16.mxu0 0
        %2033 = vmatmul.mubr.bf16.gmra.mxu0 %v1371
        %v2034 = vpop.f32.mrf.mxu0
        %v2035 = vadd.f32 %v1217, %v2034
        %v2036 = vpop.f32.mrf.mxu0
        %v2037 = vadd.f32 %v1217, %v2036
        %v2038 = vpop.f32.mrf.mxu0
        %v2039 = vadd.f32 %v1218, %v2038
        %v2040 = vpop.f32.mrf.mxu0
        %v2041 = vadd.f32 %v1218, %v2040
        %2042 = vmatprep.mubr.bf16.mxu0 0
        %2043 = vmatmul.mubr.bf16.gmra.mxu0 %v1374
        %v2044 = vpop.f32.mrf.mxu0
        %v2045 = vadd.f32 %v1219, %v2044
        %v2046 = vpop.f32.mrf.mxu0
        %v2047 = vadd.f32 %v1219, %v2046
        %v2048 = vpop.f32.mrf.mxu0
        %v2049 = vadd.f32 %v1220, %v2048
        %v2050 = vpop.f32.mrf.mxu0
        %v2051 = vadd.f32 %v1220, %v2050
        %2052 = vmatprep.mubr.bf16.mxu0 0
        %2053 = vmatmul.mubr.bf16.gmra.mxu0 %v1377
        %v2054 = vpop.f32.mrf.mxu0
        %v2055 = vadd.f32 %v1221, %v2054
        %v2056 = vpop.f32.mrf.mxu0
        %v2057 = vadd.f32 %v1221, %v2056
        %v2058 = vpop.f32.mrf.mxu0
        %v2059 = vadd.f32 %v1222, %v2058
        %v2060 = vpop.f32.mrf.mxu0
        %v2061 = vadd.f32 %v1222, %v2060
        %2062 = vmatprep.mubr.bf16.mxu0 0
        %2063 = vmatmul.mubr.bf16.gmra.mxu0 %v1380
        %v2064 = vpop.f32.mrf.mxu0
        %v2065 = vadd.f32 %v1223, %v2064
        %v2066 = vpop.f32.mrf.mxu0
        %v2067 = vadd.f32 %v1223, %v2066
        %v2068 = vpop.f32.mrf.mxu0
        %v2069 = vadd.f32 %v1224, %v2068
        %v2070 = vpop.f32.mrf.mxu0
        %v2071 = vadd.f32 %v1224, %v2070
        %2072 = vmatprep.mubr.bf16.mxu0 0
        %2073 = vmatmul.mubr.bf16.gmra.mxu0 %v1383
        %v2074 = vpop.f32.mrf.mxu0
        %v2075 = vadd.f32 %v1225, %v2074
        %v2076 = vpop.f32.mrf.mxu0
        %v2077 = vadd.f32 %v1225, %v2076
        %v2078 = vpop.f32.mrf.mxu0
        %v2079 = vadd.f32 %v1226, %v2078
        %v2080 = vpop.f32.mrf.mxu0
        %v2081 = vadd.f32 %v1226, %v2080
        %2082 = vmatprep.mubr.bf16.mxu0 0
        %2083 = vmatmul.mubr.bf16.gmra.mxu0 %v1386
        %v2084 = vpop.f32.mrf.mxu0
        %v2085 = vadd.f32 %v1227, %v2084
        %v2086 = vpop.f32.mrf.mxu0
        %v2087 = vadd.f32 %v1227, %v2086
        %v2088 = vpop.f32.mrf.mxu0
        %v2089 = vadd.f32 %v1228, %v2088
        %v2090 = vpop.f32.mrf.mxu0
        %v2091 = vadd.f32 %v1228, %v2090
        %2092 = vmatprep.mubr.bf16.mxu0 0
        %2093 = vmatmul.mubr.bf16.gmra.mxu0 %v1389
        %v2094 = vpop.f32.mrf.mxu0
        %v2095 = vadd.f32 %v1229, %v2094
        %v2096 = vpop.f32.mrf.mxu0
        %v2097 = vadd.f32 %v1229, %v2096
        %v2098 = vpop.f32.mrf.mxu0
        %v2099 = vadd.f32 %v1230, %v2098
        %v2100 = vpop.f32.mrf.mxu0
        %v2101 = vadd.f32 %v1230, %v2100
        %2102 = vmatprep.mubr.bf16.mxu0 0
        %2103 = vmatmul.mubr.bf16.gmra.mxu0 %v1392
        %v2104 = vpop.f32.mrf.mxu0
        %v2105 = vadd.f32 %v1231, %v2104
        %v2106 = vpop.f32.mrf.mxu0
        %v2107 = vadd.f32 %v1231, %v2106
        %v2108 = vpop.f32.mrf.mxu0
        %v2109 = vadd.f32 %v1232, %v2108
        %v2110 = vpop.f32.mrf.mxu0
        %v2111 = vadd.f32 %v1232, %v2110
        %2112 = vdwg.mxu0
        %v2113 = vld [vmem:[#allocation3] sm:$0xf]
        %v2114 = vmax.f32 %v1442, %v1446
        %v2115 = vmax.f32 %v2114, %v1452
        %v2116 = vmax.f32 %v2115, %v1456
        %v2117 = vmax.f32 %v2116, %v1462
        %v2118 = vmax.f32 %v2117, %v1466
        %v2119 = vmax.f32 %v2118, %v1472
        %v2120 = vmax.f32 %v2119, %v1476
        %v2121 = vmax.f32 %v2120, %v1482
        %v2122 = vmax.f32 %v2121, %v1486
        %v2123 = vmax.f32 %v2122, %v1492
        %v2124 = vmax.f32 %v2123, %v1496
        %v2125 = vmax.f32 %v2124, %v1502
        %v2126 = vmax.f32 %v2125, %v1506
        %v2127 = vmax.f32 %v2126, %v1512
        %v2128 = vmax.f32 %v2127, %v1516
        %v2129 = vmax.f32 %v2128, %v1522
        %v2130 = vmax.f32 %v2129, %v1526
        %v2131 = vmax.f32 %v2130, %v1532
        %v2132 = vmax.f32 %v2131, %v1536
        %v2133 = vmax.f32 %v2132, %v1542
        %v2134 = vmax.f32 %v2133, %v1546
        %v2135 = vmax.f32 %v2134, %v1552
        %v2136 = vmax.f32 %v2135, %v1556
        %v2137 = vmax.f32 %v2136, %v1562
        %v2138 = vmax.f32 %v2137, %v1566
        %v2139 = vmax.f32 %v2138, %v1572
        %v2140 = vmax.f32 %v2139, %v1576
        %v2141 = vmax.f32 %v2140, %v1582
        %v2142 = vmax.f32 %v2141, %v1586
        %v2143 = vmax.f32 %v2142, %v1592
        %v2144 = vmax.f32 %v2143, %v1596
        %v2145 = vmax.f32 %v2144, %v1602
        %v2146 = vmax.f32 %v2145, %v1606
        %v2147 = vmax.f32 %v2146, %v1612
        %v2148 = vmax.f32 %v2147, %v1616
        %v2149 = vmax.f32 %v2148, %v1622
        %v2150 = vmax.f32 %v2149, %v1626
        %v2151 = vmax.f32 %v2150, %v1632
        %v2152 = vmax.f32 %v2151, %v1636
        %v2153 = vmax.f32 %v2152, %v1642
        %v2154 = vmax.f32 %v2153, %v1646
        %v2155 = vmax.f32 %v2154, %v1652
        %v2156 = vmax.f32 %v2155, %v1656
        %v2157 = vmax.f32 %v2156, %v1662
        %v2158 = vmax.f32 %v2157, %v1666
        %v2159 = vmax.f32 %v2158, %v1672
        %v2160 = vmax.f32 %v2159, %v1676
        %v2161 = vmax.f32 %v2160, %v1682
        %v2162 = vmax.f32 %v2161, %v1686
        %v2163 = vmax.f32 %v2162, %v1692
        %v2164 = vmax.f32 %v2163, %v1696
        %v2165 = vmax.f32 %v2164, %v1702
        %v2166 = vmax.f32 %v2165, %v1706
        %v2167 = vmax.f32 %v2166, %v1712
        %v2168 = vmax.f32 %v2167, %v1716
        %v2169 = vmax.f32 %v2168, %v1722
        %v2170 = vmax.f32 %v2169, %v1726
        %v2171 = vmax.f32 %v2170, %v1732
        %v2172 = vmax.f32 %v2171, %v1736
        %v2173 = vmax.f32 %v2172, %v1742
        %v2174 = vmax.f32 %v2173, %v1746
        %v2175 = vmax.f32 %v2174, %v1752
        %v2176 = vmax.f32 %v2175, %v1756
        %v2177 = vrot.slane %v2176, 4
        %v2178 = vmax.f32 %v2176, %v2177
        %v2179 = vrot.slane %v2178, 2
        %v2180 = vmax.f32 %v2178, %v2179
        %v2181 = vrot.slane %v2180, 1
        %v2182 = vmax.f32 %v2180, %v2181
        %v2183 = vmax.f32 %v1444, %v1448
        %v2184 = vmax.f32 %v2183, %v1454
        %v2185 = vmax.f32 %v2184, %v1458
        %v2186 = vmax.f32 %v2185, %v1464
        %v2187 = vmax.f32 %v2186, %v1468
        %v2188 = vmax.f32 %v2187, %v1474
        %v2189 = vmax.f32 %v2188, %v1478
        %v2190 = vmax.f32 %v2189, %v1484
        %v2191 = vmax.f32 %v2190, %v1488
        %v2192 = vmax.f32 %v2191, %v1494
        %v2193 = vmax.f32 %v2192, %v1498
        %v2194 = vmax.f32 %v2193, %v1504
        %v2195 = vmax.f32 %v2194, %v1508
        %v2196 = vmax.f32 %v2195, %v1514
        %v2197 = vmax.f32 %v2196, %v1518
        %v2198 = vmax.f32 %v2197, %v1524
        %v2199 = vmax.f32 %v2198, %v1528
        %v2200 = vmax.f32 %v2199, %v1534
        %v2201 = vmax.f32 %v2200, %v1538
        %v2202 = vmax.f32 %v2201, %v1544
        %v2203 = vmax.f32 %v2202, %v1548
        %v2204 = vmax.f32 %v2203, %v1554
        %v2205 = vmax.f32 %v2204, %v1558
        %v2206 = vmax.f32 %v2205, %v1564
        %v2207 = vmax.f32 %v2206, %v1568
        %v2208 = vmax.f32 %v2207, %v1574
        %v2209 = vmax.f32 %v2208, %v1578
        %v2210 = vmax.f32 %v2209, %v1584
        %v2211 = vmax.f32 %v2210, %v1588
        %v2212 = vmax.f32 %v2211, %v1594
        %v2213 = vmax.f32 %v2212, %v1598
        %v2214 = vmax.f32 %v2213, %v1604
        %v2215 = vmax.f32 %v2214, %v1608
        %v2216 = vmax.f32 %v2215, %v1614
        %v2217 = vmax.f32 %v2216, %v1618
        %v2218 = vmax.f32 %v2217, %v1624
        %v2219 = vmax.f32 %v2218, %v1628
        %v2220 = vmax.f32 %v2219, %v1634
        %v2221 = vmax.f32 %v2220, %v1638
        %v2222 = vmax.f32 %v2221, %v1644
        %v2223 = vmax.f32 %v2222, %v1648
        %v2224 = vmax.f32 %v2223, %v1654
        %v2225 = vmax.f32 %v2224, %v1658
        %v2226 = vmax.f32 %v2225, %v1664
        %v2227 = vmax.f32 %v2226, %v1668
        %v2228 = vmax.f32 %v2227, %v1674
        %v2229 = vmax.f32 %v2228, %v1678
        %v2230 = vmax.f32 %v2229, %v1684
        %v2231 = vmax.f32 %v2230, %v1688
        %v2232 = vmax.f32 %v2231, %v1694
        %v2233 = vmax.f32 %v2232, %v1698
        %v2234 = vmax.f32 %v2233, %v1704
        %v2235 = vmax.f32 %v2234, %v1708
        %v2236 = vmax.f32 %v2235, %v1714
        %v2237 = vmax.f32 %v2236, %v1718
        %v2238 = vmax.f32 %v2237, %v1724
        %v2239 = vmax.f32 %v2238, %v1728
        %v2240 = vmax.f32 %v2239, %v1734
        %v2241 = vmax.f32 %v2240, %v1738
        %v2242 = vmax.f32 %v2241, %v1744
        %v2243 = vmax.f32 %v2242, %v1748
        %v2244 = vmax.f32 %v2243, %v1754
        %v2245 = vmax.f32 %v2244, %v1758
        %v2246 = vrot.slane %v2245, 4
        %v2247 = vmax.f32 %v2245, %v2246
        %v2248 = vrot.slane %v2247, 2
        %v2249 = vmax.f32 %v2247, %v2248
        %v2250 = vrot.slane %v2249, 1
        %v2251 = vmax.f32 %v2249, %v2250
        %v2252 = vmax.f32 %v1795, %v1799
        %v2253 = vmax.f32 %v2252, %v1805
        %v2254 = vmax.f32 %v2253, %v1809
        %v2255 = vmax.f32 %v2254, %v1815
        %v2256 = vmax.f32 %v2255, %v1819
        %v2257 = vmax.f32 %v2256, %v1825
        %v2258 = vmax.f32 %v2257, %v1829
        %v2259 = vmax.f32 %v2258, %v1835
        %v2260 = vmax.f32 %v2259, %v1839
        %v2261 = vmax.f32 %v2260, %v1845
        %v2262 = vmax.f32 %v2261, %v1849
        %v2263 = vmax.f32 %v2262, %v1855
        %v2264 = vmax.f32 %v2263, %v1859
        %v2265 = vmax.f32 %v2264, %v1865
        %v2266 = vmax.f32 %v2265, %v1869
        %v2267 = vmax.f32 %v2266, %v1875
        %v2268 = vmax.f32 %v2267, %v1879
        %v2269 = vmax.f32 %v2268, %v1885
        %v2270 = vmax.f32 %v2269, %v1889
        %v2271 = vmax.f32 %v2270, %v1895
        %v2272 = vmax.f32 %v2271, %v1899
        %v2273 = vmax.f32 %v2272, %v1905
        %v2274 = vmax.f32 %v2273, %v1909
        %v2275 = vmax.f32 %v2274, %v1915
        %v2276 = vmax.f32 %v2275, %v1919
        %v2277 = vmax.f32 %v2276, %v1925
        %v2278 = vmax.f32 %v2277, %v1929
        %v2279 = vmax.f32 %v2278, %v1935
        %v2280 = vmax.f32 %v2279, %v1939
        %v2281 = vmax.f32 %v2280, %v1945
        %v2282 = vmax.f32 %v2281, %v1949
        %v2283 = vmax.f32 %v2282, %v1955
        %v2284 = vmax.f32 %v2283, %v1959
        %v2285 = vmax.f32 %v2284, %v1965
        %v2286 = vmax.f32 %v2285, %v1969
        %v2287 = vmax.f32 %v2286, %v1975
        %v2288 = vmax.f32 %v2287, %v1979
        %v2289 = vmax.f32 %v2288, %v1985
        %v2290 = vmax.f32 %v2289, %v1989
        %v2291 = vmax.f32 %v2290, %v1995
        %v2292 = vmax.f32 %v2291, %v1999
        %v2293 = vmax.f32 %v2292, %v2005
        %v2294 = vmax.f32 %v2293, %v2009
        %v2295 = vmax.f32 %v2294, %v2015
        %v2296 = vmax.f32 %v2295, %v2019
        %v2297 = vmax.f32 %v2296, %v2025
        %v2298 = vmax.f32 %v2297, %v2029
        %v2299 = vmax.f32 %v2298, %v2035
        %v2300 = vmax.f32 %v2299, %v2039
        %v2301 = vmax.f32 %v2300, %v2045
        %v2302 = vmax.f32 %v2301, %v2049
        %v2303 = vmax.f32 %v2302, %v2055
        %v2304 = vmax.f32 %v2303, %v2059
        %v2305 = vmax.f32 %v2304, %v2065
        %v2306 = vmax.f32 %v2305, %v2069
        %v2307 = vmax.f32 %v2306, %v2075
        %v2308 = vmax.f32 %v2307, %v2079
        %v2309 = vmax.f32 %v2308, %v2085
        %v2310 = vmax.f32 %v2309, %v2089
        %v2311 = vmax.f32 %v2310, %v2095
        %v2312 = vmax.f32 %v2311, %v2099
        %v2313 = vmax.f32 %v2312, %v2105
        %v2314 = vmax.f32 %v2313, %v2109
        %v2315 = vrot.slane %v2314, 4
        %v2316 = vmax.f32 %v2314, %v2315
        %v2317 = vrot.slane %v2316, 2
        %v2318 = vmax.f32 %v2316, %v2317
        %v2319 = vrot.slane %v2318, 1
        %v2320 = vmax.f32 %v2318, %v2319
        %v2321 = vmax.f32 %v1797, %v1801
        %v2322 = vmax.f32 %v2321, %v1807
        %v2323 = vmax.f32 %v2322, %v1811
        %v2324 = vmax.f32 %v2323, %v1817
        %v2325 = vmax.f32 %v2324, %v1821
        %v2326 = vmax.f32 %v2325, %v1827
        %v2327 = vmax.f32 %v2326, %v1831
        %v2328 = vmax.f32 %v2327, %v1837
        %v2329 = vmax.f32 %v2328, %v1841
        %v2330 = vmax.f32 %v2329, %v1847
        %v2331 = vmax.f32 %v2330, %v1851
        %v2332 = vmax.f32 %v2331, %v1857
        %v2333 = vmax.f32 %v2332, %v1861
        %v2334 = vmax.f32 %v2333, %v1867
        %v2335 = vmax.f32 %v2334, %v1871
        %v2336 = vmax.f32 %v2335, %v1877
        %v2337 = vmax.f32 %v2336, %v1881
        %v2338 = vmax.f32 %v2337, %v1887
        %v2339 = vmax.f32 %v2338, %v1891
        %v2340 = vmax.f32 %v2339, %v1897
        %v2341 = vmax.f32 %v2340, %v1901
        %v2342 = vmax.f32 %v2341, %v1907
        %v2343 = vmax.f32 %v2342, %v1911
        %v2344 = vmax.f32 %v2343, %v1917
        %v2345 = vmax.f32 %v2344, %v1921
        %v2346 = vmax.f32 %v2345, %v1927
        %v2347 = vmax.f32 %v2346, %v1931
        %v2348 = vmax.f32 %v2347, %v1937
        %v2349 = vmax.f32 %v2348, %v1941
        %v2350 = vmax.f32 %v2349, %v1947
        %v2351 = vmax.f32 %v2350, %v1951
        %v2352 = vmax.f32 %v2351, %v1957
        %v2353 = vmax.f32 %v2352, %v1961
        %v2354 = vmax.f32 %v2353, %v1967
        %v2355 = vmax.f32 %v2354, %v1971
        %v2356 = vmax.f32 %v2355, %v1977
        %v2357 = vmax.f32 %v2356, %v1981
        %v2358 = vmax.f32 %v2357, %v1987
        %v2359 = vmax.f32 %v2358, %v1991
        %v2360 = vmax.f32 %v2359, %v1997
        %v2361 = vmax.f32 %v2360, %v2001
        %v2362 = vmax.f32 %v2361, %v2007
        %v2363 = vmax.f32 %v2362, %v2011
        %v2364 = vmax.f32 %v2363, %v2017
        %v2365 = vmax.f32 %v2364, %v2021
        %v2366 = vmax.f32 %v2365, %v2027
        %v2367 = vmax.f32 %v2366, %v2031
        %v2368 = vmax.f32 %v2367, %v2037
        %v2369 = vmax.f32 %v2368, %v2041
        %v2370 = vmax.f32 %v2369, %v2047
        %v2371 = vmax.f32 %v2370, %v2051
        %v2372 = vmax.f32 %v2371, %v2057
        %v2373 = vmax.f32 %v2372, %v2061
        %v2374 = vmax.f32 %v2373, %v2067
        %v2375 = vmax.f32 %v2374, %v2071
        %v2376 = vmax.f32 %v2375, %v2077
        %v2377 = vmax.f32 %v2376, %v2081
        %v2378 = vmax.f32 %v2377, %v2087
        %v2379 = vmax.f32 %v2378, %v2091
        %v2380 = vmax.f32 %v2379, %v2097
        %v2381 = vmax.f32 %v2380, %v2101
        %v2382 = vmax.f32 %v2381, %v2107
        %v2383 = vmax.f32 %v2382, %v2111
        %v2384 = vrot.slane %v2383, 4
        %v2385 = vmax.f32 %v2383, %v2384
        %v2386 = vrot.slane %v2385, 2
        %v2387 = vmax.f32 %v2385, %v2386
        %v2388 = vrot.slane %v2387, 1
        %v2389 = vmax.f32 %v2387, %v2388
        %v2394 = vcombine.low %v2182, %v2251
        %v2395 = vcombine.low %v2320, %v2389
        %v2397 = vunpack.c.l.s4 1966171168
        %v2398 = vunpack.c.0.s8 %v2397
        %v2399 = vlaneseq
        %v2400 = vshrl.u32 %v2399, 7
        %v2401 = vsub.s32 %v2398, %v2400
        %v2402 = vrot.slane %v2394, %v2401
        %v2404 = vunpack.c.l.s4 1966171168
        %v2405 = vunpack.c.0.s8 %v2404
        %v2406 = vlaneseq
        %v2407 = vshrl.u32 %v2406, 7
        %v2408 = vsub.s32 %v2405, %v2407
        %v2409 = vrot.slane %v2395, %v2408
        %v2410 = vcombine.low %v2402, %v2409
        %v2412 = vunpack.c.l.s4 1966171168
        %v2413 = vunpack.c.0.s8 %v2412
        %v2414 = vlaneseq
        %v2415 = vshrl.u32 %v2414, 7
        %v2416 = vsub.s32 %v2413, %v2415
        %v2417 = vrot.slane %v2410, %v2416
        %v2419 = vmax.f32 %v2113, %v2417
        %v2420 = vsub.f32 %v2113, %v2419
        %v2421 = vmul.f32 %v2420, 1.442695
        %v2422 = vpow.pop %v2421
        %v2424 = vlaneseq
        %v2425 = vshrl.u32 %v2424, 7
        %v2426 = vsub.s32 0, %v2425
        %v2427 = vrot.slane %v2419, %v2426
        %v2428 = vlaneseq
        %v2429 = vshrl.u32 %v2428, 7
        %v2430 = vsub.s32 1, %v2429
        %v2431 = vrot.slane %v2419, %v2430
        %v2432 = vlaneseq
        %v2433 = vshrl.u32 %v2432, 7
        %v2434 = vsub.s32 2, %v2433
        %v2435 = vrot.slane %v2419, %v2434
        %v2436 = vlaneseq
        %v2437 = vshrl.u32 %v2436, 7
        %v2438 = vsub.s32 3, %v2437
        %v2439 = vrot.slane %v2419, %v2438
        %v2444 = vsub.f32 %v1442, %v2427
        %v2445 = vsub.f32 %v1444, %v2431
        %v2446 = vsub.f32 %v1795, %v2435
        %v2447 = vsub.f32 %v1797, %v2439
        %v2448 = vsub.f32 %v1446, %v2427
        %v2449 = vsub.f32 %v1448, %v2431
        %v2450 = vsub.f32 %v1799, %v2435
        %v2451 = vsub.f32 %v1801, %v2439
        %v2452 = vsub.f32 %v1452, %v2427
        %v2453 = vsub.f32 %v1454, %v2431
        %v2454 = vsub.f32 %v1805, %v2435
        %v2455 = vsub.f32 %v1807, %v2439
        %v2456 = vsub.f32 %v1456, %v2427
        %v2457 = vsub.f32 %v1458, %v2431
        %v2458 = vsub.f32 %v1809, %v2435
        %v2459 = vsub.f32 %v1811, %v2439
        %v2460 = vsub.f32 %v1462, %v2427
        %v2461 = vsub.f32 %v1464, %v2431
        %v2462 = vsub.f32 %v1815, %v2435
        %v2463 = vsub.f32 %v1817, %v2439
        %v2464 = vsub.f32 %v1466, %v2427
        %v2465 = vsub.f32 %v1468, %v2431
        %v2466 = vsub.f32 %v1819, %v2435
        %v2467 = vsub.f32 %v1821, %v2439
        %v2468 = vsub.f32 %v1472, %v2427
        %v2469 = vsub.f32 %v1474, %v2431
        %v2470 = vsub.f32 %v1825, %v2435
        %v2471 = vsub.f32 %v1827, %v2439
        %v2472 = vsub.f32 %v1476, %v2427
        %v2473 = vsub.f32 %v1478, %v2431
        %v2474 = vsub.f32 %v1829, %v2435
        %v2475 = vsub.f32 %v1831, %v2439
        %v2476 = vsub.f32 %v1482, %v2427
        %v2477 = vsub.f32 %v1484, %v2431
        %v2478 = vsub.f32 %v1835, %v2435
        %v2479 = vsub.f32 %v1837, %v2439
        %v2480 = vsub.f32 %v1486, %v2427
        %v2481 = vsub.f32 %v1488, %v2431
        %v2482 = vsub.f32 %v1839, %v2435
        %v2483 = vsub.f32 %v1841, %v2439
        %v2484 = vsub.f32 %v1492, %v2427
        %v2485 = vsub.f32 %v1494, %v2431
        %v2486 = vsub.f32 %v1845, %v2435
        %v2487 = vsub.f32 %v1847, %v2439
        %v2488 = vsub.f32 %v1496, %v2427
        %v2489 = vsub.f32 %v1498, %v2431
        %v2490 = vsub.f32 %v1849, %v2435
        %v2491 = vsub.f32 %v1851, %v2439
        %v2492 = vsub.f32 %v1502, %v2427
        %v2493 = vsub.f32 %v1504, %v2431
        %v2494 = vsub.f32 %v1855, %v2435
        %v2495 = vsub.f32 %v1857, %v2439
        %v2496 = vsub.f32 %v1506, %v2427
        %v2497 = vsub.f32 %v1508, %v2431
        %v2498 = vsub.f32 %v1859, %v2435
        %v2499 = vsub.f32 %v1861, %v2439
        %v2500 = vsub.f32 %v1512, %v2427
        %v2501 = vsub.f32 %v1514, %v2431
        %v2502 = vsub.f32 %v1865, %v2435
        %v2503 = vsub.f32 %v1867, %v2439
        %v2504 = vsub.f32 %v1516, %v2427
        %v2505 = vsub.f32 %v1518, %v2431
        %v2506 = vsub.f32 %v1869, %v2435
        %v2507 = vsub.f32 %v1871, %v2439
        %v2508 = vsub.f32 %v1522, %v2427
        %v2509 = vsub.f32 %v1524, %v2431
        %v2510 = vsub.f32 %v1875, %v2435
        %v2511 = vsub.f32 %v1877, %v2439
        %v2512 = vsub.f32 %v1526, %v2427
        %v2513 = vsub.f32 %v1528, %v2431
        %v2514 = vsub.f32 %v1879, %v2435
        %v2515 = vsub.f32 %v1881, %v2439
        %v2516 = vsub.f32 %v1532, %v2427
        %v2517 = vsub.f32 %v1534, %v2431
        %v2518 = vsub.f32 %v1885, %v2435
        %v2519 = vsub.f32 %v1887, %v2439
        %v2520 = vsub.f32 %v1536, %v2427
        %v2521 = vsub.f32 %v1538, %v2431
        %v2522 = vsub.f32 %v1889, %v2435
        %v2523 = vsub.f32 %v1891, %v2439
        %v2524 = vsub.f32 %v1542, %v2427
        %v2525 = vsub.f32 %v1544, %v2431
        %v2526 = vsub.f32 %v1895, %v2435
        %v2527 = vsub.f32 %v1897, %v2439
        %v2528 = vsub.f32 %v1546, %v2427
        %v2529 = vsub.f32 %v1548, %v2431
        %v2530 = vsub.f32 %v1899, %v2435
        %v2531 = vsub.f32 %v1901, %v2439
        %v2532 = vsub.f32 %v1552, %v2427
        %v2533 = vsub.f32 %v1554, %v2431
        %v2534 = vsub.f32 %v1905, %v2435
        %v2535 = vsub.f32 %v1907, %v2439
        %v2536 = vsub.f32 %v1556, %v2427
        %v2537 = vsub.f32 %v1558, %v2431
        %v2538 = vsub.f32 %v1909, %v2435
        %v2539 = vsub.f32 %v1911, %v2439
        %v2540 = vsub.f32 %v1562, %v2427
        %v2541 = vsub.f32 %v1564, %v2431
        %v2542 = vsub.f32 %v1915, %v2435
        %v2543 = vsub.f32 %v1917, %v2439
        %v2544 = vsub.f32 %v1566, %v2427
        %v2545 = vsub.f32 %v1568, %v2431
        %v2546 = vsub.f32 %v1919, %v2435
        %v2547 = vsub.f32 %v1921, %v2439
        %v2548 = vsub.f32 %v1572, %v2427
        %v2549 = vsub.f32 %v1574, %v2431
        %v2550 = vsub.f32 %v1925, %v2435
        %v2551 = vsub.f32 %v1927, %v2439
        %v2552 = vsub.f32 %v1576, %v2427
        %v2553 = vsub.f32 %v1578, %v2431
        %v2554 = vsub.f32 %v1929, %v2435
        %v2555 = vsub.f32 %v1931, %v2439
        %v2556 = vsub.f32 %v1582, %v2427
        %v2557 = vsub.f32 %v1584, %v2431
        %v2558 = vsub.f32 %v1935, %v2435
        %v2559 = vsub.f32 %v1937, %v2439
        %v2560 = vsub.f32 %v1586, %v2427
        %v2561 = vsub.f32 %v1588, %v2431
        %v2562 = vsub.f32 %v1939, %v2435
        %v2563 = vsub.f32 %v1941, %v2439
        %v2564 = vsub.f32 %v1592, %v2427
        %v2565 = vsub.f32 %v1594, %v2431
        %v2566 = vsub.f32 %v1945, %v2435
        %v2567 = vsub.f32 %v1947, %v2439
        %v2568 = vsub.f32 %v1596, %v2427
        %v2569 = vsub.f32 %v1598, %v2431
        %v2570 = vsub.f32 %v1949, %v2435
        %v2571 = vsub.f32 %v1951, %v2439
        %v2572 = vsub.f32 %v1602, %v2427
        %v2573 = vsub.f32 %v1604, %v2431
        %v2574 = vsub.f32 %v1955, %v2435
        %v2575 = vsub.f32 %v1957, %v2439
        %v2576 = vsub.f32 %v1606, %v2427
        %v2577 = vsub.f32 %v1608, %v2431
        %v2578 = vsub.f32 %v1959, %v2435
        %v2579 = vsub.f32 %v1961, %v2439
        %v2580 = vsub.f32 %v1612, %v2427
        %v2581 = vsub.f32 %v1614, %v2431
        %v2582 = vsub.f32 %v1965, %v2435
        %v2583 = vsub.f32 %v1967, %v2439
        %v2584 = vsub.f32 %v1616, %v2427
        %v2585 = vsub.f32 %v1618, %v2431
        %v2586 = vsub.f32 %v1969, %v2435
        %v2587 = vsub.f32 %v1971, %v2439
        %v2588 = vsub.f32 %v1622, %v2427
        %v2589 = vsub.f32 %v1624, %v2431
        %v2590 = vsub.f32 %v1975, %v2435
        %v2591 = vsub.f32 %v1977, %v2439
        %v2592 = vsub.f32 %v1626, %v2427
        %v2593 = vsub.f32 %v1628, %v2431
        %v2594 = vsub.f32 %v1979, %v2435
        %v2595 = vsub.f32 %v1981, %v2439
        %v2596 = vsub.f32 %v1632, %v2427
        %v2597 = vsub.f32 %v1634, %v2431
        %v2598 = vsub.f32 %v1985, %v2435
        %v2599 = vsub.f32 %v1987, %v2439
        %v2600 = vsub.f32 %v1636, %v2427
        %v2601 = vsub.f32 %v1638, %v2431
        %v2602 = vsub.f32 %v1989, %v2435
        %v2603 = vsub.f32 %v1991, %v2439
        %v2604 = vsub.f32 %v1642, %v2427
        %v2605 = vsub.f32 %v1644, %v2431
        %v2606 = vsub.f32 %v1995, %v2435
        %v2607 = vsub.f32 %v1997, %v2439
        %v2608 = vsub.f32 %v1646, %v2427
        %v2609 = vsub.f32 %v1648, %v2431
        %v2610 = vsub.f32 %v1999, %v2435
        %v2611 = vsub.f32 %v2001, %v2439
        %v2612 = vsub.f32 %v1652, %v2427
        %v2613 = vsub.f32 %v1654, %v2431
        %v2614 = vsub.f32 %v2005, %v2435
        %v2615 = vsub.f32 %v2007, %v2439
        %v2616 = vsub.f32 %v1656, %v2427
        %v2617 = vsub.f32 %v1658, %v2431
        %v2618 = vsub.f32 %v2009, %v2435
        %v2619 = vsub.f32 %v2011, %v2439
        %v2620 = vsub.f32 %v1662, %v2427
        %v2621 = vsub.f32 %v1664, %v2431
        %v2622 = vsub.f32 %v2015, %v2435
        %v2623 = vsub.f32 %v2017, %v2439
        %v2624 = vsub.f32 %v1666, %v2427
        %v2625 = vsub.f32 %v1668, %v2431
        %v2626 = vsub.f32 %v2019, %v2435
        %v2627 = vsub.f32 %v2021, %v2439
        %v2628 = vsub.f32 %v1672, %v2427
        %v2629 = vsub.f32 %v1674, %v2431
        %v2630 = vsub.f32 %v2025, %v2435
        %v2631 = vsub.f32 %v2027, %v2439
        %v2632 = vsub.f32 %v1676, %v2427
        %v2633 = vsub.f32 %v1678, %v2431
        %v2634 = vsub.f32 %v2029, %v2435
        %v2635 = vsub.f32 %v2031, %v2439
        %v2636 = vsub.f32 %v1682, %v2427
        %v2637 = vsub.f32 %v1684, %v2431
        %v2638 = vsub.f32 %v2035, %v2435
        %v2639 = vsub.f32 %v2037, %v2439
        %v2640 = vsub.f32 %v1686, %v2427
        %v2641 = vsub.f32 %v1688, %v2431
        %v2642 = vsub.f32 %v2039, %v2435
        %v2643 = vsub.f32 %v2041, %v2439
        %v2644 = vsub.f32 %v1692, %v2427
        %v2645 = vsub.f32 %v1694, %v2431
        %v2646 = vsub.f32 %v2045, %v2435
        %v2647 = vsub.f32 %v2047, %v2439
        %v2648 = vsub.f32 %v1696, %v2427
        %v2649 = vsub.f32 %v1698, %v2431
        %v2650 = vsub.f32 %v2049, %v2435
        %v2651 = vsub.f32 %v2051, %v2439
        %v2652 = vsub.f32 %v1702, %v2427
        %v2653 = vsub.f32 %v1704, %v2431
        %v2654 = vsub.f32 %v2055, %v2435
        %v2655 = vsub.f32 %v2057, %v2439
        %v2656 = vsub.f32 %v1706, %v2427
        %v2657 = vsub.f32 %v1708, %v2431
        %v2658 = vsub.f32 %v2059, %v2435
        %v2659 = vsub.f32 %v2061, %v2439
        %v2660 = vsub.f32 %v1712, %v2427
        %v2661 = vsub.f32 %v1714, %v2431
        %v2662 = vsub.f32 %v2065, %v2435
        %v2663 = vsub.f32 %v2067, %v2439
        %v2664 = vsub.f32 %v1716, %v2427
        %v2665 = vsub.f32 %v1718, %v2431
        %v2666 = vsub.f32 %v2069, %v2435
        %v2667 = vsub.f32 %v2071, %v2439
        %v2668 = vsub.f32 %v1722, %v2427
        %v2669 = vsub.f32 %v1724, %v2431
        %v2670 = vsub.f32 %v2075, %v2435
        %v2671 = vsub.f32 %v2077, %v2439
        %v2672 = vsub.f32 %v1726, %v2427
        %v2673 = vsub.f32 %v1728, %v2431
        %v2674 = vsub.f32 %v2079, %v2435
        %v2675 = vsub.f32 %v2081, %v2439
        %v2676 = vsub.f32 %v1732, %v2427
        %v2677 = vsub.f32 %v1734, %v2431
        %v2678 = vsub.f32 %v2085, %v2435
        %v2679 = vsub.f32 %v2087, %v2439
        %v2680 = vsub.f32 %v1736, %v2427
        %v2681 = vsub.f32 %v1738, %v2431
        %v2682 = vsub.f32 %v2089, %v2435
        %v2683 = vsub.f32 %v2091, %v2439
        %v2684 = vsub.f32 %v1742, %v2427
        %v2685 = vsub.f32 %v1744, %v2431
        %v2686 = vsub.f32 %v2095, %v2435
        %v2687 = vsub.f32 %v2097, %v2439
        %v2688 = vsub.f32 %v1746, %v2427
        %v2689 = vsub.f32 %v1748, %v2431
        %v2690 = vsub.f32 %v2099, %v2435
        %v2691 = vsub.f32 %v2101, %v2439
        %v2692 = vsub.f32 %v1752, %v2427
        %v2693 = vsub.f32 %v1754, %v2431
        %v2694 = vsub.f32 %v2105, %v2435
        %v2695 = vsub.f32 %v2107, %v2439
        %v2696 = vsub.f32 %v1756, %v2427
        %v2697 = vsub.f32 %v1758, %v2431
        %v2698 = vsub.f32 %v2109, %v2435
        %v2699 = vsub.f32 %v2111, %v2439
        %v2700 = vmul.f32 %v2444, 1.442695
        %v2701 = vpow.pop %v2700
        %v2702 = vmul.f32 %v2445, 1.442695
        %v2703 = vpow.pop %v2702
        %v2704 = vmul.f32 %v2446, 1.442695
        %v2705 = vpow.pop %v2704
        %v2706 = vmul.f32 %v2447, 1.442695
        %v2707 = vpow.pop %v2706
        %v2708 = vmul.f32 %v2448, 1.442695
        %v2709 = vpow.pop %v2708
        %v2710 = vmul.f32 %v2449, 1.442695
        %v2711 = vpow.pop %v2710
        %v2712 = vmul.f32 %v2450, 1.442695
        %v2713 = vpow.pop %v2712
        %v2714 = vmul.f32 %v2451, 1.442695
        %v2715 = vpow.pop %v2714
        %v2716 = vmul.f32 %v2452, 1.442695
        %v2717 = vpow.pop %v2716
        %v2718 = vmul.f32 %v2453, 1.442695
        %v2719 = vpow.pop %v2718
        %v2720 = vmul.f32 %v2454, 1.442695
        %v2721 = vpow.pop %v2720
        %v2722 = vmul.f32 %v2455, 1.442695
        %v2723 = vpow.pop %v2722
        %v2724 = vmul.f32 %v2456, 1.442695
        %v2725 = vpow.pop %v2724
        %v2726 = vmul.f32 %v2457, 1.442695
        %v2727 = vpow.pop %v2726
        %v2728 = vmul.f32 %v2458, 1.442695
        %v2729 = vpow.pop %v2728
        %v2730 = vmul.f32 %v2459, 1.442695
        %v2731 = vpow.pop %v2730
        %v2732 = vmul.f32 %v2460, 1.442695
        %v2733 = vpow.pop %v2732
        %v2734 = vmul.f32 %v2461, 1.442695
        %v2735 = vpow.pop %v2734
        %v2736 = vmul.f32 %v2462, 1.442695
        %v2737 = vpow.pop %v2736
        %v2738 = vmul.f32 %v2463, 1.442695
        %v2739 = vpow.pop %v2738
        %v2740 = vmul.f32 %v2464, 1.442695
        %v2741 = vpow.pop %v2740
        %v2742 = vmul.f32 %v2465, 1.442695
        %v2743 = vpow.pop %v2742
        %v2744 = vmul.f32 %v2466, 1.442695
        %v2745 = vpow.pop %v2744
        %v2746 = vmul.f32 %v2467, 1.442695
        %v2747 = vpow.pop %v2746
        %v2748 = vmul.f32 %v2468, 1.442695
        %v2749 = vpow.pop %v2748
        %v2750 = vmul.f32 %v2469, 1.442695
        %v2751 = vpow.pop %v2750
        %v2752 = vmul.f32 %v2470, 1.442695
        %v2753 = vpow.pop %v2752
        %v2754 = vmul.f32 %v2471, 1.442695
        %v2755 = vpow.pop %v2754
        %v2756 = vmul.f32 %v2472, 1.442695
        %v2757 = vpow.pop %v2756
        %v2758 = vmul.f32 %v2473, 1.442695
        %v2759 = vpow.pop %v2758
        %v2760 = vmul.f32 %v2474, 1.442695
        %v2761 = vpow.pop %v2760
        %v2762 = vmul.f32 %v2475, 1.442695
        %v2763 = vpow.pop %v2762
        %v2764 = vmul.f32 %v2476, 1.442695
        %v2765 = vpow.pop %v2764
        %v2766 = vmul.f32 %v2477, 1.442695
        %v2767 = vpow.pop %v2766
        %v2768 = vmul.f32 %v2478, 1.442695
        %v2769 = vpow.pop %v2768
        %v2770 = vmul.f32 %v2479, 1.442695
        %v2771 = vpow.pop %v2770
        %v2772 = vmul.f32 %v2480, 1.442695
        %v2773 = vpow.pop %v2772
        %v2774 = vmul.f32 %v2481, 1.442695
        %v2775 = vpow.pop %v2774
        %v2776 = vmul.f32 %v2482, 1.442695
        %v2777 = vpow.pop %v2776
        %v2778 = vmul.f32 %v2483, 1.442695
        %v2779 = vpow.pop %v2778
        %v2780 = vmul.f32 %v2484, 1.442695
        %v2781 = vpow.pop %v2780
        %v2782 = vmul.f32 %v2485, 1.442695
        %v2783 = vpow.pop %v2782
        %v2784 = vmul.f32 %v2486, 1.442695
        %v2785 = vpow.pop %v2784
        %v2786 = vmul.f32 %v2487, 1.442695
        %v2787 = vpow.pop %v2786
        %v2788 = vmul.f32 %v2488, 1.442695
        %v2789 = vpow.pop %v2788
        %v2790 = vmul.f32 %v2489, 1.442695
        %v2791 = vpow.pop %v2790
        %v2792 = vmul.f32 %v2490, 1.442695
        %v2793 = vpow.pop %v2792
        %v2794 = vmul.f32 %v2491, 1.442695
        %v2795 = vpow.pop %v2794
        %v2796 = vmul.f32 %v2492, 1.442695
        %v2797 = vpow.pop %v2796
        %v2798 = vmul.f32 %v2493, 1.442695
        %v2799 = vpow.pop %v2798
        %v2800 = vmul.f32 %v2494, 1.442695
        %v2801 = vpow.pop %v2800
        %v2802 = vmul.f32 %v2495, 1.442695
        %v2803 = vpow.pop %v2802
        %v2804 = vmul.f32 %v2496, 1.442695
        %v2805 = vpow.pop %v2804
        %v2806 = vmul.f32 %v2497, 1.442695
        %v2807 = vpow.pop %v2806
        %v2808 = vmul.f32 %v2498, 1.442695
        %v2809 = vpow.pop %v2808
        %v2810 = vmul.f32 %v2499, 1.442695
        %v2811 = vpow.pop %v2810
        %v2812 = vmul.f32 %v2500, 1.442695
        %v2813 = vpow.pop %v2812
        %v2814 = vmul.f32 %v2501, 1.442695
        %v2815 = vpow.pop %v2814
        %v2816 = vmul.f32 %v2502, 1.442695
        %v2817 = vpow.pop %v2816
        %v2818 = vmul.f32 %v2503, 1.442695
        %v2819 = vpow.pop %v2818
        %v2820 = vmul.f32 %v2504, 1.442695
        %v2821 = vpow.pop %v2820
        %v2822 = vmul.f32 %v2505, 1.442695
        %v2823 = vpow.pop %v2822
        %v2824 = vmul.f32 %v2506, 1.442695
        %v2825 = vpow.pop %v2824
        %v2826 = vmul.f32 %v2507, 1.442695
        %v2827 = vpow.pop %v2826
        %v2828 = vmul.f32 %v2508, 1.442695
        %v2829 = vpow.pop %v2828
        %v2830 = vmul.f32 %v2509, 1.442695
        %v2831 = vpow.pop %v2830
        %v2832 = vmul.f32 %v2510, 1.442695
        %v2833 = vpow.pop %v2832
        %v2834 = vmul.f32 %v2511, 1.442695
        %v2835 = vpow.pop %v2834
        %v2836 = vmul.f32 %v2512, 1.442695
        %v2837 = vpow.pop %v2836
        %v2838 = vmul.f32 %v2513, 1.442695
        %v2839 = vpow.pop %v2838
        %v2840 = vmul.f32 %v2514, 1.442695
        %v2841 = vpow.pop %v2840
        %v2842 = vmul.f32 %v2515, 1.442695
        %v2843 = vpow.pop %v2842
        %v2844 = vmul.f32 %v2516, 1.442695
        %v2845 = vpow.pop %v2844
        %v2846 = vmul.f32 %v2517, 1.442695
        %v2847 = vpow.pop %v2846
        %v2848 = vmul.f32 %v2518, 1.442695
        %v2849 = vpow.pop %v2848
        %v2850 = vmul.f32 %v2519, 1.442695
        %v2851 = vpow.pop %v2850
        %v2852 = vmul.f32 %v2520, 1.442695
        %v2853 = vpow.pop %v2852
        %v2854 = vmul.f32 %v2521, 1.442695
        %v2855 = vpow.pop %v2854
        %v2856 = vmul.f32 %v2522, 1.442695
        %v2857 = vpow.pop %v2856
        %v2858 = vmul.f32 %v2523, 1.442695
        %v2859 = vpow.pop %v2858
        %v2860 = vmul.f32 %v2524, 1.442695
        %v2861 = vpow.pop %v2860
        %v2862 = vmul.f32 %v2525, 1.442695
        %v2863 = vpow.pop %v2862
        %v2864 = vmul.f32 %v2526, 1.442695
        %v2865 = vpow.pop %v2864
        %v2866 = vmul.f32 %v2527, 1.442695
        %v2867 = vpow.pop %v2866
        %v2868 = vmul.f32 %v2528, 1.442695
        %v2869 = vpow.pop %v2868
        %v2870 = vmul.f32 %v2529, 1.442695
        %v2871 = vpow.pop %v2870
        %v2872 = vmul.f32 %v2530, 1.442695
        %v2873 = vpow.pop %v2872
        %v2874 = vmul.f32 %v2531, 1.442695
        %v2875 = vpow.pop %v2874
        %v2876 = vmul.f32 %v2532, 1.442695
        %v2877 = vpow.pop %v2876
        %v2878 = vmul.f32 %v2533, 1.442695
        %v2879 = vpow.pop %v2878
        %v2880 = vmul.f32 %v2534, 1.442695
        %v2881 = vpow.pop %v2880
        %v2882 = vmul.f32 %v2535, 1.442695
        %v2883 = vpow.pop %v2882
        %v2884 = vmul.f32 %v2536, 1.442695
        %v2885 = vpow.pop %v2884
        %v2886 = vmul.f32 %v2537, 1.442695
        %v2887 = vpow.pop %v2886
        %v2888 = vmul.f32 %v2538, 1.442695
        %v2889 = vpow.pop %v2888
        %v2890 = vmul.f32 %v2539, 1.442695
        %v2891 = vpow.pop %v2890
        %v2892 = vmul.f32 %v2540, 1.442695
        %v2893 = vpow.pop %v2892
        %v2894 = vmul.f32 %v2541, 1.442695
        %v2895 = vpow.pop %v2894
        %v2896 = vmul.f32 %v2542, 1.442695
        %v2897 = vpow.pop %v2896
        %v2898 = vmul.f32 %v2543, 1.442695
        %v2899 = vpow.pop %v2898
        %v2900 = vmul.f32 %v2544, 1.442695
        %v2901 = vpow.pop %v2900
        %v2902 = vmul.f32 %v2545, 1.442695
        %v2903 = vpow.pop %v2902
        %v2904 = vmul.f32 %v2546, 1.442695
        %v2905 = vpow.pop %v2904
        %v2906 = vmul.f32 %v2547, 1.442695
        %v2907 = vpow.pop %v2906
        %v2908 = vmul.f32 %v2548, 1.442695
        %v2909 = vpow.pop %v2908
        %v2910 = vmul.f32 %v2549, 1.442695
        %v2911 = vpow.pop %v2910
        %v2912 = vmul.f32 %v2550, 1.442695
        %v2913 = vpow.pop %v2912
        %v2914 = vmul.f32 %v2551, 1.442695
        %v2915 = vpow.pop %v2914
        %v2916 = vmul.f32 %v2552, 1.442695
        %v2917 = vpow.pop %v2916
        %v2918 = vmul.f32 %v2553, 1.442695
        %v2919 = vpow.pop %v2918
        %v2920 = vmul.f32 %v2554, 1.442695
        %v2921 = vpow.pop %v2920
        %v2922 = vmul.f32 %v2555, 1.442695
        %v2923 = vpow.pop %v2922
        %v2924 = vmul.f32 %v2556, 1.442695
        %v2925 = vpow.pop %v2924
        %v2926 = vmul.f32 %v2557, 1.442695
        %v2927 = vpow.pop %v2926
        %v2928 = vmul.f32 %v2558, 1.442695
        %v2929 = vpow.pop %v2928
        %v2930 = vmul.f32 %v2559, 1.442695
        %v2931 = vpow.pop %v2930
        %v2932 = vmul.f32 %v2560, 1.442695
        %v2933 = vpow.pop %v2932
        %v2934 = vmul.f32 %v2561, 1.442695
        %v2935 = vpow.pop %v2934
        %v2936 = vmul.f32 %v2562, 1.442695
        %v2937 = vpow.pop %v2936
        %v2938 = vmul.f32 %v2563, 1.442695
        %v2939 = vpow.pop %v2938
        %v2940 = vmul.f32 %v2564, 1.442695
        %v2941 = vpow.pop %v2940
        %v2942 = vmul.f32 %v2565, 1.442695
        %v2943 = vpow.pop %v2942
        %v2944 = vmul.f32 %v2566, 1.442695
        %v2945 = vpow.pop %v2944
        %v2946 = vmul.f32 %v2567, 1.442695
        %v2947 = vpow.pop %v2946
        %v2948 = vmul.f32 %v2568, 1.442695
        %v2949 = vpow.pop %v2948
        %v2950 = vmul.f32 %v2569, 1.442695
        %v2951 = vpow.pop %v2950
        %v2952 = vmul.f32 %v2570, 1.442695
        %v2953 = vpow.pop %v2952
        %v2954 = vmul.f32 %v2571, 1.442695
        %v2955 = vpow.pop %v2954
        %v2956 = vmul.f32 %v2572, 1.442695
        %v2957 = vpow.pop %v2956
        %v2958 = vmul.f32 %v2573, 1.442695
        %v2959 = vpow.pop %v2958
        %v2960 = vmul.f32 %v2574, 1.442695
        %v2961 = vpow.pop %v2960
        %v2962 = vmul.f32 %v2575, 1.442695
        %v2963 = vpow.pop %v2962
        %v2964 = vmul.f32 %v2576, 1.442695
        %v2965 = vpow.pop %v2964
        %v2966 = vmul.f32 %v2577, 1.442695
        %v2967 = vpow.pop %v2966
        %v2968 = vmul.f32 %v2578, 1.442695
        %v2969 = vpow.pop %v2968
        %v2970 = vmul.f32 %v2579, 1.442695
        %v2971 = vpow.pop %v2970
        %v2972 = vmul.f32 %v2580, 1.442695
        %v2973 = vpow.pop %v2972
        %v2974 = vmul.f32 %v2581, 1.442695
        %v2975 = vpow.pop %v2974
        %v2976 = vmul.f32 %v2582, 1.442695
        %v2977 = vpow.pop %v2976
        %v2978 = vmul.f32 %v2583, 1.442695
        %v2979 = vpow.pop %v2978
        %v2980 = vmul.f32 %v2584, 1.442695
        %v2981 = vpow.pop %v2980
        %v2982 = vmul.f32 %v2585, 1.442695
        %v2983 = vpow.pop %v2982
        %v2984 = vmul.f32 %v2586, 1.442695
        %v2985 = vpow.pop %v2984
        %v2986 = vmul.f32 %v2587, 1.442695
        %v2987 = vpow.pop %v2986
        %v2988 = vmul.f32 %v2588, 1.442695
        %v2989 = vpow.pop %v2988
        %v2990 = vmul.f32 %v2589, 1.442695
        %v2991 = vpow.pop %v2990
        %v2992 = vmul.f32 %v2590, 1.442695
        %v2993 = vpow.pop %v2992
        %v2994 = vmul.f32 %v2591, 1.442695
        %v2995 = vpow.pop %v2994
        %v2996 = vmul.f32 %v2592, 1.442695
        %v2997 = vpow.pop %v2996
        %v2998 = vmul.f32 %v2593, 1.442695
        %v2999 = vpow.pop %v2998
        %v3000 = vmul.f32 %v2594, 1.442695
        %v3001 = vpow.pop %v3000
        %v3002 = vmul.f32 %v2595, 1.442695
        %v3003 = vpow.pop %v3002
        %v3004 = vmul.f32 %v2596, 1.442695
        %v3005 = vpow.pop %v3004
        %v3006 = vmul.f32 %v2597, 1.442695
        %v3007 = vpow.pop %v3006
        %v3008 = vmul.f32 %v2598, 1.442695
        %v3009 = vpow.pop %v3008
        %v3010 = vmul.f32 %v2599, 1.442695
        %v3011 = vpow.pop %v3010
        %v3012 = vmul.f32 %v2600, 1.442695
        %v3013 = vpow.pop %v3012
        %v3014 = vmul.f32 %v2601, 1.442695
        %v3015 = vpow.pop %v3014
        %v3016 = vmul.f32 %v2602, 1.442695
        %v3017 = vpow.pop %v3016
        %v3018 = vmul.f32 %v2603, 1.442695
        %v3019 = vpow.pop %v3018
        %v3020 = vmul.f32 %v2604, 1.442695
        %v3021 = vpow.pop %v3020
        %v3022 = vmul.f32 %v2605, 1.442695
        %v3023 = vpow.pop %v3022
        %v3024 = vmul.f32 %v2606, 1.442695
        %v3025 = vpow.pop %v3024
        %v3026 = vmul.f32 %v2607, 1.442695
        %v3027 = vpow.pop %v3026
        %v3028 = vmul.f32 %v2608, 1.442695
        %v3029 = vpow.pop %v3028
        %v3030 = vmul.f32 %v2609, 1.442695
        %v3031 = vpow.pop %v3030
        %v3032 = vmul.f32 %v2610, 1.442695
        %v3033 = vpow.pop %v3032
        %v3034 = vmul.f32 %v2611, 1.442695
        %v3035 = vpow.pop %v3034
        %v3036 = vmul.f32 %v2612, 1.442695
        %v3037 = vpow.pop %v3036
        %v3038 = vmul.f32 %v2613, 1.442695
        %v3039 = vpow.pop %v3038
        %v3040 = vmul.f32 %v2614, 1.442695
        %v3041 = vpow.pop %v3040
        %v3042 = vmul.f32 %v2615, 1.442695
        %v3043 = vpow.pop %v3042
        %v3044 = vmul.f32 %v2616, 1.442695
        %v3045 = vpow.pop %v3044
        %v3046 = vmul.f32 %v2617, 1.442695
        %v3047 = vpow.pop %v3046
        %v3048 = vmul.f32 %v2618, 1.442695
        %v3049 = vpow.pop %v3048
        %v3050 = vmul.f32 %v2619, 1.442695
        %v3051 = vpow.pop %v3050
        %v3052 = vmul.f32 %v2620, 1.442695
        %v3053 = vpow.pop %v3052
        %v3054 = vmul.f32 %v2621, 1.442695
        %v3055 = vpow.pop %v3054
        %v3056 = vmul.f32 %v2622, 1.442695
        %v3057 = vpow.pop %v3056
        %v3058 = vmul.f32 %v2623, 1.442695
        %v3059 = vpow.pop %v3058
        %v3060 = vmul.f32 %v2624, 1.442695
        %v3061 = vpow.pop %v3060
        %v3062 = vmul.f32 %v2625, 1.442695
        %v3063 = vpow.pop %v3062
        %v3064 = vmul.f32 %v2626, 1.442695
        %v3065 = vpow.pop %v3064
        %v3066 = vmul.f32 %v2627, 1.442695
        %v3067 = vpow.pop %v3066
        %v3068 = vmul.f32 %v2628, 1.442695
        %v3069 = vpow.pop %v3068
        %v3070 = vmul.f32 %v2629, 1.442695
        %v3071 = vpow.pop %v3070
        %v3072 = vmul.f32 %v2630, 1.442695
        %v3073 = vpow.pop %v3072
        %v3074 = vmul.f32 %v2631, 1.442695
        %v3075 = vpow.pop %v3074
        %v3076 = vmul.f32 %v2632, 1.442695
        %v3077 = vpow.pop %v3076
        %v3078 = vmul.f32 %v2633, 1.442695
        %v3079 = vpow.pop %v3078
        %v3080 = vmul.f32 %v2634, 1.442695
        %v3081 = vpow.pop %v3080
        %v3082 = vmul.f32 %v2635, 1.442695
        %v3083 = vpow.pop %v3082
        %v3084 = vmul.f32 %v2636, 1.442695
        %v3085 = vpow.pop %v3084
        %v3086 = vmul.f32 %v2637, 1.442695
        %v3087 = vpow.pop %v3086
        %v3088 = vmul.f32 %v2638, 1.442695
        %v3089 = vpow.pop %v3088
        %v3090 = vmul.f32 %v2639, 1.442695
        %v3091 = vpow.pop %v3090
        %v3092 = vmul.f32 %v2640, 1.442695
        %v3093 = vpow.pop %v3092
        %v3094 = vmul.f32 %v2641, 1.442695
        %v3095 = vpow.pop %v3094
        %v3096 = vmul.f32 %v2642, 1.442695
        %v3097 = vpow.pop %v3096
        %v3098 = vmul.f32 %v2643, 1.442695
        %v3099 = vpow.pop %v3098
        %v3100 = vmul.f32 %v2644, 1.442695
        %v3101 = vpow.pop %v3100
        %v3102 = vmul.f32 %v2645, 1.442695
        %v3103 = vpow.pop %v3102
        %v3104 = vmul.f32 %v2646, 1.442695
        %v3105 = vpow.pop %v3104
        %v3106 = vmul.f32 %v2647, 1.442695
        %v3107 = vpow.pop %v3106
        %v3108 = vmul.f32 %v2648, 1.442695
        %v3109 = vpow.pop %v3108
        %v3110 = vmul.f32 %v2649, 1.442695
        %v3111 = vpow.pop %v3110
        %v3112 = vmul.f32 %v2650, 1.442695
        %v3113 = vpow.pop %v3112
        %v3114 = vmul.f32 %v2651, 1.442695
        %v3115 = vpow.pop %v3114
        %v3116 = vmul.f32 %v2652, 1.442695
        %v3117 = vpow.pop %v3116
        %v3118 = vmul.f32 %v2653, 1.442695
        %v3119 = vpow.pop %v3118
        %v3120 = vmul.f32 %v2654, 1.442695
        %v3121 = vpow.pop %v3120
        %v3122 = vmul.f32 %v2655, 1.442695
        %v3123 = vpow.pop %v3122
        %v3124 = vmul.f32 %v2656, 1.442695
        %v3125 = vpow.pop %v3124
        %v3126 = vmul.f32 %v2657, 1.442695
        %v3127 = vpow.pop %v3126
        %v3128 = vmul.f32 %v2658, 1.442695
        %v3129 = vpow.pop %v3128
        %v3130 = vmul.f32 %v2659, 1.442695
        %v3131 = vpow.pop %v3130
        %v3132 = vmul.f32 %v2660, 1.442695
        %v3133 = vpow.pop %v3132
        %v3134 = vmul.f32 %v2661, 1.442695
        %v3135 = vpow.pop %v3134
        %v3136 = vmul.f32 %v2662, 1.442695
        %v3137 = vpow.pop %v3136
        %v3138 = vmul.f32 %v2663, 1.442695
        %v3139 = vpow.pop %v3138
        %v3140 = vmul.f32 %v2664, 1.442695
        %v3141 = vpow.pop %v3140
        %v3142 = vmul.f32 %v2665, 1.442695
        %v3143 = vpow.pop %v3142
        %v3144 = vmul.f32 %v2666, 1.442695
        %v3145 = vpow.pop %v3144
        %v3146 = vmul.f32 %v2667, 1.442695
        %v3147 = vpow.pop %v3146
        %v3148 = vmul.f32 %v2668, 1.442695
        %v3149 = vpow.pop %v3148
        %v3150 = vmul.f32 %v2669, 1.442695
        %v3151 = vpow.pop %v3150
        %v3152 = vmul.f32 %v2670, 1.442695
        %v3153 = vpow.pop %v3152
        %v3154 = vmul.f32 %v2671, 1.442695
        %v3155 = vpow.pop %v3154
        %v3156 = vmul.f32 %v2672, 1.442695
        %v3157 = vpow.pop %v3156
        %v3158 = vmul.f32 %v2673, 1.442695
        %v3159 = vpow.pop %v3158
        %v3160 = vmul.f32 %v2674, 1.442695
        %v3161 = vpow.pop %v3160
        %v3162 = vmul.f32 %v2675, 1.442695
        %v3163 = vpow.pop %v3162
        %v3164 = vmul.f32 %v2676, 1.442695
        %v3165 = vpow.pop %v3164
        %v3166 = vmul.f32 %v2677, 1.442695
        %v3167 = vpow.pop %v3166
        %v3168 = vmul.f32 %v2678, 1.442695
        %v3169 = vpow.pop %v3168
        %v3170 = vmul.f32 %v2679, 1.442695
        %v3171 = vpow.pop %v3170
        %v3172 = vmul.f32 %v2680, 1.442695
        %v3173 = vpow.pop %v3172
        %v3174 = vmul.f32 %v2681, 1.442695
        %v3175 = vpow.pop %v3174
        %v3176 = vmul.f32 %v2682, 1.442695
        %v3177 = vpow.pop %v3176
        %v3178 = vmul.f32 %v2683, 1.442695
        %v3179 = vpow.pop %v3178
        %v3180 = vmul.f32 %v2684, 1.442695
        %v3181 = vpow.pop %v3180
        %v3182 = vmul.f32 %v2685, 1.442695
        %v3183 = vpow.pop %v3182
        %v3184 = vmul.f32 %v2686, 1.442695
        %v3185 = vpow.pop %v3184
        %v3186 = vmul.f32 %v2687, 1.442695
        %v3187 = vpow.pop %v3186
        %v3188 = vmul.f32 %v2688, 1.442695
        %v3189 = vpow.pop %v3188
        %v3190 = vmul.f32 %v2689, 1.442695
        %v3191 = vpow.pop %v3190
        %v3192 = vmul.f32 %v2690, 1.442695
        %v3193 = vpow.pop %v3192
        %v3194 = vmul.f32 %v2691, 1.442695
        %v3195 = vpow.pop %v3194
        %v3196 = vmul.f32 %v2692, 1.442695
        %v3197 = vpow.pop %v3196
        %v3198 = vmul.f32 %v2693, 1.442695
        %v3199 = vpow.pop %v3198
        %v3200 = vmul.f32 %v2694, 1.442695
        %v3201 = vpow.pop %v3200
        %v3202 = vmul.f32 %v2695, 1.442695
        %v3203 = vpow.pop %v3202
        %v3204 = vmul.f32 %v2696, 1.442695
        %v3205 = vpow.pop %v3204
        %v3206 = vmul.f32 %v2697, 1.442695
        %v3207 = vpow.pop %v3206
        %v3208 = vmul.f32 %v2698, 1.442695
        %v3209 = vpow.pop %v3208
        %v3210 = vmul.f32 %v2699, 1.442695
        %v3211 = vpow.pop %v3210
        %v3212 = vld [vmem:[#allocation4] sm:$0xf]
        %v3213 = vmul.f32 %v2422, %v3212
        %v3214 = vadd.f32 %v2701, %v2709
        %v3215 = vadd.f32 %v3214, %v2717
        %v3216 = vadd.f32 %v3215, %v2725
        %v3217 = vadd.f32 %v3216, %v2733
        %v3218 = vadd.f32 %v3217, %v2741
        %v3219 = vadd.f32 %v3218, %v2749
        %v3220 = vadd.f32 %v3219, %v2757
        %v3221 = vadd.f32 %v3220, %v2765
        %v3222 = vadd.f32 %v3221, %v2773
        %v3223 = vadd.f32 %v3222, %v2781
        %v3224 = vadd.f32 %v3223, %v2789
        %v3225 = vadd.f32 %v3224, %v2797
        %v3226 = vadd.f32 %v3225, %v2805
        %v3227 = vadd.f32 %v3226, %v2813
        %v3228 = vadd.f32 %v3227, %v2821
        %v3229 = vadd.f32 %v3228, %v2829
        %v3230 = vadd.f32 %v3229, %v2837
        %v3231 = vadd.f32 %v3230, %v2845
        %v3232 = vadd.f32 %v3231, %v2853
        %v3233 = vadd.f32 %v3232, %v2861
        %v3234 = vadd.f32 %v3233, %v2869
        %v3235 = vadd.f32 %v3234, %v2877
        %v3236 = vadd.f32 %v3235, %v2885
        %v3237 = vadd.f32 %v3236, %v2893
        %v3238 = vadd.f32 %v3237, %v2901
        %v3239 = vadd.f32 %v3238, %v2909
        %v3240 = vadd.f32 %v3239, %v2917
        %v3241 = vadd.f32 %v3240, %v2925
        %v3242 = vadd.f32 %v3241, %v2933
        %v3243 = vadd.f32 %v3242, %v2941
        %v3244 = vadd.f32 %v3243, %v2949
        %v3245 = vadd.f32 %v3244, %v2957
        %v3246 = vadd.f32 %v3245, %v2965
        %v3247 = vadd.f32 %v3246, %v2973
        %v3248 = vadd.f32 %v3247, %v2981
        %v3249 = vadd.f32 %v3248, %v2989
        %v3250 = vadd.f32 %v3249, %v2997
        %v3251 = vadd.f32 %v3250, %v3005
        %v3252 = vadd.f32 %v3251, %v3013
        %v3253 = vadd.f32 %v3252, %v3021
        %v3254 = vadd.f32 %v3253, %v3029
        %v3255 = vadd.f32 %v3254, %v3037
        %v3256 = vadd.f32 %v3255, %v3045
        %v3257 = vadd.f32 %v3256, %v3053
        %v3258 = vadd.f32 %v3257, %v3061
        %v3259 = vadd.f32 %v3258, %v3069
        %v3260 = vadd.f32 %v3259, %v3077
        %v3261 = vadd.f32 %v3260, %v3085
        %v3262 = vadd.f32 %v3261, %v3093
        %v3263 = vadd.f32 %v3262, %v3101
        %v3264 = vadd.f32 %v3263, %v3109
        %v3265 = vadd.f32 %v3264, %v3117
        %v3266 = vadd.f32 %v3265, %v3125
        %v3267 = vadd.f32 %v3266, %v3133
        %v3268 = vadd.f32 %v3267, %v3141
        %v3269 = vadd.f32 %v3268, %v3149
        %v3270 = vadd.f32 %v3269, %v3157
        %v3271 = vadd.f32 %v3270, %v3165
        %v3272 = vadd.f32 %v3271, %v3173
        %v3273 = vadd.f32 %v3272, %v3181
        %v3274 = vadd.f32 %v3273, %v3189
        %v3275 = vadd.f32 %v3274, %v3197
        %v3276 = vadd.f32 %v3275, %v3205
        %v3277 = vrot.slane %v3276, 4
        %v3278 = vadd.f32 %v3276, %v3277
        %v3279 = vrot.slane %v3278, 2
        %v3280 = vadd.f32 %v3278, %v3279
        %v3281 = vrot.slane %v3280, 1
        %v3282 = vadd.f32 %v3280, %v3281
        %v3283 = vadd.f32 %v2703, %v2711
        %v3284 = vadd.f32 %v3283, %v2719
        %v3285 = vadd.f32 %v3284, %v2727
        %v3286 = vadd.f32 %v3285, %v2735
        %v3287 = vadd.f32 %v3286, %v2743
        %v3288 = vadd.f32 %v3287, %v2751
        %v3289 = vadd.f32 %v3288, %v2759
        %v3290 = vadd.f32 %v3289, %v2767
        %v3291 = vadd.f32 %v3290, %v2775
        %v3292 = vadd.f32 %v3291, %v2783
        %v3293 = vadd.f32 %v3292, %v2791
        %v3294 = vadd.f32 %v3293, %v2799
        %v3295 = vadd.f32 %v3294, %v2807
        %v3296 = vadd.f32 %v3295, %v2815
        %v3297 = vadd.f32 %v3296, %v2823
        %v3298 = vadd.f32 %v3297, %v2831
        %v3299 = vadd.f32 %v3298, %v2839
        %v3300 = vadd.f32 %v3299, %v2847
        %v3301 = vadd.f32 %v3300, %v2855
        %v3302 = vadd.f32 %v3301, %v2863
        %v3303 = vadd.f32 %v3302, %v2871
        %v3304 = vadd.f32 %v3303, %v2879
        %v3305 = vadd.f32 %v3304, %v2887
        %v3306 = vadd.f32 %v3305, %v2895
        %v3307 = vadd.f32 %v3306, %v2903
        %v3308 = vadd.f32 %v3307, %v2911
        %v3309 = vadd.f32 %v3308, %v2919
        %v3310 = vadd.f32 %v3309, %v2927
        %v3311 = vadd.f32 %v3310, %v2935
        %v3312 = vadd.f32 %v3311, %v2943
        %v3313 = vadd.f32 %v3312, %v2951
        %v3314 = vadd.f32 %v3313, %v2959
        %v3315 = vadd.f32 %v3314, %v2967
        %v3316 = vadd.f32 %v3315, %v2975
        %v3317 = vadd.f32 %v3316, %v2983
        %v3318 = vadd.f32 %v3317, %v2991
        %v3319 = vadd.f32 %v3318, %v2999
        %v3320 = vadd.f32 %v3319, %v3007
        %v3321 = vadd.f32 %v3320, %v3015
        %v3322 = vadd.f32 %v3321, %v3023
        %v3323 = vadd.f32 %v3322, %v3031
        %v3324 = vadd.f32 %v3323, %v3039
        %v3325 = vadd.f32 %v3324, %v3047
        %v3326 = vadd.f32 %v3325, %v3055
        %v3327 = vadd.f32 %v3326, %v3063
        %v3328 = vadd.f32 %v3327, %v3071
        %v3329 = vadd.f32 %v3328, %v3079
        %v3330 = vadd.f32 %v3329, %v3087
        %v3331 = vadd.f32 %v3330, %v3095
        %v3332 = vadd.f32 %v3331, %v3103
        %v3333 = vadd.f32 %v3332, %v3111
        %v3334 = vadd.f32 %v3333, %v3119
        %v3335 = vadd.f32 %v3334, %v3127
        %v3336 = vadd.f32 %v3335, %v3135
        %v3337 = vadd.f32 %v3336, %v3143
        %v3338 = vadd.f32 %v3337, %v3151
        %v3339 = vadd.f32 %v3338, %v3159
        %v3340 = vadd.f32 %v3339, %v3167
        %v3341 = vadd.f32 %v3340, %v3175
        %v3342 = vadd.f32 %v3341, %v3183
        %v3343 = vadd.f32 %v3342, %v3191
        %v3344 = vadd.f32 %v3343, %v3199
        %v3345 = vadd.f32 %v3344, %v3207
        %v3346 = vrot.slane %v3345, 4
        %v3347 = vadd.f32 %v3345, %v3346
        %v3348 = vrot.slane %v3347, 2
        %v3349 = vadd.f32 %v3347, %v3348
        %v3350 = vrot.slane %v3349, 1
        %v3351 = vadd.f32 %v3349, %v3350
        %v3352 = vadd.f32 %v2705, %v2713
        %v3353 = vadd.f32 %v3352, %v2721
        %v3354 = vadd.f32 %v3353, %v2729
        %v3355 = vadd.f32 %v3354, %v2737
        %v3356 = vadd.f32 %v3355, %v2745
        %v3357 = vadd.f32 %v3356, %v2753
        %v3358 = vadd.f32 %v3357, %v2761
        %v3359 = vadd.f32 %v3358, %v2769
        %v3360 = vadd.f32 %v3359, %v2777
        %v3361 = vadd.f32 %v3360, %v2785
        %v3362 = vadd.f32 %v3361, %v2793
        %v3363 = vadd.f32 %v3362, %v2801
        %v3364 = vadd.f32 %v3363, %v2809
        %v3365 = vadd.f32 %v3364, %v2817
        %v3366 = vadd.f32 %v3365, %v2825
        %v3367 = vadd.f32 %v3366, %v2833
        %v3368 = vadd.f32 %v3367, %v2841
        %v3369 = vadd.f32 %v3368, %v2849
        %v3370 = vadd.f32 %v3369, %v2857
        %v3371 = vadd.f32 %v3370, %v2865
        %v3372 = vadd.f32 %v3371, %v2873
        %v3373 = vadd.f32 %v3372, %v2881
        %v3374 = vadd.f32 %v3373, %v2889
        %v3375 = vadd.f32 %v3374, %v2897
        %v3376 = vadd.f32 %v3375, %v2905
        %v3377 = vadd.f32 %v3376, %v2913
        %v3378 = vadd.f32 %v3377, %v2921
        %v3379 = vadd.f32 %v3378, %v2929
        %v3380 = vadd.f32 %v3379, %v2937
        %v3381 = vadd.f32 %v3380, %v2945
        %v3382 = vadd.f32 %v3381, %v2953
        %v3383 = vadd.f32 %v3382, %v2961
        %v3384 = vadd.f32 %v3383, %v2969
        %v3385 = vadd.f32 %v3384, %v2977
        %v3386 = vadd.f32 %v3385, %v2985
        %v3387 = vadd.f32 %v3386, %v2993
        %v3388 = vadd.f32 %v3387, %v3001
        %v3389 = vadd.f32 %v3388, %v3009
        %v3390 = vadd.f32 %v3389, %v3017
        %v3391 = vadd.f32 %v3390, %v3025
        %v3392 = vadd.f32 %v3391, %v3033
        %v3393 = vadd.f32 %v3392, %v3041
        %v3394 = vadd.f32 %v3393, %v3049
        %v3395 = vadd.f32 %v3394, %v3057
        %v3396 = vadd.f32 %v3395, %v3065
        %v3397 = vadd.f32 %v3396, %v3073
        %v3398 = vadd.f32 %v3397, %v3081
        %v3399 = vadd.f32 %v3398, %v3089
        %v3400 = vadd.f32 %v3399, %v3097
        %v3401 = vadd.f32 %v3400, %v3105
        %v3402 = vadd.f32 %v3401, %v3113
        %v3403 = vadd.f32 %v3402, %v3121
        %v3404 = vadd.f32 %v3403, %v3129
        %v3405 = vadd.f32 %v3404, %v3137
        %v3406 = vadd.f32 %v3405, %v3145
        %v3407 = vadd.f32 %v3406, %v3153
        %v3408 = vadd.f32 %v3407, %v3161
        %v3409 = vadd.f32 %v3408, %v3169
        %v3410 = vadd.f32 %v3409, %v3177
        %v3411 = vadd.f32 %v3410, %v3185
        %v3412 = vadd.f32 %v3411, %v3193
        %v3413 = vadd.f32 %v3412, %v3201
        %v3414 = vadd.f32 %v3413, %v3209
        %v3415 = vrot.slane %v3414, 4
        %v3416 = vadd.f32 %v3414, %v3415
        %v3417 = vrot.slane %v3416, 2
        %v3418 = vadd.f32 %v3416, %v3417
        %v3419 = vrot.slane %v3418, 1
        %v3420 = vadd.f32 %v3418, %v3419
        %v3421 = vadd.f32 %v2707, %v2715
        %v3422 = vadd.f32 %v3421, %v2723
        %v3423 = vadd.f32 %v3422, %v2731
        %v3424 = vadd.f32 %v3423, %v2739
        %v3425 = vadd.f32 %v3424, %v2747
        %v3426 = vadd.f32 %v3425, %v2755
        %v3427 = vadd.f32 %v3426, %v2763
        %v3428 = vadd.f32 %v3427, %v2771
        %v3429 = vadd.f32 %v3428, %v2779
        %v3430 = vadd.f32 %v3429, %v2787
        %v3431 = vadd.f32 %v3430, %v2795
        %v3432 = vadd.f32 %v3431, %v2803
        %v3433 = vadd.f32 %v3432, %v2811
        %v3434 = vadd.f32 %v3433, %v2819
        %v3435 = vadd.f32 %v3434, %v2827
        %v3436 = vadd.f32 %v3435, %v2835
        %v3437 = vadd.f32 %v3436, %v2843
        %v3438 = vadd.f32 %v3437, %v2851
        %v3439 = vadd.f32 %v3438, %v2859
        %v3440 = vadd.f32 %v3439, %v2867
        %v3441 = vadd.f32 %v3440, %v2875
        %v3442 = vadd.f32 %v3441, %v2883
        %v3443 = vadd.f32 %v3442, %v2891
        %v3444 = vadd.f32 %v3443, %v2899
        %v3445 = vadd.f32 %v3444, %v2907
        %v3446 = vadd.f32 %v3445, %v2915
        %v3447 = vadd.f32 %v3446, %v2923
        %v3448 = vadd.f32 %v3447, %v2931
        %v3449 = vadd.f32 %v3448, %v2939
        %v3450 = vadd.f32 %v3449, %v2947
        %v3451 = vadd.f32 %v3450, %v2955
        %v3452 = vadd.f32 %v3451, %v2963
        %v3453 = vadd.f32 %v3452, %v2971
        %v3454 = vadd.f32 %v3453, %v2979
        %v3455 = vadd.f32 %v3454, %v2987
        %v3456 = vadd.f32 %v3455, %v2995
        %v3457 = vadd.f32 %v3456, %v3003
        %v3458 = vadd.f32 %v3457, %v3011
        %v3459 = vadd.f32 %v3458, %v3019
        %v3460 = vadd.f32 %v3459, %v3027
        %v3461 = vadd.f32 %v3460, %v3035
        %v3462 = vadd.f32 %v3461, %v3043
        %v3463 = vadd.f32 %v3462, %v3051
        %v3464 = vadd.f32 %v3463, %v3059
        %v3465 = vadd.f32 %v3464, %v3067
        %v3466 = vadd.f32 %v3465, %v3075
        %v3467 = vadd.f32 %v3466, %v3083
        %v3468 = vadd.f32 %v3467, %v3091
        %v3469 = vadd.f32 %v3468, %v3099
        %v3470 = vadd.f32 %v3469, %v3107
        %v3471 = vadd.f32 %v3470, %v3115
        %v3472 = vadd.f32 %v3471, %v3123
        %v3473 = vadd.f32 %v3472, %v3131
        %v3474 = vadd.f32 %v3473, %v3139
        %v3475 = vadd.f32 %v3474, %v3147
        %v3476 = vadd.f32 %v3475, %v3155
        %v3477 = vadd.f32 %v3476, %v3163
        %v3478 = vadd.f32 %v3477, %v3171
        %v3479 = vadd.f32 %v3478, %v3179
        %v3480 = vadd.f32 %v3479, %v3187
        %v3481 = vadd.f32 %v3480, %v3195
        %v3482 = vadd.f32 %v3481, %v3203
        %v3483 = vadd.f32 %v3482, %v3211
        %v3484 = vrot.slane %v3483, 4
        %v3485 = vadd.f32 %v3483, %v3484
        %v3486 = vrot.slane %v3485, 2
        %v3487 = vadd.f32 %v3485, %v3486
        %v3488 = vrot.slane %v3487, 1
        %v3489 = vadd.f32 %v3487, %v3488
        %v3494 = vcombine.low %v3282, %v3351
        %v3495 = vcombine.low %v3420, %v3489
        %v3497 = vunpack.c.l.s4 1966171168
        %v3498 = vunpack.c.0.s8 %v3497
        %v3499 = vlaneseq
        %v3500 = vshrl.u32 %v3499, 7
        %v3501 = vsub.s32 %v3498, %v3500
        %v3502 = vrot.slane %v3494, %v3501
        %v3504 = vunpack.c.l.s4 1966171168
        %v3505 = vunpack.c.0.s8 %v3504
        %v3506 = vlaneseq
        %v3507 = vshrl.u32 %v3506, 7
        %v3508 = vsub.s32 %v3505, %v3507
        %v3509 = vrot.slane %v3495, %v3508
        %v3510 = vcombine.low %v3502, %v3509
        %v3512 = vunpack.c.l.s4 1966171168
        %v3513 = vunpack.c.0.s8 %v3512
        %v3514 = vlaneseq
        %v3515 = vshrl.u32 %v3514, 7
        %v3516 = vsub.s32 %v3513, %v3515
        %v3517 = vrot.slane %v3510, %v3516
        %v3519 = vadd.f32 %v3213, %v3517
        %v3520 = vlaneseq
        %vm3521 = vcmp.ge.s32.totalorder %v3520, 0
        %vm3522 = vcmp.lt.s32.totalorder %v3520, 512
        %vm3523 = vmand %vm3521, %vm3522
        %3524 = vst.msk [vmem:[#allocation4] sm:$0xf] %vm3523, %v3519
        %v3525 = vld [vmem:[#allocation5] sm:$0xff]
        %v3526 = vld [vmem:[#allocation5 + $0x8] sm:$0xff]
        %v3528 = vlaneseq
        %v3529 = vshrl.u32 %v3528, 7
        %v3530 = vsub.s32 0, %v3529
        %v3531 = vrot.slane %v2422, %v3530
        %v3532 = vlaneseq
        %v3533 = vshrl.u32 %v3532, 7
        %v3534 = vsub.s32 1, %v3533
        %v3535 = vrot.slane %v2422, %v3534
        %v3536 = vlaneseq
        %v3537 = vshrl.u32 %v3536, 7
        %v3538 = vsub.s32 2, %v3537
        %v3539 = vrot.slane %v2422, %v3538
        %v3540 = vlaneseq
        %v3541 = vshrl.u32 %v3540, 7
        %v3542 = vsub.s32 3, %v3541
        %v3543 = vrot.slane %v2422, %v3542
        %v3550 = vcombine.high %v3525, %v3525
        %v3551 = vcombine.high %v3526, %v3526
        %v3554 = vmul.f32 %v3531, %v3525
        %v3555 = vmul.f32 %v3535, %v3550
        %v3556 = vmul.f32 %v3539, %v3526
        %v3557 = vmul.f32 %v3543, %v3551
        %v3558 = vpack.c.bf16 %v869, %v869
        %v3559 = vpack.c.bf16 %v871, %v871
        %v3560 = vpack.c.bf16 %v940, %v940
        %v3561 = vpack.c.bf16 %v942, %v942
        %v3562 = vpack.c.bf16 %v2709, %v2701
        %v3563 = vpack.c.bf16 %v2711, %v2703
        %v3564 = vpack.c.bf16 %v2713, %v2705
        %v3565 = vpack.c.bf16 %v2715, %v2707
        %v3566 = vpack.c.bf16 %v2725, %v2717
        %v3567 = vpack.c.bf16 %v2727, %v2719
        %v3568 = vpack.c.bf16 %v2729, %v2721
        %v3569 = vpack.c.bf16 %v2731, %v2723
        %v3570 = vpack.c.bf16 %v2741, %v2733
        %v3571 = vpack.c.bf16 %v2743, %v2735
        %v3572 = vpack.c.bf16 %v2745, %v2737
        %v3573 = vpack.c.bf16 %v2747, %v2739
        %v3574 = vpack.c.bf16 %v2757, %v2749
        %v3575 = vpack.c.bf16 %v2759, %v2751
        %v3576 = vpack.c.bf16 %v2761, %v2753
        %v3577 = vpack.c.bf16 %v2763, %v2755
        %v3578 = vpack.c.bf16 %v2773, %v2765
        %v3579 = vpack.c.bf16 %v2775, %v2767
        %v3580 = vpack.c.bf16 %v2777, %v2769
        %v3581 = vpack.c.bf16 %v2779, %v2771
        %v3582 = vpack.c.bf16 %v2789, %v2781
        %v3583 = vpack.c.bf16 %v2791, %v2783
        %v3584 = vpack.c.bf16 %v2793, %v2785
        %v3585 = vpack.c.bf16 %v2795, %v2787
        %v3586 = vpack.c.bf16 %v2805, %v2797
        %v3587 = vpack.c.bf16 %v2807, %v2799
        %v3588 = vpack.c.bf16 %v2809, %v2801
        %v3589 = vpack.c.bf16 %v2811, %v2803
        %v3590 = vpack.c.bf16 %v2821, %v2813
        %v3591 = vpack.c.bf16 %v2823, %v2815
        %v3592 = vpack.c.bf16 %v2825, %v2817
        %v3593 = vpack.c.bf16 %v2827, %v2819
        %v3594 = vpack.c.bf16 %v2837, %v2829
        %v3595 = vpack.c.bf16 %v2839, %v2831
        %v3596 = vpack.c.bf16 %v2841, %v2833
        %v3597 = vpack.c.bf16 %v2843, %v2835
        %v3598 = vpack.c.bf16 %v2853, %v2845
        %v3599 = vpack.c.bf16 %v2855, %v2847
        %v3600 = vpack.c.bf16 %v2857, %v2849
        %v3601 = vpack.c.bf16 %v2859, %v2851
        %v3602 = vpack.c.bf16 %v2869, %v2861
        %v3603 = vpack.c.bf16 %v2871, %v2863
        %v3604 = vpack.c.bf16 %v2873, %v2865
        %v3605 = vpack.c.bf16 %v2875, %v2867
        %v3606 = vpack.c.bf16 %v2885, %v2877
        %v3607 = vpack.c.bf16 %v2887, %v2879
        %v3608 = vpack.c.bf16 %v2889, %v2881
        %v3609 = vpack.c.bf16 %v2891, %v2883
        %v3610 = vpack.c.bf16 %v2901, %v2893
        %v3611 = vpack.c.bf16 %v2903, %v2895
        %v3612 = vpack.c.bf16 %v2905, %v2897
        %v3613 = vpack.c.bf16 %v2907, %v2899
        %v3614 = vpack.c.bf16 %v2917, %v2909
        %v3615 = vpack.c.bf16 %v2919, %v2911
        %v3616 = vpack.c.bf16 %v2921, %v2913
        %v3617 = vpack.c.bf16 %v2923, %v2915
        %v3618 = vpack.c.bf16 %v2933, %v2925
        %v3619 = vpack.c.bf16 %v2935, %v2927
        %v3620 = vpack.c.bf16 %v2937, %v2929
        %v3621 = vpack.c.bf16 %v2939, %v2931
        %v3622 = vpack.c.bf16 %v2949, %v2941
        %v3623 = vpack.c.bf16 %v2951, %v2943
        %v3624 = vpack.c.bf16 %v2953, %v2945
        %v3625 = vpack.c.bf16 %v2955, %v2947
        %v3626 = vpack.c.bf16 %v2965, %v2957
        %v3627 = vpack.c.bf16 %v2967, %v2959
        %v3628 = vpack.c.bf16 %v2969, %v2961
        %v3629 = vpack.c.bf16 %v2971, %v2963
        %v3630 = vpack.c.bf16 %v2981, %v2973
        %v3631 = vpack.c.bf16 %v2983, %v2975
        %v3632 = vpack.c.bf16 %v2985, %v2977
        %v3633 = vpack.c.bf16 %v2987, %v2979
        %v3634 = vpack.c.bf16 %v2997, %v2989
        %v3635 = vpack.c.bf16 %v2999, %v2991
        %v3636 = vpack.c.bf16 %v3001, %v2993
        %v3637 = vpack.c.bf16 %v3003, %v2995
        %v3638 = vpack.c.bf16 %v3013, %v3005
        %v3639 = vpack.c.bf16 %v3015, %v3007
        %v3640 = vpack.c.bf16 %v3017, %v3009
        %v3641 = vpack.c.bf16 %v3019, %v3011
        %v3642 = vpack.c.bf16 %v3029, %v3021
        %v3643 = vpack.c.bf16 %v3031, %v3023
        %v3644 = vpack.c.bf16 %v3033, %v3025
        %v3645 = vpack.c.bf16 %v3035, %v3027
        %v3646 = vpack.c.bf16 %v3045, %v3037
        %v3647 = vpack.c.bf16 %v3047, %v3039
        %v3648 = vpack.c.bf16 %v3049, %v3041
        %v3649 = vpack.c.bf16 %v3051, %v3043
        %v3650 = vpack.c.bf16 %v3061, %v3053
        %v3651 = vpack.c.bf16 %v3063, %v3055
        %v3652 = vpack.c.bf16 %v3065, %v3057
        %v3653 = vpack.c.bf16 %v3067, %v3059
        %v3654 = vpack.c.bf16 %v3077, %v3069
        %v3655 = vpack.c.bf16 %v3079, %v3071
        %v3656 = vpack.c.bf16 %v3081, %v3073
        %v3657 = vpack.c.bf16 %v3083, %v3075
        %v3658 = vpack.c.bf16 %v3093, %v3085
        %v3659 = vpack.c.bf16 %v3095, %v3087
        %v3660 = vpack.c.bf16 %v3097, %v3089
        %v3661 = vpack.c.bf16 %v3099, %v3091
        %v3662 = vpack.c.bf16 %v3109, %v3101
        %v3663 = vpack.c.bf16 %v3111, %v3103
        %v3664 = vpack.c.bf16 %v3113, %v3105
        %v3665 = vpack.c.bf16 %v3115, %v3107
        %v3666 = vpack.c.bf16 %v3125, %v3117
        %v3667 = vpack.c.bf16 %v3127, %v3119
        %v3668 = vpack.c.bf16 %v3129, %v3121
        %v3669 = vpack.c.bf16 %v3131, %v3123
        %v3670 = vpack.c.bf16 %v3141, %v3133
        %v3671 = vpack.c.bf16 %v3143, %v3135
        %v3672 = vpack.c.bf16 %v3145, %v3137
        %v3673 = vpack.c.bf16 %v3147, %v3139
        %v3674 = vpack.c.bf16 %v3157, %v3149
        %v3675 = vpack.c.bf16 %v3159, %v3151
        %v3676 = vpack.c.bf16 %v3161, %v3153
        %v3677 = vpack.c.bf16 %v3163, %v3155
        %v3678 = vpack.c.bf16 %v3173, %v3165
        %v3679 = vpack.c.bf16 %v3175, %v3167
        %v3680 = vpack.c.bf16 %v3177, %v3169
        %v3681 = vpack.c.bf16 %v3179, %v3171
        %v3682 = vpack.c.bf16 %v3189, %v3181
        %v3683 = vpack.c.bf16 %v3191, %v3183
        %v3684 = vpack.c.bf16 %v3193, %v3185
        %v3685 = vpack.c.bf16 %v3195, %v3187
        %v3686 = vpack.c.bf16 %v3205, %v3197
        %v3687 = vpack.c.bf16 %v3207, %v3199
        %v3688 = vpack.c.bf16 %v3209, %v3201
        %v3689 = vpack.c.bf16 %v3211, %v3203
        %3690 = vmatprep.subr.bf16.mxu0 %v3591
        %3691 = vmatpush1.bf16.msra.mxu0 %v3590
        %3692 = vmatprep.subr.bf16.mxu0 %v3587
        %3693 = vmatpush1.bf16.msra.mxu0 %v3586
        %3694 = vmatprep.subr.bf16.mxu0 %v3583
        %3695 = vmatpush1.bf16.msra.mxu0 %v3582
        %3696 = vmatprep.subr.bf16.mxu0 %v3579
        %3697 = vmatpush1.bf16.msra.mxu0 %v3578
        %3698 = vmatprep.subr.bf16.mxu0 %v3575
        %3699 = vmatpush1.bf16.msra.mxu0 %v3574
        %3700 = vmatprep.subr.bf16.mxu0 %v3571
        %3701 = vmatpush1.bf16.msra.mxu0 %v3570
        %3702 = vmatprep.subr.bf16.mxu0 %v3567
        %3703 = vmatpush1.bf16.msra.mxu0 %v3566
        %3704 = vmatprep.subr.bf16.mxu0 %v3563
        %3705 = vmatpush1.bf16.msra.mxu0 %v3562
        %3706 = vmatprep.subr.bf16.mxu0 %v3623
        %3707 = vmatpush2.bf16.msra.mxu0 %v3622
        %3708 = vmatprep.subr.bf16.mxu0 %v3619
        %3709 = vmatpush2.bf16.msra.mxu0 %v3618
        %3710 = vmatprep.subr.bf16.mxu0 %v3615
        %3711 = vmatpush2.bf16.msra.mxu0 %v3614
        %3712 = vmatprep.subr.bf16.mxu0 %v3611
        %3713 = vmatpush2.bf16.msra.mxu0 %v3610
        %3714 = vmatprep.subr.bf16.mxu0 %v3607
        %3715 = vmatpush2.bf16.msra.mxu0 %v3606
        %3716 = vmatprep.subr.bf16.mxu0 %v3603
        %3717 = vmatpush2.bf16.msra.mxu0 %v3602
        %3718 = vmatprep.subr.bf16.mxu0 %v3599
        %3719 = vmatpush2.bf16.msra.mxu0 %v3598
        %3720 = vmatprep.subr.bf16.mxu0 %v3595
        %3721 = vmatpush2.bf16.msra.mxu0 %v3594
        %3722 = vmatprep.mubr.bf16.mxu0 %v3559
        %3723 = vmatmul.mubr.bf16.gmra.mxu0 %v3558
        %v3724 = vpop.f32.mrf.mxu0
        %v3725 = vadd.f32 0.0, %v3724
        %v3726 = vpop.f32.mrf.mxu0
        %v3727 = vadd.f32 0.0, %v3726
        %v3728 = vpop.f32.mrf.mxu0
        %v3729 = vpop.f32.mrf.mxu0
        %3730 = vdwg.mxu0
        %3731 = vmatprep.subr.bf16.mxu0 %v3655
        %3732 = vmatpush1.bf16.msra.mxu0 %v3654
        %3733 = vmatprep.subr.bf16.mxu0 %v3651
        %3734 = vmatpush1.bf16.msra.mxu0 %v3650
        %3735 = vmatprep.subr.bf16.mxu0 %v3647
        %3736 = vmatpush1.bf16.msra.mxu0 %v3646
        %3737 = vmatprep.subr.bf16.mxu0 %v3643
        %3738 = vmatpush1.bf16.msra.mxu0 %v3642
        %3739 = vmatprep.subr.bf16.mxu0 %v3639
        %3740 = vmatpush1.bf16.msra.mxu0 %v3638
        %3741 = vmatprep.subr.bf16.mxu0 %v3635
        %3742 = vmatpush1.bf16.msra.mxu0 %v3634
        %3743 = vmatprep.subr.bf16.mxu0 %v3631
        %3744 = vmatpush1.bf16.msra.mxu0 %v3630
        %3745 = vmatprep.subr.bf16.mxu0 %v3627
        %3746 = vmatpush1.bf16.msra.mxu0 %v3626
        %3747 = vmatprep.subr.bf16.mxu0 %v3687
        %3748 = vmatpush2.bf16.msra.mxu0 %v3686
        %3749 = vmatprep.subr.bf16.mxu0 %v3683
        %3750 = vmatpush2.bf16.msra.mxu0 %v3682
        %3751 = vmatprep.subr.bf16.mxu0 %v3679
        %3752 = vmatpush2.bf16.msra.mxu0 %v3678
        %3753 = vmatprep.subr.bf16.mxu0 %v3675
        %3754 = vmatpush2.bf16.msra.mxu0 %v3674
        %3755 = vmatprep.subr.bf16.mxu0 %v3671
        %3756 = vmatpush2.bf16.msra.mxu0 %v3670
        %3757 = vmatprep.subr.bf16.mxu0 %v3667
        %3758 = vmatpush2.bf16.msra.mxu0 %v3666
        %3759 = vmatprep.subr.bf16.mxu0 %v3663
        %3760 = vmatpush2.bf16.msra.mxu0 %v3662
        %3761 = vmatprep.subr.bf16.mxu0 %v3659
        %3762 = vmatpush2.bf16.msra.mxu0 %v3658
        %3763 = vmatprep.mubr.bf16.mxu0 %v3561
        %3764 = vmatmul.mubr.bf16.gmra.mxu0 %v3560
        %v3765 = vpop.f32.mrf.mxu0
        %v3766 = vadd.f32 %v3725, %v3765
        %v3767 = vpop.f32.mrf.mxu0
        %v3768 = vadd.f32 %v3727, %v3767
        %v3769 = vpop.f32.mrf.mxu0
        %v3770 = vpop.f32.mrf.mxu0
        %3771 = vdwg.mxu0
        %3772 = vmatprep.subr.bf16.mxu0 %v3593
        %3773 = vmatpush1.bf16.msra.mxu0 %v3592
        %3774 = vmatprep.subr.bf16.mxu0 %v3589
        %3775 = vmatpush1.bf16.msra.mxu0 %v3588
        %3776 = vmatprep.subr.bf16.mxu0 %v3585
        %3777 = vmatpush1.bf16.msra.mxu0 %v3584
        %3778 = vmatprep.subr.bf16.mxu0 %v3581
        %3779 = vmatpush1.bf16.msra.mxu0 %v3580
        %3780 = vmatprep.subr.bf16.mxu0 %v3577
        %3781 = vmatpush1.bf16.msra.mxu0 %v3576
        %3782 = vmatprep.subr.bf16.mxu0 %v3573
        %3783 = vmatpush1.bf16.msra.mxu0 %v3572
        %3784 = vmatprep.subr.bf16.mxu0 %v3569
        %3785 = vmatpush1.bf16.msra.mxu0 %v3568
        %3786 = vmatprep.subr.bf16.mxu0 %v3565
        %3787 = vmatpush1.bf16.msra.mxu0 %v3564
        %3788 = vmatprep.subr.bf16.mxu0 %v3625
        %3789 = vmatpush2.bf16.msra.mxu0 %v3624
        %3790 = vmatprep.subr.bf16.mxu0 %v3621
        %3791 = vmatpush2.bf16.msra.mxu0 %v3620
        %3792 = vmatprep.subr.bf16.mxu0 %v3617
        %3793 = vmatpush2.bf16.msra.mxu0 %v3616
        %3794 = vmatprep.subr.bf16.mxu0 %v3613
        %3795 = vmatpush2.bf16.msra.mxu0 %v3612
        %3796 = vmatprep.subr.bf16.mxu0 %v3609
        %3797 = vmatpush2.bf16.msra.mxu0 %v3608
        %3798 = vmatprep.subr.bf16.mxu0 %v3605
        %3799 = vmatpush2.bf16.msra.mxu0 %v3604
        %3800 = vmatprep.subr.bf16.mxu0 %v3601
        %3801 = vmatpush2.bf16.msra.mxu0 %v3600
        %3802 = vmatprep.subr.bf16.mxu0 %v3597
        %3803 = vmatpush2.bf16.msra.mxu0 %v3596
        %3804 = vmatprep.mubr.bf16.mxu0 %v3559
        %3805 = vmatmul.mubr.bf16.gmra.mxu0 %v3558
        %v3806 = vpop.f32.mrf.mxu0
        %v3807 = vadd.f32 0.0, %v3806
        %v3808 = vpop.f32.mrf.mxu0
        %v3809 = vadd.f32 0.0, %v3808
        %v3810 = vpop.f32.mrf.mxu0
        %v3811 = vpop.f32.mrf.mxu0
        %3812 = vdwg.mxu0
        %3813 = vmatprep.subr.bf16.mxu0 %v3657
        %3814 = vmatpush1.bf16.msra.mxu0 %v3656
        %3815 = vmatprep.subr.bf16.mxu0 %v3653
        %3816 = vmatpush1.bf16.msra.mxu0 %v3652
        %3817 = vmatprep.subr.bf16.mxu0 %v3649
        %3818 = vmatpush1.bf16.msra.mxu0 %v3648
        %3819 = vmatprep.subr.bf16.mxu0 %v3645
        %3820 = vmatpush1.bf16.msra.mxu0 %v3644
        %3821 = vmatprep.subr.bf16.mxu0 %v3641
        %3822 = vmatpush1.bf16.msra.mxu0 %v3640
        %3823 = vmatprep.subr.bf16.mxu0 %v3637
        %3824 = vmatpush1.bf16.msra.mxu0 %v3636
        %3825 = vmatprep.subr.bf16.mxu0 %v3633
        %3826 = vmatpush1.bf16.msra.mxu0 %v3632
        %3827 = vmatprep.subr.bf16.mxu0 %v3629
        %3828 = vmatpush1.bf16.msra.mxu0 %v3628
        %3829 = vmatprep.subr.bf16.mxu0 %v3689
        %3830 = vmatpush2.bf16.msra.mxu0 %v3688
        %3831 = vmatprep.subr.bf16.mxu0 %v3685
        %3832 = vmatpush2.bf16.msra.mxu0 %v3684
        %3833 = vmatprep.subr.bf16.mxu0 %v3681
        %3834 = vmatpush2.bf16.msra.mxu0 %v3680
        %3835 = vmatprep.subr.bf16.mxu0 %v3677
        %3836 = vmatpush2.bf16.msra.mxu0 %v3676
        %3837 = vmatprep.subr.bf16.mxu0 %v3673
        %3838 = vmatpush2.bf16.msra.mxu0 %v3672
        %3839 = vmatprep.subr.bf16.mxu0 %v3669
        %3840 = vmatpush2.bf16.msra.mxu0 %v3668
        %3841 = vmatprep.subr.bf16.mxu0 %v3665
        %3842 = vmatpush2.bf16.msra.mxu0 %v3664
        %3843 = vmatprep.subr.bf16.mxu0 %v3661
        %3844 = vmatpush2.bf16.msra.mxu0 %v3660
        %3845 = vmatprep.mubr.bf16.mxu0 %v3561
        %3846 = vmatmul.mubr.bf16.gmra.mxu0 %v3560
        %v3847 = vpop.f32.mrf.mxu0
        %v3848 = vadd.f32 %v3807, %v3847
        %v3849 = vpop.f32.mrf.mxu0
        %v3850 = vadd.f32 %v3809, %v3849
        %v3851 = vpop.f32.mrf.mxu0
        %v3852 = vpop.f32.mrf.mxu0
        %3853 = vdwg.mxu0
        %v3854 = vadd.f32 %v3554, %v3766
        %v3855 = vadd.f32 %v3555, %v3768
        %v3856 = vadd.f32 %v3556, %v3848
        %v3857 = vadd.f32 %v3557, %v3850
        %v3862 = vcombine.low %v3854, %v3855
        %v3863 = vcombine.low %v3856, %v3857
        %3866 = vst [vmem:[#allocation5] sm:$0xff] %v3862
        %3867 = vst [vmem:[#allocation5 + $0x8] sm:$0xff] %v3863
        %3868 = vst.msk [vmem:[#allocation3] sm:$0xf] %vm3523, %v2419
        %p3869 = scmp.eq.s32.totalorder %s37, 1
        // Predicated region
        $region69: #{tpu_custom_call.1} parent=55 // pred_check
          %p3870 = pneg %p3869
        $region70: #{tpu_custom_call.1} parent=55 // pred_check_branch
          %3872 = sbr.rel (%p3870) target = $region72
        $region71: #{tpu_custom_call.1} parent=55 // pred_region
          %v3873 = vld [vmem:[#allocation5] sm:$0xff]
          %v3874 = vld [vmem:[#allocation5 + $0x8] sm:$0xff]
          %v3875 = vld [vmem:[#allocation4] sm:$0xf]
          %v3876 = vrcp.pop %v3875
          %v3878 = vlaneseq
          %v3879 = vshrl.u32 %v3878, 7
          %v3880 = vsub.s32 0, %v3879
          %v3881 = vrot.slane %v3876, %v3880
          %v3882 = vlaneseq
          %v3883 = vshrl.u32 %v3882, 7
          %v3884 = vsub.s32 1, %v3883
          %v3885 = vrot.slane %v3876, %v3884
          %v3886 = vlaneseq
          %v3887 = vshrl.u32 %v3886, 7
          %v3888 = vsub.s32 2, %v3887
          %v3889 = vrot.slane %v3876, %v3888
          %v3890 = vlaneseq
          %v3891 = vshrl.u32 %v3890, 7
          %v3892 = vsub.s32 3, %v3891
          %v3893 = vrot.slane %v3876, %v3892
          %v3894 = vcombine.low %v3881, %v3885
          %v3895 = vcombine.low %v3889, %v3893
          %v3898 = vmul.f32 %v3873, %v3894
          %v3899 = vmul.f32 %v3874, %v3895
          %s3900 = sld [smem:[#allocation6]]
          %v3901 = vld [vmem:[%s364] sm:$0xff]
          %v3902 = vld [vmem:[%s364 + $0x8] sm:$0xff]
          %v3903 = vstv %s3900
          %v3904 = vmul.f32 %v3903, %v3898
          %v3905 = vmul.f32 %v3903, %v3899
          %v3906 = vadd.f32 %v3901, %v3904
          %v3907 = vadd.f32 %v3902, %v3905
          %3908 = vst [vmem:[%s412] sm:$0xff] %v3906
          %3909 = vst [vmem:[%s412 + $0x8] sm:$0xff] %v3907
        $region72: #{tpu_custom_call.1} parent=55 // pred_fallthru
          _
        %s3910 = sand.u32 %s260, 1
        %s3911 = scalar_lea.sflag [#allocation9], %s3910
        %s3912 = sand.u32 %s260, 1
        %s3913 = smul.addr %s3912, 16
        %s3914 = scalar_lea.vmem [#allocation12], %s3913
        // Predicated region
        $region73: #{tpu_custom_call.1} parent=55 // pred_check
          %p3915 = pneg %p270
        $region74: #{tpu_custom_call.1} parent=55 // pred_check_branch
          %3917 = sbr.rel (%p3915) target = $region76
        $region75: #{tpu_custom_call.1} parent=55 // pred_region
          %s3918 = smul.u32 4, %s36
          %s3920 = ssub.s32 256, 256
          %3921 = vsyncadd %s3911, %s3920
          %s3922 = smul.addr %s35, 8
          %s3923 = sadd.s32 %s3918, %s3922
          %s3924 = smul.addr %s3923, 64
          %s3925 = scalar_lea.hbm %s9, %s3924
          %s3927 = sshll.u32 %s3914, 4
          %s3928 = int_to_ptr.vmem [resolvable:$true] %s3927
          %3930 = dma.vmem_to_hbm [thread:$0]  %s3928, 256, %s3925, %s3911
        $region76: #{tpu_custom_call.1} parent=55 // pred_fallthru
          _
      $region56: #{tpu_custom_call.1} parent=5 // pred_fallthru
        _
      %p3931 = scmp.le.s32.totalorder 2, %s25
      // Predicated region
      $region77: #{tpu_custom_call.1} parent=5 // pred_check
        %p3932 = pneg %p3931
      $region78: #{tpu_custom_call.1} parent=5 // pred_check_branch
        %3934 = sbr.rel (%p3932) target = $region80
      $region79: #{tpu_custom_call.1} parent=5 // pred_region
        %s3935 = ssub.s32 %s25, 2
        // Predicated region
        $region81: #{tpu_custom_call.1} parent=79 // pred_check
          %p3936 = pneg %p276
        $region82: #{tpu_custom_call.1} parent=79 // pred_check_branch
          %3938 = sbr.rel (%p3936) target = $region84
        $region83: #{tpu_custom_call.1} parent=79 // pred_region
          %s3939 = sand.u32 %s261, 1
          %s3940 = scalar_lea.sflag [#allocation9], %s3939
          %s3941 = sand.u32 %s261, 1
          %s3942 = smul.addr %s3941, 16
          %s3943 = scalar_lea.vmem [#allocation12], %s3942
          %3944 = dma.done %s3940, 256
        $region84: #{tpu_custom_call.1} parent=79 // pred_fallthru
          _
      $region80: #{tpu_custom_call.1} parent=5 // pred_fallthru
        _
    $region6: #{tpu_custom_call.1} parent=1 // loop_footer
      %s29 = sadd.s32 1, %s25
    $region7: #{tpu_custom_call.1} parent=1 // loop_footer_branch
      %24 = sbr.rel target = $region3
    $region8: #{tpu_custom_call.1} parent=1 // loop_exit
      _
    %3945 = vsyncpa [#allocation8], 1
    %s3946 = scalar_lea.sflag [#allocation8], 1
    %3947 = vsyncpa %s3946, 1
    %3948 = vsyncpa [#allocation11], 1
    %s3949 = scalar_lea.sflag [#allocation11], 1
    %3950 = vsyncpa %s3949, 1
    %3951 = vsyncpa [#allocation9], 1
    %s3952 = scalar_lea.sflag [#allocation9], 1
    %3953 = vsyncpa %s3952, 1

</llo_original>
